<compile_context>
chip_gen: v6e
topology: v6e:2x2x1
jax: 0.10.0
libtpu: 0.0.40
codegen_flags: <defaults>
</compile_context>

<pallas_src>
import functools
import math

import numpy as np
import jax
import jax.numpy as jnp
from jax.experimental import pallas as pl


# ---------------------------------------------------------------------------
# Static per-layer parameter-slab layout (shared by packer and kernel)
# ---------------------------------------------------------------------------

def _layer_layout(D, K, BP):
    """Row/column offsets of one transformer layer's packed parameter slab."""
    quarter = D // 4
    off = {}
    r = 0
    off["ln0"] = r; r += 1          # gamma [:D] | beta [D:2D]
    off["ln1"] = r; r += 1
    off["bqkv"] = r; r += 1         # [:6*quarter]
    off["bo_b2"] = r; r += 1        # bo_acc [:q] | bo_gyro [q:2q] | mlp_b2 [2q:2q+D]
    off["b1"] = r; r += 1           # [:2D]
    off["wqkv"] = r; r += D         # (D, 6q)
    off["w1"] = r; r += D           # (D, 2D)
    off["w2"] = r; r += 2 * D       # (2D, D)
    off["wo"] = r; r += quarter     # wo_acc [:, :q] | wo_gyro [:, q:2q]
    off["csame"] = r; r += K * BP   # (K*BP, half)
    off["cnext"] = r; r += K * BP   # (K*BP, half)
    off["rows"] = r
    off["width"] = 2 * D
    return off


# ---------------------------------------------------------------------------
# Fused whole-forward kernel
# ---------------------------------------------------------------------------

def _hart_fused_kernel(src_r, wstem_r, posb_r, amask_r, *rest,
                       B, P, D, num_heads, kernel_sizes, n_units):
    f32 = jnp.float32
    quarter, half = D // 4, D // 2
    hd = quarter // num_heads
    BP = B * P
    scale = 1.0 / math.sqrt(hd)
    eps = 1e-6

    nL = len(kernel_sizes)
    layer_refs = rest[:nL]
    tail_r = rest[nL]
    o_r = rest[nL + 1]

    def dot(a, b):
        return jnp.dot(a, b, preferred_element_type=f32)

    def dot_nt(a, b):  # a @ b.T without materializing a transpose
        return jax.lax.dot_general(a, b, (((1,), (1,)), ((), ())),
                                   preferred_element_type=f32)

    def layer_norm(x, g, b):
        mu = jnp.mean(x, axis=-1, keepdims=True)
        xc = x - mu
        var = jnp.mean(xc * xc, axis=-1, keepdims=True)
        return xc * jax.lax.rsqrt(var + eps) * g + b

    def roll_cols(x, r):  # out[:, c] = x[:, (c + r) % n]   (lane roll)
        n = x.shape[1]
        r = r % n
        if r == 0:
            return x
        return jnp.concatenate([x[:, r:], x[:, :r]], axis=1)

    def roll_rows(x, q):  # out[r, :] = x[(r + q) % m, :]   (sublane roll)
        m = x.shape[0]
        q = q % m
        if q == 0:        # qd+1 == 0 special case: no shift, no work
            return x
        return jnp.concatenate([x[q:, :], x[:q, :]], axis=0)

    # ---- stem: input Linear + patchify + biases + pos-emb folded to 1 matmul
    enc = dot(src_r[...], wstem_r[...]) + posb_r[...]            # (BP, D)
    amask = amask_r[...]                                         # (BP, BP)

    # ---- transformer layers (heads / taps statically unrolled; offsets differ
    #      per iteration so a fori_loop would force dynamic slicing)
    for K, slab_r in zip(kernel_sizes, layer_refs):
        off = _layer_layout(D, K, BP)
        q6 = 6 * quarter

        ln0_g = slab_r[off["ln0"]:off["ln0"] + 1, :D]
        ln0_b = slab_r[off["ln0"]:off["ln0"] + 1, D:2 * D]
        x1 = layer_norm(enc, ln0_g, ln0_b)

        # fused Q/K/V for both sliced-attention branches: one (BP,D)@(D,6q)
        wqkv = slab_r[off["wqkv"]:off["wqkv"] + D, :q6]
        bqkv = slab_r[off["bqkv"]:off["bqkv"] + 1, :q6]
        qkv = dot(x1, wqkv) + bqkv

        # acc / gyro sliced MHA: all batches merged, cross-batch scores masked
        branch = []
        for bi, col_base in enumerate((0, 3 * quarter)):
            wo = slab_r[off["wo"]:off["wo"] + quarter,
                        bi * quarter:(bi + 1) * quarter]
            bo = slab_r[off["bo_b2"]:off["bo_b2"] + 1,
                        bi * quarter:(bi + 1) * quarter]
            heads = []
            for hh in range(num_heads):
                c0 = col_base + hh * hd
                qh = qkv[:, c0:c0 + hd]
                kh = qkv[:, c0 + quarter:c0 + quarter + hd]
                vh = qkv[:, c0 + 2 * quarter:c0 + 2 * quarter + hd]
                s = dot_nt(qh, kh) * scale + amask               # (BP, BP)
                s = s - jnp.max(s, axis=-1, keepdims=True)
                p = jnp.exp(s)
                p = p / jnp.sum(p, axis=-1, keepdims=True)
                heads.append(dot(p, vh))                         # (BP, hd)
            o_cat = jnp.concatenate(heads, axis=-1)              # (BP, quarter)
            branch.append(dot(o_cat, wo) + bo)

        # LiteFormer: depthwise conv along the literal PyTorch reshape(-1,H,P)
        # flat axis, expressed as rolls x precomputed per-tap masks (no MXU).
        lf_in = x1[:, quarter:quarter + half]                    # (BP, half)
        pad = K // 2
        lf_out = None
        for k in range(K):
            s_off = k - pad
            cs = slab_r[off["csame"] + k * BP:
                        off["csame"] + (k + 1) * BP, :half]
            if s_off == 0:
                term = lf_in * cs
            else:
                qd, rr = divmod(s_off, half)
                xc = roll_cols(lf_in, rr)
                term = roll_rows(xc, qd) * cs
                cn = slab_r[off["cnext"] + k * BP:
                            off["cnext"] + (k + 1) * BP, :half]
                term = term + roll_rows(xc, qd + 1) * cn
            lf_out = term if lf_out is None else lf_out + term

        # register-resident branch concat + residual 1
        x2 = jnp.concatenate([branch[0], lf_out, branch[1]], axis=-1) + enc

        ln1_g = slab_r[off["ln1"]:off["ln1"] + 1, :D]
        ln1_b = slab_r[off["ln1"]:off["ln1"] + 1, D:2 * D]
        x3 = layer_norm(x2, ln1_g, ln1_b)
        w1 = slab_r[off["w1"]:off["w1"] + D, :2 * D]
        b1 = slab_r[off["b1"]:off["b1"] + 1, :2 * D]
        h1 = dot(x3, w1) + b1
        h1 = h1 * jax.nn.sigmoid(h1)                             # SiLU
        w2 = slab_r[off["w2"]:off["w2"] + 2 * D, :D]
        b2 = slab_r[off["bo_b2"]:off["bo_b2"] + 1,
                    2 * quarter:2 * quarter + D]
        enc = dot(h1, w2) + b2 + x2                              # residual 2

    # ---- final LayerNorm + GAP over patches (sublane mean) + swish MLP head
    last_g = tail_r[0:1, :D]
    last_b = tail_r[1:2, :D]
    head_b = tail_r[2:3, :n_units]
    head_w = tail_r[3:3 + D, :n_units]
    normed = layer_norm(enc, last_g, last_b)
    gap = jnp.concatenate(
        [jnp.mean(normed[b * P:(b + 1) * P, :], axis=0, keepdims=True)
         for b in range(B)], axis=0)                             # (B, D)
    head = dot(gap, head_w) + head_b
    o_r[...] = (head * jax.nn.sigmoid(head)).astype(o_r.dtype)


# ---------------------------------------------------------------------------
# Parameter packing (cheap, param-only jnp ops in the wrapper)
# ---------------------------------------------------------------------------

def _lf_coeffs(lf_w, B, P, half):
    """Per-tap 'same-row' / 'next-row' coefficient masks that reproduce
    LiteFormer's literal reshape(-1, H, P) + per-head depthwise conv1d
    (padding=K//2) on the flat (B*P, half) layout."""
    H, K = lf_w.shape
    pad = K // 2
    BP = B * P
    rows = np.arange(BP)[:, None]
    cols = np.arange(half)[None, :]
    f = (rows % P) * half + cols           # per-batch flat position
    j = f % P                              # index inside the length-P chunk
    hsel = (f // P) % H                    # which depthwise head/kernel
    csame, cnext = [], []
    for k in range(K):
        s = k - pad
        valid = ((j + s >= 0) & (j + s < P)).astype(np.float32)
        r = s % half
        wrap = ((cols + r) >= half).astype(np.float32) * np.ones_like(valid)
        coef = lf_w[hsel, k] * jnp.asarray(valid)
        csame.append(coef * jnp.asarray(1.0 - wrap))
        cnext.append(coef * jnp.asarray(wrap))
    return jnp.stack(csame), jnp.stack(cnext)       # each (K, BP, half)


def _pack_layer_slab(lp, D, B, P):
    quarter, half = D // 4, D // 2
    BP = B * P
    f32 = jnp.float32
    K = int(lp["lf_w"].shape[1])
    off = _layer_layout(D, K, BP)
    a, g = lp["acc_attn"], lp["gyro_attn"]
    q6 = 6 * quarter
    g0 = quarter + half

    wqkv = jnp.zeros((D, q6), f32)
    wqkv = wqkv.at[:quarter, 0 * quarter:1 * quarter].set(a["wq"])
    wqkv = wqkv.at[:quarter, 1 * quarter:2 * quarter].set(a["wk"])
    wqkv = wqkv.at[:quarter, 2 * quarter:3 * quarter].set(a["wv"])
    wqkv = wqkv.at[g0:, 3 * quarter:4 * quarter].set(g["wq"])
    wqkv = wqkv.at[g0:, 4 * quarter:5 * quarter].set(g["wk"])
    wqkv = wqkv.at[g0:, 5 * quarter:6 * quarter].set(g["wv"])
    bqkv = jnp.concatenate([a["bq"], a["bk"], a["bv"],
                            g["bq"], g["bk"], g["bv"]])
    csame, cnext = _lf_coeffs(lp["lf_w"], B, P, half)

    slab = jnp.zeros((off["rows"], off["width"]), f32)
    slab = slab.at[off["ln0"], :D].set(lp["ln0_g"])
    slab = slab.at[off["ln0"], D:2 * D].set(lp["ln0_b"])
    slab = slab.at[off["ln1"], :D].set(lp["ln1_g"])
    slab = slab.at[off["ln1"], D:2 * D].set(lp["ln1_b"])
    slab = slab.at[off["bqkv"], :q6].set(bqkv)
    slab = slab.at[off["bo_b2"], :quarter].set(a["bo"])
    slab = slab.at[off["bo_b2"], quarter:2 * quarter].set(g["bo"])
    slab = slab.at[off["bo_b2"], 2 * quarter:2 * quarter + D].set(lp["mlp_b2"])
    slab = slab.at[off["b1"], :2 * D].set(lp["mlp_b1"])
    slab = slab.at[off["wqkv"]:off["wqkv"] + D, :q6].set(wqkv)
    slab = slab.at[off["w1"]:off["w1"] + D, :2 * D].set(lp["mlp_w1"])
    slab = slab.at[off["w2"]:off["w2"] + 2 * D, :D].set(lp["mlp_w2"])
    slab = slab.at[off["wo"]:off["wo"] + quarter, :quarter].set(a["wo"])
    slab = slab.at[off["wo"]:off["wo"] + quarter,
                   quarter:2 * quarter].set(g["wo"])
    slab = slab.at[off["csame"]:off["csame"] + K * BP, :half].set(
        csame.reshape(K * BP, half))
    slab = slab.at[off["cnext"]:off["cnext"] + K * BP, :half].set(
        cnext.reshape(K * BP, half))
    return slab


def hart_forward(params, src, cfg):
    B, T, C = src.shape
    D = cfg["projection_dim"]
    P = cfg["num_patches"]
    ps = cfg["patch_size"]
    half, quarter = D // 2, D // 4
    cm = C // 2
    BP = B * P
    n_units = cfg["mlp_head_units"][0]
    f32 = jnp.float32
    HP = jax.lax.Precision.HIGHEST

    assert cfg["time_step"] == cfg["patch_size"] and T == P * ps
    assert quarter % cfg["num_heads"] == 0
    assert half % cfg["filter_attention_head"] == 0
    assert all(k % 2 == 1 and k // 2 < half for k in cfg["conv_kernels"])
    # TODO(synk): overlapping patches (timeStep < patchSize) would need a real
    # strided-conv patchify instead of the reshape+matmul folding used here.

    src_flat = src.reshape(BP, ps * C).astype(f32)

    # --- stem folding: (per-timestep Linear) o (stride==kernel patchify conv)
    w_in_k = jnp.kron(jnp.eye(ps, dtype=f32), params["in_w"])     # (ps*C, ps*C)
    b_in_k = jnp.tile(params["in_b"], ps)                         # (ps*C,)
    acc_w = params["acc_w"].reshape(ps, cm, half)
    gyro_w = params["gyro_w"].reshape(ps, cm, half)
    w_patch = jnp.concatenate(
        [jnp.zeros((ps, C, half), f32).at[:, :cm, :].set(acc_w),
         jnp.zeros((ps, C, half), f32).at[:, cm:, :].set(gyro_w)],
        axis=-1).reshape(ps * C, D)
    b_patch = jnp.concatenate([params["acc_b"], params["gyro_b"]])
    w_stem = jnp.dot(w_in_k, w_patch, precision=HP)               # (ps*C, D)
    b_stem = jnp.dot(b_in_k, w_patch, precision=HP) + b_patch     # (D,)
    posb = jnp.tile(params["pos_emb"], (B, 1)) + b_stem[None, :]  # (BP, D)

    # --- additive mask making the batch-merged softmax exactly per-batch
    bid = np.repeat(np.arange(B), P)
    amask = jnp.asarray(
        np.where(bid[:, None] == bid[None, :], 0.0, -1e9).astype(np.float32))

    layer_slabs = [_pack_layer_slab(lp, D, B, P) for lp in params["layers"]]
    kernel_sizes = tuple(int(lp["lf_w"].shape[1]) for lp in params["layers"])

    tail = jnp.zeros((3 + D, max(D, n_units)), f32)
    tail = tail.at[0, :D].set(params["last_g"])
    tail = tail.at[1, :D].set(params["last_b"])
    tail = tail.at[2, :n_units].set(params["head_b"])
    tail = tail.at[3:3 + D, :n_units].set(params["head_w"])

    kernel = functools.partial(
        _hart_fused_kernel, B=B, P=P, D=D, num_heads=cfg["num_heads"],
        kernel_sizes=kernel_sizes, n_units=n_units)
    return pl.pallas_call(
        kernel,
        out_shape=jax.ShapeDtypeStruct((B, n_units), f32),
    )(src_flat, w_stem, posb, amask, *layer_slabs, tail)


# ---------------------------------------------------------------------------
# Pure-JAX reference (mirrors the PyTorch module, eval mode) for verification
# ---------------------------------------------------------------------------

def hart_reference(params, src, cfg):
    HP = jax.lax.Precision.HIGHEST
    B, T, C = src.shape
    D = cfg["projection_dim"]
    quarter, half = D // 4, D // 2
    P = cfg["num_patches"]
    ps = cfg["patch_size"]
    nH = cfg["num_heads"]
    fH = cfg["filter_attention_head"]
    cm = C // 2

    def dot(a, b):
        return jnp.dot(a, b, precision=HP)

    x = dot(src, params["in_w"]) + params["in_b"]
    acc = x[:, :, :cm].reshape(B * P, ps * cm)
    gyro = x[:, :, cm:].reshape(B * P, ps * cm)
    patches = jnp.concatenate(
        [dot(acc, params["acc_w"]) + params["acc_b"],
         dot(gyro, params["gyro_w"]) + params["gyro_b"]],
        axis=-1).reshape(B, P, D)
    enc = patches + params["pos_emb"][None]

    def ln(x2, g, b):
        mu = x2.mean(-1, keepdims=True)
        xc = x2 - mu
        var = (xc * xc).mean(-1, keepdims=True)
        return xc * jax.lax.rsqrt(var + 1e-6) * g + b

    def mha(xs, p):
        Bq, Pq, Dq = xs.shape
        hd = Dq // nH

        def proj(w, bias):
            return (dot(xs.reshape(Bq * Pq, Dq), w) + bias).reshape(
                Bq, Pq, nH, hd).transpose(0, 2, 1, 3)

        q = proj(p["wq"], p["bq"])
        k = proj(p["wk"], p["bk"])
        v = proj(p["wv"], p["bv"])
        s = jnp.einsum("bhqd,bhkd->bhqk", q, k, precision=HP) / math.sqrt(hd)
        a = jax.nn.softmax(s, axis=-1)
        o = jnp.einsum("bhqk,bhkd->bhqd", a, v, precision=HP)
        o = o.transpose(0, 2, 1, 3).reshape(Bq * Pq, Dq)
        return (dot(o, p["wo"]) + p["bo"]).reshape(Bq, Pq, Dq)

    def lite(x3, w):
        iv = x3[:, :, quarter:quarter + half]
        data = iv.reshape(-1, fH, P)                 # literal PyTorch reshape
        K = w.shape[1]
        pad = K // 2
        dp = jnp.pad(data, ((0, 0), (0, 0), (pad, pad)))
        out = jnp.zeros_like(data)
        for k in range(K):
            out = out + dp[:, :, k:k + P] * w[:, k][None, :, None]
        return out.reshape(B, P, half)

    for lp in params["layers"]:
        x1 = ln(enc, lp["ln0_g"], lp["ln0_b"])
        branches = jnp.concatenate(
            [mha(x1[:, :, :quarter], lp["acc_attn"]),
             lite(x1, lp["lf_w"]),
             mha(x1[:, :, quarter + half:], lp["gyro_attn"])], axis=-1)
        x2 = branches + enc
        x3 = ln(x2, lp["ln1_g"], lp["ln1_b"])
        x3 = dot(x3.reshape(B * P, D), lp["mlp_w1"]) + lp["mlp_b1"]
        x3 = x3 * jax.nn.sigmoid(x3)
        x3 = (dot(x3, lp["mlp_w2"]) + lp["mlp_b2"]).reshape(B, P, D)
        enc = x3 + x2
    norm = ln(enc, params["last_g"], params["last_b"])
    g = norm.mean(axis=1)
    head = dot(g, params["head_w"]) + params["head_b"]
    return head * jax.nn.sigmoid(head)


# ---------------------------------------------------------------------------
# Deterministic synthetic parameter initialization
# ---------------------------------------------------------------------------

def init_params(key, cfg):
    D = cfg["projection_dim"]
    quarter, half = D // 4, D // 2
    C = cfg["channels"]
    ps = cfg["patch_size"]
    H = cfg["filter_attention_head"]
    keys = iter(jax.random.split(key, 512))

    def w(shape, scale=0.05):
        return scale * jax.random.normal(next(keys), shape, jnp.float32)

    def zeros(n):
        return jnp.zeros((n,), jnp.float32)

    def ones(n):
        return jnp.ones((n,), jnp.float32)

    params = {
        "in_w": w((C, C)), "in_b": zeros(C),
        "acc_w": w((ps * (C // 2), half)), "acc_b": zeros(half),
        "gyro_w": w((ps * (C // 2), half)), "gyro_b": zeros(half),
        "pos_emb": w((cfg["num_patches"], D), 0.02),
        "last_g": ones(D), "last_b": zeros(D),
        "head_w": w((D, cfg["mlp_head_units"][0])),
        "head_b": zeros(cfg["mlp_head_units"][0]),
        "layers": [],
    }

    def attn_params():
        return {"wq": w((quarter, quarter)), "bq": zeros(quarter),
                "wk": w((quarter, quarter)), "bk": zeros(quarter),
                "wv": w((quarter, quarter)), "bv": zeros(quarter),
                "wo": w((quarter, quarter)), "bo": zeros(quarter)}

    for K in cfg["conv_kernels"]:
        params["layers"].append({
            "ln0_g": ones(D), "ln0_b": zeros(D),
            "acc_attn": attn_params(),
            "lf_w": w((H, K), 0.3),            # Conv1d(1,1,K) weights per head
            "gyro_attn": attn_params(),
            "ln1_g": ones(D), "ln1_b": zeros(D),
            "mlp_w1": w((D, 2 * D)), "mlp_b1": zeros(2 * D),
            "mlp_w2": w((2 * D, D)), "mlp_b2": zeros(D),
        })
    return params


# ---------------------------------------------------------------------------

if __name__ == "__main__":
    cfg = dict(
        projection_dim=24,          # quarter=6, half=12
        patch_size=8,
        time_step=8,
        num_heads=3,                # head_dim = 2
        filter_attention_head=4,    # LiteFormer depthwise heads
        conv_kernels=[3, 7],        # two transformer layers (odd 'same' kernels)
        mlp_head_units=[32],
        channels=6,                 # 3 acc + 3 gyro
        seq_len=64,
    )
    cfg["num_patches"] = (cfg["seq_len"] - cfg["patch_size"]) // cfg["time_step"] + 1
    assert cfg["num_patches"] == cfg["patch_size"]  # PatchEncoder(num_patches=patchSize)

    key = jax.random.PRNGKey(0)
    pkey, xkey = jax.random.split(key)
    params = init_params(pkey, cfg)
    src = jax.random.normal(xkey, (2, cfg["seq_len"], cfg["channels"]), jnp.float32)

    fwd = jax.jit(lambda p, s: hart_forward(p, s, cfg))
    out = fwd(params, src)
    jax.block_until_ready(out)
    assert out.shape == (2, cfg["mlp_head_units"][0])
    assert bool(jnp.all(jnp.isfinite(out)))

    ref = hart_reference(params, src, cfg)
    # atol slightly above f32-exact to absorb MXU default-precision differences
    assert bool(jnp.allclose(out, ref, rtol=1e-2, atol=2e-3)), (out, ref)
    print("KERNEL_OK")
</pallas_src>

<mosaic_0001>
module attributes {stable_mosaic.version = 11 : i64} {
  func.func @_hart_fused_kernel(%arg0: memref<16x48xf32, #tpu.memory_space<vmem>>, %arg1: memref<48x24xf32, #tpu.memory_space<vmem>>, %arg2: memref<16x24xf32, #tpu.memory_space<vmem>>, %arg3: memref<16x16xf32, #tpu.memory_space<vmem>>, %arg4: memref<203x48xf32, #tpu.memory_space<vmem>>, %arg5: memref<331x48xf32, #tpu.memory_space<vmem>>, %arg6: memref<27x32xf32, #tpu.memory_space<vmem>>, %arg7: memref<2x32xf32, #tpu.memory_space<vmem>>) attributes {dimension_semantics = [], scalar_prefetch = 0 : i64, scratch_operands = 0 : i64, tpu.core_type = #tpu.core_type<tc>} {
    %c0 = arith.constant 0 : index
    %c0_0 = arith.constant 0 : index
    %0 = vector.load %arg0[%c0, %c0_0] : memref<16x48xf32, #tpu.memory_space<vmem>>, vector<16x48xf32>
    %c0_1 = arith.constant 0 : index
    %c0_2 = arith.constant 0 : index
    %1 = vector.load %arg1[%c0_1, %c0_2] : memref<48x24xf32, #tpu.memory_space<vmem>>, vector<48x24xf32>
    %cst = arith.constant dense<0.000000e+00> : vector<16x24xf32>
    %2 = tpu.matmul %0, %1, %cst {dimension_numbers = #tpu.dot_dimension_numbers<[1], [0], [0], [1], [0, 0, 1, 1], [], []>} : vector<16x48xf32>, vector<48x24xf32>, vector<16x24xf32> -> vector<16x24xf32>
    %c0_3 = arith.constant 0 : index
    %c0_4 = arith.constant 0 : index
    %3 = vector.load %arg2[%c0_3, %c0_4] : memref<16x24xf32, #tpu.memory_space<vmem>>, vector<16x24xf32>
    %4 = arith.addf %2, %3 : vector<16x24xf32>
    %c0_5 = arith.constant 0 : index
    %c0_6 = arith.constant 0 : index
    %5 = vector.load %arg3[%c0_5, %c0_6] : memref<16x16xf32, #tpu.memory_space<vmem>>, vector<16x16xf32>
    %c0_7 = arith.constant 0 : index
    %c0_8 = arith.constant 0 : index
    %6 = vector.load %arg4[%c0_7, %c0_8] : memref<203x48xf32, #tpu.memory_space<vmem>>, vector<1x24xf32>
    %c0_9 = arith.constant 0 : index
    %c24 = arith.constant 24 : index
    %7 = vector.load %arg4[%c0_9, %c24] : memref<203x48xf32, #tpu.memory_space<vmem>>, vector<1x24xf32>
    %cst_10 = arith.constant dense<0.000000e+00> : vector<16xf32>
    %8 = vector.multi_reduction <add>, %4, %cst_10 [1] : vector<16x24xf32> to vector<16xf32>
    %9 = vector.shape_cast %8 : vector<16xf32> to vector<16x1xf32>
    %cst_11 = arith.constant 2.400000e+01 : f32
    %10 = vector.broadcast %cst_11 : f32 to vector<16x1xf32>
    %11 = arith.divf %9, %10 : vector<16x1xf32>
    %12 = vector.broadcast %11 : vector<16x1xf32> to vector<16x24xf32>
    %13 = arith.subf %4, %12 : vector<16x24xf32>
    %14 = arith.mulf %13, %13 : vector<16x24xf32>
    %cst_12 = arith.constant dense<0.000000e+00> : vector<16xf32>
    %15 = vector.multi_reduction <add>, %14, %cst_12 [1] : vector<16x24xf32> to vector<16xf32>
    %16 = vector.shape_cast %15 : vector<16xf32> to vector<16x1xf32>
    %cst_13 = arith.constant 2.400000e+01 : f32
    %17 = vector.broadcast %cst_13 : f32 to vector<16x1xf32>
    %18 = arith.divf %16, %17 : vector<16x1xf32>
    %cst_14 = arith.constant 9.99999997E-7 : f32
    %19 = vector.broadcast %cst_14 : f32 to vector<16x1xf32>
    %20 = arith.addf %18, %19 : vector<16x1xf32>
    %21 = math.rsqrt %20 : vector<16x1xf32>
    %22 = vector.broadcast %21 : vector<16x1xf32> to vector<16x24xf32>
    %23 = arith.mulf %13, %22 : vector<16x24xf32>
    %24 = vector.broadcast %6 : vector<1x24xf32> to vector<16x24xf32>
    %25 = arith.mulf %23, %24 : vector<16x24xf32>
    %26 = vector.broadcast %7 : vector<1x24xf32> to vector<16x24xf32>
    %27 = arith.addf %25, %26 : vector<16x24xf32>
    %c5 = arith.constant 5 : index
    %c0_15 = arith.constant 0 : index
    %28 = vector.load %arg4[%c5, %c0_15] : memref<203x48xf32, #tpu.memory_space<vmem>>, vector<24x36xf32>
    %c2 = arith.constant 2 : index
    %c0_16 = arith.constant 0 : index
    %29 = vector.load %arg4[%c2, %c0_16] : memref<203x48xf32, #tpu.memory_space<vmem>>, vector<1x36xf32>
    %cst_17 = arith.constant dense<0.000000e+00> : vector<16x36xf32>
    %30 = tpu.matmul %27, %28, %cst_17 {dimension_numbers = #tpu.dot_dimension_numbers<[1], [0], [0], [1], [0, 0, 1, 1], [], []>} : vector<16x24xf32>, vector<24x36xf32>, vector<16x36xf32> -> vector<16x36xf32>
    %31 = vector.broadcast %29 : vector<1x36xf32> to vector<16x36xf32>
    %32 = arith.addf %30, %31 : vector<16x36xf32>
    %c101 = arith.constant 101 : index
    %c0_18 = arith.constant 0 : index
    %33 = vector.load %arg4[%c101, %c0_18] : memref<203x48xf32, #tpu.memory_space<vmem>>, vector<6x6xf32>
    %c3 = arith.constant 3 : index
    %c0_19 = arith.constant 0 : index
    %34 = vector.load %arg4[%c3, %c0_19] : memref<203x48xf32, #tpu.memory_space<vmem>>, vector<1x6xf32>
    %35 = vector.extract_strided_slice %32 {offsets = [0, 0], sizes = [16, 2], strides = [1, 1]} : vector<16x36xf32> to vector<16x2xf32>
    %36 = vector.extract_strided_slice %32 {offsets = [0, 6], sizes = [16, 2], strides = [1, 1]} : vector<16x36xf32> to vector<16x2xf32>
    %37 = vector.extract_strided_slice %32 {offsets = [0, 12], sizes = [16, 2], strides = [1, 1]} : vector<16x36xf32> to vector<16x2xf32>
    %cst_20 = arith.constant dense<0.000000e+00> : vector<16x16xf32>
    %38 = tpu.matmul %35, %36, %cst_20 {dimension_numbers = #tpu.dot_dimension_numbers<[1], [1], [0], [0], [0, 0, 1, 0], [], []>} : vector<16x2xf32>, vector<16x2xf32>, vector<16x16xf32> -> vector<16x16xf32>
    %cst_21 = arith.constant 0.707106769 : f32
    %39 = vector.broadcast %cst_21 : f32 to vector<16x16xf32>
    %40 = arith.mulf %38, %39 : vector<16x16xf32>
    %41 = arith.addf %40, %5 : vector<16x16xf32>
    %cst_22 = arith.constant dense<0xFF800000> : vector<16xf32>
    %42 = vector.multi_reduction <maximumf>, %41, %cst_22 [1] : vector<16x16xf32> to vector<16xf32>
    %43 = vector.shape_cast %42 : vector<16xf32> to vector<16x1xf32>
    %44 = vector.broadcast %43 : vector<16x1xf32> to vector<16x16xf32>
    %45 = arith.subf %41, %44 : vector<16x16xf32>
    %46 = math.exp %45 : vector<16x16xf32>
    %cst_23 = arith.constant dense<0.000000e+00> : vector<16xf32>
    %47 = vector.multi_reduction <add>, %46, %cst_23 [1] : vector<16x16xf32> to vector<16xf32>
    %48 = vector.shape_cast %47 : vector<16xf32> to vector<16x1xf32>
    %49 = vector.broadcast %48 : vector<16x1xf32> to vector<16x16xf32>
    %50 = arith.divf %46, %49 : vector<16x16xf32>
    %cst_24 = arith.constant dense<0.000000e+00> : vector<16x2xf32>
    %51 = tpu.matmul %50, %37, %cst_24 {dimension_numbers = #tpu.dot_dimension_numbers<[1], [0], [0], [1], [0, 0, 1, 1], [], []>} : vector<16x16xf32>, vector<16x2xf32>, vector<16x2xf32> -> vector<16x2xf32>
    %52 = vector.extract_strided_slice %32 {offsets = [0, 2], sizes = [16, 2], strides = [1, 1]} : vector<16x36xf32> to vector<16x2xf32>
    %53 = vector.extract_strided_slice %32 {offsets = [0, 8], sizes = [16, 2], strides = [1, 1]} : vector<16x36xf32> to vector<16x2xf32>
    %54 = vector.extract_strided_slice %32 {offsets = [0, 14], sizes = [16, 2], strides = [1, 1]} : vector<16x36xf32> to vector<16x2xf32>
    %cst_25 = arith.constant dense<0.000000e+00> : vector<16x16xf32>
    %55 = tpu.matmul %52, %53, %cst_25 {dimension_numbers = #tpu.dot_dimension_numbers<[1], [1], [0], [0], [0, 0, 1, 0], [], []>} : vector<16x2xf32>, vector<16x2xf32>, vector<16x16xf32> -> vector<16x16xf32>
    %cst_26 = arith.constant 0.707106769 : f32
    %56 = vector.broadcast %cst_26 : f32 to vector<16x16xf32>
    %57 = arith.mulf %55, %56 : vector<16x16xf32>
    %58 = arith.addf %57, %5 : vector<16x16xf32>
    %cst_27 = arith.constant dense<0xFF800000> : vector<16xf32>
    %59 = vector.multi_reduction <maximumf>, %58, %cst_27 [1] : vector<16x16xf32> to vector<16xf32>
    %60 = vector.shape_cast %59 : vector<16xf32> to vector<16x1xf32>
    %61 = vector.broadcast %60 : vector<16x1xf32> to vector<16x16xf32>
    %62 = arith.subf %58, %61 : vector<16x16xf32>
    %63 = math.exp %62 : vector<16x16xf32>
    %cst_28 = arith.constant dense<0.000000e+00> : vector<16xf32>
    %64 = vector.multi_reduction <add>, %63, %cst_28 [1] : vector<16x16xf32> to vector<16xf32>
    %65 = vector.shape_cast %64 : vector<16xf32> to vector<16x1xf32>
    %66 = vector.broadcast %65 : vector<16x1xf32> to vector<16x16xf32>
    %67 = arith.divf %63, %66 : vector<16x16xf32>
    %cst_29 = arith.constant dense<0.000000e+00> : vector<16x2xf32>
    %68 = tpu.matmul %67, %54, %cst_29 {dimension_numbers = #tpu.dot_dimension_numbers<[1], [0], [0], [1], [0, 0, 1, 1], [], []>} : vector<16x16xf32>, vector<16x2xf32>, vector<16x2xf32> -> vector<16x2xf32>
    %69 = vector.extract_strided_slice %32 {offsets = [0, 4], sizes = [16, 2], strides = [1, 1]} : vector<16x36xf32> to vector<16x2xf32>
    %70 = vector.extract_strided_slice %32 {offsets = [0, 10], sizes = [16, 2], strides = [1, 1]} : vector<16x36xf32> to vector<16x2xf32>
    %71 = vector.extract_strided_slice %32 {offsets = [0, 16], sizes = [16, 2], strides = [1, 1]} : vector<16x36xf32> to vector<16x2xf32>
    %cst_30 = arith.constant dense<0.000000e+00> : vector<16x16xf32>
    %72 = tpu.matmul %69, %70, %cst_30 {dimension_numbers = #tpu.dot_dimension_numbers<[1], [1], [0], [0], [0, 0, 1, 0], [], []>} : vector<16x2xf32>, vector<16x2xf32>, vector<16x16xf32> -> vector<16x16xf32>
    %cst_31 = arith.constant 0.707106769 : f32
    %73 = vector.broadcast %cst_31 : f32 to vector<16x16xf32>
    %74 = arith.mulf %72, %73 : vector<16x16xf32>
    %75 = arith.addf %74, %5 : vector<16x16xf32>
    %cst_32 = arith.constant dense<0xFF800000> : vector<16xf32>
    %76 = vector.multi_reduction <maximumf>, %75, %cst_32 [1] : vector<16x16xf32> to vector<16xf32>
    %77 = vector.shape_cast %76 : vector<16xf32> to vector<16x1xf32>
    %78 = vector.broadcast %77 : vector<16x1xf32> to vector<16x16xf32>
    %79 = arith.subf %75, %78 : vector<16x16xf32>
    %80 = math.exp %79 : vector<16x16xf32>
    %cst_33 = arith.constant dense<0.000000e+00> : vector<16xf32>
    %81 = vector.multi_reduction <add>, %80, %cst_33 [1] : vector<16x16xf32> to vector<16xf32>
    %82 = vector.shape_cast %81 : vector<16xf32> to vector<16x1xf32>
    %83 = vector.broadcast %82 : vector<16x1xf32> to vector<16x16xf32>
    %84 = arith.divf %80, %83 : vector<16x16xf32>
    %cst_34 = arith.constant dense<0.000000e+00> : vector<16x2xf32>
    %85 = tpu.matmul %84, %71, %cst_34 {dimension_numbers = #tpu.dot_dimension_numbers<[1], [0], [0], [1], [0, 0, 1, 1], [], []>} : vector<16x16xf32>, vector<16x2xf32>, vector<16x2xf32> -> vector<16x2xf32>
    %86 = tpu.concatenate %51, %68, %85 in 1 : vector<16x2xf32>, vector<16x2xf32>, vector<16x2xf32> -> vector<16x6xf32>
    %cst_35 = arith.constant dense<0.000000e+00> : vector<16x6xf32>
    %87 = tpu.matmul %86, %33, %cst_35 {dimension_numbers = #tpu.dot_dimension_numbers<[1], [0], [0], [1], [0, 0, 1, 1], [], []>} : vector<16x6xf32>, vector<6x6xf32>, vector<16x6xf32> -> vector<16x6xf32>
    %88 = vector.broadcast %34 : vector<1x6xf32> to vector<16x6xf32>
    %89 = arith.addf %87, %88 : vector<16x6xf32>
    %c101_36 = arith.constant 101 : index
    %c6 = arith.constant 6 : index
    %90 = vector.load %arg4[%c101_36, %c6] : memref<203x48xf32, #tpu.memory_space<vmem>>, vector<6x6xf32>
    %c3_37 = arith.constant 3 : index
    %c6_38 = arith.constant 6 : index
    %91 = vector.load %arg4[%c3_37, %c6_38] : memref<203x48xf32, #tpu.memory_space<vmem>>, vector<1x6xf32>
    %92 = vector.extract_strided_slice %32 {offsets = [0, 18], sizes = [16, 2], strides = [1, 1]} : vector<16x36xf32> to vector<16x2xf32>
    %93 = vector.extract_strided_slice %32 {offsets = [0, 24], sizes = [16, 2], strides = [1, 1]} : vector<16x36xf32> to vector<16x2xf32>
    %94 = vector.extract_strided_slice %32 {offsets = [0, 30], sizes = [16, 2], strides = [1, 1]} : vector<16x36xf32> to vector<16x2xf32>
    %cst_39 = arith.constant dense<0.000000e+00> : vector<16x16xf32>
    %95 = tpu.matmul %92, %93, %cst_39 {dimension_numbers = #tpu.dot_dimension_numbers<[1], [1], [0], [0], [0, 0, 1, 0], [], []>} : vector<16x2xf32>, vector<16x2xf32>, vector<16x16xf32> -> vector<16x16xf32>
    %cst_40 = arith.constant 0.707106769 : f32
    %96 = vector.broadcast %cst_40 : f32 to vector<16x16xf32>
    %97 = arith.mulf %95, %96 : vector<16x16xf32>
    %98 = arith.addf %97, %5 : vector<16x16xf32>
    %cst_41 = arith.constant dense<0xFF800000> : vector<16xf32>
    %99 = vector.multi_reduction <maximumf>, %98, %cst_41 [1] : vector<16x16xf32> to vector<16xf32>
    %100 = vector.shape_cast %99 : vector<16xf32> to vector<16x1xf32>
    %101 = vector.broadcast %100 : vector<16x1xf32> to vector<16x16xf32>
    %102 = arith.subf %98, %101 : vector<16x16xf32>
    %103 = math.exp %102 : vector<16x16xf32>
    %cst_42 = arith.constant dense<0.000000e+00> : vector<16xf32>
    %104 = vector.multi_reduction <add>, %103, %cst_42 [1] : vector<16x16xf32> to vector<16xf32>
    %105 = vector.shape_cast %104 : vector<16xf32> to vector<16x1xf32>
    %106 = vector.broadcast %105 : vector<16x1xf32> to vector<16x16xf32>
    %107 = arith.divf %103, %106 : vector<16x16xf32>
    %cst_43 = arith.constant dense<0.000000e+00> : vector<16x2xf32>
    %108 = tpu.matmul %107, %94, %cst_43 {dimension_numbers = #tpu.dot_dimension_numbers<[1], [0], [0], [1], [0, 0, 1, 1], [], []>} : vector<16x16xf32>, vector<16x2xf32>, vector<16x2xf32> -> vector<16x2xf32>
    %109 = vector.extract_strided_slice %32 {offsets = [0, 20], sizes = [16, 2], strides = [1, 1]} : vector<16x36xf32> to vector<16x2xf32>
    %110 = vector.extract_strided_slice %32 {offsets = [0, 26], sizes = [16, 2], strides = [1, 1]} : vector<16x36xf32> to vector<16x2xf32>
    %111 = vector.extract_strided_slice %32 {offsets = [0, 32], sizes = [16, 2], strides = [1, 1]} : vector<16x36xf32> to vector<16x2xf32>
    %cst_44 = arith.constant dense<0.000000e+00> : vector<16x16xf32>
    %112 = tpu.matmul %109, %110, %cst_44 {dimension_numbers = #tpu.dot_dimension_numbers<[1], [1], [0], [0], [0, 0, 1, 0], [], []>} : vector<16x2xf32>, vector<16x2xf32>, vector<16x16xf32> -> vector<16x16xf32>
    %cst_45 = arith.constant 0.707106769 : f32
    %113 = vector.broadcast %cst_45 : f32 to vector<16x16xf32>
    %114 = arith.mulf %112, %113 : vector<16x16xf32>
    %115 = arith.addf %114, %5 : vector<16x16xf32>
    %cst_46 = arith.constant dense<0xFF800000> : vector<16xf32>
    %116 = vector.multi_reduction <maximumf>, %115, %cst_46 [1] : vector<16x16xf32> to vector<16xf32>
    %117 = vector.shape_cast %116 : vector<16xf32> to vector<16x1xf32>
    %118 = vector.broadcast %117 : vector<16x1xf32> to vector<16x16xf32>
    %119 = arith.subf %115, %118 : vector<16x16xf32>
    %120 = math.exp %119 : vector<16x16xf32>
    %cst_47 = arith.constant dense<0.000000e+00> : vector<16xf32>
    %121 = vector.multi_reduction <add>, %120, %cst_47 [1] : vector<16x16xf32> to vector<16xf32>
    %122 = vector.shape_cast %121 : vector<16xf32> to vector<16x1xf32>
    %123 = vector.broadcast %122 : vector<16x1xf32> to vector<16x16xf32>
    %124 = arith.divf %120, %123 : vector<16x16xf32>
    %cst_48 = arith.constant dense<0.000000e+00> : vector<16x2xf32>
    %125 = tpu.matmul %124, %111, %cst_48 {dimension_numbers = #tpu.dot_dimension_numbers<[1], [0], [0], [1], [0, 0, 1, 1], [], []>} : vector<16x16xf32>, vector<16x2xf32>, vector<16x2xf32> -> vector<16x2xf32>
    %126 = vector.extract_strided_slice %32 {offsets = [0, 22], sizes = [16, 2], strides = [1, 1]} : vector<16x36xf32> to vector<16x2xf32>
    %127 = vector.extract_strided_slice %32 {offsets = [0, 28], sizes = [16, 2], strides = [1, 1]} : vector<16x36xf32> to vector<16x2xf32>
    %128 = vector.extract_strided_slice %32 {offsets = [0, 34], sizes = [16, 2], strides = [1, 1]} : vector<16x36xf32> to vector<16x2xf32>
    %cst_49 = arith.constant dense<0.000000e+00> : vector<16x16xf32>
    %129 = tpu.matmul %126, %127, %cst_49 {dimension_numbers = #tpu.dot_dimension_numbers<[1], [1], [0], [0], [0, 0, 1, 0], [], []>} : vector<16x2xf32>, vector<16x2xf32>, vector<16x16xf32> -> vector<16x16xf32>
    %cst_50 = arith.constant 0.707106769 : f32
    %130 = vector.broadcast %cst_50 : f32 to vector<16x16xf32>
    %131 = arith.mulf %129, %130 : vector<16x16xf32>
    %132 = arith.addf %131, %5 : vector<16x16xf32>
    %cst_51 = arith.constant dense<0xFF800000> : vector<16xf32>
    %133 = vector.multi_reduction <maximumf>, %132, %cst_51 [1] : vector<16x16xf32> to vector<16xf32>
    %134 = vector.shape_cast %133 : vector<16xf32> to vector<16x1xf32>
    %135 = vector.broadcast %134 : vector<16x1xf32> to vector<16x16xf32>
    %136 = arith.subf %132, %135 : vector<16x16xf32>
    %137 = math.exp %136 : vector<16x16xf32>
    %cst_52 = arith.constant dense<0.000000e+00> : vector<16xf32>
    %138 = vector.multi_reduction <add>, %137, %cst_52 [1] : vector<16x16xf32> to vector<16xf32>
    %139 = vector.shape_cast %138 : vector<16xf32> to vector<16x1xf32>
    %140 = vector.broadcast %139 : vector<16x1xf32> to vector<16x16xf32>
    %141 = arith.divf %137, %140 : vector<16x16xf32>
    %cst_53 = arith.constant dense<0.000000e+00> : vector<16x2xf32>
    %142 = tpu.matmul %141, %128, %cst_53 {dimension_numbers = #tpu.dot_dimension_numbers<[1], [0], [0], [1], [0, 0, 1, 1], [], []>} : vector<16x16xf32>, vector<16x2xf32>, vector<16x2xf32> -> vector<16x2xf32>
    %143 = tpu.concatenate %108, %125, %142 in 1 : vector<16x2xf32>, vector<16x2xf32>, vector<16x2xf32> -> vector<16x6xf32>
    %cst_54 = arith.constant dense<0.000000e+00> : vector<16x6xf32>
    %144 = tpu.matmul %143, %90, %cst_54 {dimension_numbers = #tpu.dot_dimension_numbers<[1], [0], [0], [1], [0, 0, 1, 1], [], []>} : vector<16x6xf32>, vector<6x6xf32>, vector<16x6xf32> -> vector<16x6xf32>
    %145 = vector.broadcast %91 : vector<1x6xf32> to vector<16x6xf32>
    %146 = arith.addf %144, %145 : vector<16x6xf32>
    %147 = vector.extract_strided_slice %27 {offsets = [0, 6], sizes = [16, 12], strides = [1, 1]} : vector<16x24xf32> to vector<16x12xf32>
    %c107 = arith.constant 107 : index
    %c0_55 = arith.constant 0 : index
    %148 = vector.load %arg4[%c107, %c0_55] : memref<203x48xf32, #tpu.memory_space<vmem>>, vector<16x12xf32>
    %149 = vector.extract_strided_slice %147 {offsets = [0, 11], sizes = [16, 1], strides = [1, 1]} : vector<16x12xf32> to vector<16x1xf32>
    %150 = vector.extract_strided_slice %147 {offsets = [0, 0], sizes = [16, 11], strides = [1, 1]} : vector<16x12xf32> to vector<16x11xf32>
    %151 = tpu.concatenate %149, %150 in 1 : vector<16x1xf32>, vector<16x11xf32> -> vector<16x12xf32>
    %152 = vector.extract_strided_slice %151 {offsets = [15, 0], sizes = [1, 12], strides = [1, 1]} : vector<16x12xf32> to vector<1x12xf32>
    %153 = vector.extract_strided_slice %151 {offsets = [0, 0], sizes = [15, 12], strides = [1, 1]} : vector<16x12xf32> to vector<15x12xf32>
    %154 = tpu.concatenate %152, %153 in 0 : vector<1x12xf32>, vector<15x12xf32> -> vector<16x12xf32>
    %155 = arith.mulf %154, %148 : vector<16x12xf32>
    %c155 = arith.constant 155 : index
    %c0_56 = arith.constant 0 : index
    %156 = vector.load %arg4[%c155, %c0_56] : memref<203x48xf32, #tpu.memory_space<vmem>>, vector<16x12xf32>
    %157 = arith.mulf %151, %156 : vector<16x12xf32>
    %158 = arith.addf %155, %157 : vector<16x12xf32>
    %c123 = arith.constant 123 : index
    %c0_57 = arith.constant 0 : index
    %159 = vector.load %arg4[%c123, %c0_57] : memref<203x48xf32, #tpu.memory_space<vmem>>, vector<16x12xf32>
    %160 = arith.mulf %147, %159 : vector<16x12xf32>
    %161 = arith.addf %158, %160 : vector<16x12xf32>
    %c139 = arith.constant 139 : index
    %c0_58 = arith.constant 0 : index
    %162 = vector.load %arg4[%c139, %c0_58] : memref<203x48xf32, #tpu.memory_space<vmem>>, vector<16x12xf32>
    %163 = vector.extract_strided_slice %147 {offsets = [0, 1], sizes = [16, 11], strides = [1, 1]} : vector<16x12xf32> to vector<16x11xf32>
    %164 = vector.extract_strided_slice %147 {offsets = [0, 0], sizes = [16, 1], strides = [1, 1]} : vector<16x12xf32> to vector<16x1xf32>
    %165 = tpu.concatenate %163, %164 in 1 : vector<16x11xf32>, vector<16x1xf32> -> vector<16x12xf32>
    %166 = arith.mulf %165, %162 : vector<16x12xf32>
    %c187 = arith.constant 187 : index
    %c0_59 = arith.constant 0 : index
    %167 = vector.load %arg4[%c187, %c0_59] : memref<203x48xf32, #tpu.memory_space<vmem>>, vector<16x12xf32>
    %168 = vector.extract_strided_slice %165 {offsets = [1, 0], sizes = [15, 12], strides = [1, 1]} : vector<16x12xf32> to vector<15x12xf32>
    %169 = vector.extract_strided_slice %165 {offsets = [0, 0], sizes = [1, 12], strides = [1, 1]} : vector<16x12xf32> to vector<1x12xf32>
    %170 = tpu.concatenate %168, %169 in 0 : vector<15x12xf32>, vector<1x12xf32> -> vector<16x12xf32>
    %171 = arith.mulf %170, %167 : vector<16x12xf32>
    %172 = arith.addf %166, %171 : vector<16x12xf32>
    %173 = arith.addf %161, %172 : vector<16x12xf32>
    %174 = tpu.concatenate %89, %173, %146 in 1 : vector<16x6xf32>, vector<16x12xf32>, vector<16x6xf32> -> vector<16x24xf32>
    %175 = arith.addf %174, %4 : vector<16x24xf32>
    %c1 = arith.constant 1 : index
    %c0_60 = arith.constant 0 : index
    %176 = vector.load %arg4[%c1, %c0_60] : memref<203x48xf32, #tpu.memory_space<vmem>>, vector<1x24xf32>
    %c1_61 = arith.constant 1 : index
    %c24_62 = arith.constant 24 : index
    %177 = vector.load %arg4[%c1_61, %c24_62] : memref<203x48xf32, #tpu.memory_space<vmem>>, vector<1x24xf32>
    %cst_63 = arith.constant dense<0.000000e+00> : vector<16xf32>
    %178 = vector.multi_reduction <add>, %175, %cst_63 [1] : vector<16x24xf32> to vector<16xf32>
    %179 = vector.shape_cast %178 : vector<16xf32> to vector<16x1xf32>
    %cst_64 = arith.constant 2.400000e+01 : f32
    %180 = vector.broadcast %cst_64 : f32 to vector<16x1xf32>
    %181 = arith.divf %179, %180 : vector<16x1xf32>
    %182 = vector.broadcast %181 : vector<16x1xf32> to vector<16x24xf32>
    %183 = arith.subf %175, %182 : vector<16x24xf32>
    %184 = arith.mulf %183, %183 : vector<16x24xf32>
    %cst_65 = arith.constant dense<0.000000e+00> : vector<16xf32>
    %185 = vector.multi_reduction <add>, %184, %cst_65 [1] : vector<16x24xf32> to vector<16xf32>
    %186 = vector.shape_cast %185 : vector<16xf32> to vector<16x1xf32>
    %cst_66 = arith.constant 2.400000e+01 : f32
    %187 = vector.broadcast %cst_66 : f32 to vector<16x1xf32>
    %188 = arith.divf %186, %187 : vector<16x1xf32>
    %cst_67 = arith.constant 9.99999997E-7 : f32
    %189 = vector.broadcast %cst_67 : f32 to vector<16x1xf32>
    %190 = arith.addf %188, %189 : vector<16x1xf32>
    %191 = math.rsqrt %190 : vector<16x1xf32>
    %192 = vector.broadcast %191 : vector<16x1xf32> to vector<16x24xf32>
    %193 = arith.mulf %183, %192 : vector<16x24xf32>
    %194 = vector.broadcast %176 : vector<1x24xf32> to vector<16x24xf32>
    %195 = arith.mulf %193, %194 : vector<16x24xf32>
    %196 = vector.broadcast %177 : vector<1x24xf32> to vector<16x24xf32>
    %197 = arith.addf %195, %196 : vector<16x24xf32>
    %c29 = arith.constant 29 : index
    %c0_68 = arith.constant 0 : index
    %198 = vector.load %arg4[%c29, %c0_68] : memref<203x48xf32, #tpu.memory_space<vmem>>, vector<24x48xf32>
    %c4 = arith.constant 4 : index
    %c0_69 = arith.constant 0 : index
    %199 = vector.load %arg4[%c4, %c0_69] : memref<203x48xf32, #tpu.memory_space<vmem>>, vector<1x48xf32>
    %cst_70 = arith.constant dense<0.000000e+00> : vector<16x48xf32>
    %200 = tpu.matmul %197, %198, %cst_70 {dimension_numbers = #tpu.dot_dimension_numbers<[1], [0], [0], [1], [0, 0, 1, 1], [], []>} : vector<16x24xf32>, vector<24x48xf32>, vector<16x48xf32> -> vector<16x48xf32>
    %201 = vector.broadcast %199 : vector<1x48xf32> to vector<16x48xf32>
    %202 = arith.addf %200, %201 : vector<16x48xf32>
    %203 = arith.negf %202 : vector<16x48xf32>
    %204 = math.exp %203 : vector<16x48xf32>
    %cst_71 = arith.constant 1.000000e+00 : f32
    %205 = vector.broadcast %cst_71 : f32 to vector<16x48xf32>
    %206 = arith.addf %205, %204 : vector<16x48xf32>
    %207 = arith.divf %205, %206 : vector<16x48xf32>
    %208 = arith.mulf %202, %207 : vector<16x48xf32>
    %c53 = arith.constant 53 : index
    %c0_72 = arith.constant 0 : index
    %209 = vector.load %arg4[%c53, %c0_72] : memref<203x48xf32, #tpu.memory_space<vmem>>, vector<48x24xf32>
    %c3_73 = arith.constant 3 : index
    %c12 = arith.constant 12 : index
    %210 = vector.load %arg4[%c3_73, %c12] : memref<203x48xf32, #tpu.memory_space<vmem>>, vector<1x24xf32>
    %cst_74 = arith.constant dense<0.000000e+00> : vector<16x24xf32>
    %211 = tpu.matmul %208, %209, %cst_74 {dimension_numbers = #tpu.dot_dimension_numbers<[1], [0], [0], [1], [0, 0, 1, 1], [], []>} : vector<16x48xf32>, vector<48x24xf32>, vector<16x24xf32> -> vector<16x24xf32>
    %212 = vector.broadcast %210 : vector<1x24xf32> to vector<16x24xf32>
    %213 = arith.addf %211, %212 : vector<16x24xf32>
    %214 = arith.addf %213, %175 : vector<16x24xf32>
    %c0_75 = arith.constant 0 : index
    %c0_76 = arith.constant 0 : index
    %215 = vector.load %arg5[%c0_75, %c0_76] : memref<331x48xf32, #tpu.memory_space<vmem>>, vector<1x24xf32>
    %c0_77 = arith.constant 0 : index
    %c24_78 = arith.constant 24 : index
    %216 = vector.load %arg5[%c0_77, %c24_78] : memref<331x48xf32, #tpu.memory_space<vmem>>, vector<1x24xf32>
    %cst_79 = arith.constant dense<0.000000e+00> : vector<16xf32>
    %217 = vector.multi_reduction <add>, %214, %cst_79 [1] : vector<16x24xf32> to vector<16xf32>
    %218 = vector.shape_cast %217 : vector<16xf32> to vector<16x1xf32>
    %cst_80 = arith.constant 2.400000e+01 : f32
    %219 = vector.broadcast %cst_80 : f32 to vector<16x1xf32>
    %220 = arith.divf %218, %219 : vector<16x1xf32>
    %221 = vector.broadcast %220 : vector<16x1xf32> to vector<16x24xf32>
    %222 = arith.subf %214, %221 : vector<16x24xf32>
    %223 = arith.mulf %222, %222 : vector<16x24xf32>
    %cst_81 = arith.constant dense<0.000000e+00> : vector<16xf32>
    %224 = vector.multi_reduction <add>, %223, %cst_81 [1] : vector<16x24xf32> to vector<16xf32>
    %225 = vector.shape_cast %224 : vector<16xf32> to vector<16x1xf32>
    %cst_82 = arith.constant 2.400000e+01 : f32
    %226 = vector.broadcast %cst_82 : f32 to vector<16x1xf32>
    %227 = arith.divf %225, %226 : vector<16x1xf32>
    %cst_83 = arith.constant 9.99999997E-7 : f32
    %228 = vector.broadcast %cst_83 : f32 to vector<16x1xf32>
    %229 = arith.addf %227, %228 : vector<16x1xf32>
    %230 = math.rsqrt %229 : vector<16x1xf32>
    %231 = vector.broadcast %230 : vector<16x1xf32> to vector<16x24xf32>
    %232 = arith.mulf %222, %231 : vector<16x24xf32>
    %233 = vector.broadcast %215 : vector<1x24xf32> to vector<16x24xf32>
    %234 = arith.mulf %232, %233 : vector<16x24xf32>
    %235 = vector.broadcast %216 : vector<1x24xf32> to vector<16x24xf32>
    %236 = arith.addf %234, %235 : vector<16x24xf32>
    %c5_84 = arith.constant 5 : index
    %c0_85 = arith.constant 0 : index
    %237 = vector.load %arg5[%c5_84, %c0_85] : memref<331x48xf32, #tpu.memory_space<vmem>>, vector<24x36xf32>
    %c2_86 = arith.constant 2 : index
    %c0_87 = arith.constant 0 : index
    %238 = vector.load %arg5[%c2_86, %c0_87] : memref<331x48xf32, #tpu.memory_space<vmem>>, vector<1x36xf32>
    %cst_88 = arith.constant dense<0.000000e+00> : vector<16x36xf32>
    %239 = tpu.matmul %236, %237, %cst_88 {dimension_numbers = #tpu.dot_dimension_numbers<[1], [0], [0], [1], [0, 0, 1, 1], [], []>} : vector<16x24xf32>, vector<24x36xf32>, vector<16x36xf32> -> vector<16x36xf32>
    %240 = vector.broadcast %238 : vector<1x36xf32> to vector<16x36xf32>
    %241 = arith.addf %239, %240 : vector<16x36xf32>
    %c101_89 = arith.constant 101 : index
    %c0_90 = arith.constant 0 : index
    %242 = vector.load %arg5[%c101_89, %c0_90] : memref<331x48xf32, #tpu.memory_space<vmem>>, vector<6x6xf32>
    %c3_91 = arith.constant 3 : index
    %c0_92 = arith.constant 0 : index
    %243 = vector.load %arg5[%c3_91, %c0_92] : memref<331x48xf32, #tpu.memory_space<vmem>>, vector<1x6xf32>
    %244 = vector.extract_strided_slice %241 {offsets = [0, 0], sizes = [16, 2], strides = [1, 1]} : vector<16x36xf32> to vector<16x2xf32>
    %245 = vector.extract_strided_slice %241 {offsets = [0, 6], sizes = [16, 2], strides = [1, 1]} : vector<16x36xf32> to vector<16x2xf32>
    %246 = vector.extract_strided_slice %241 {offsets = [0, 12], sizes = [16, 2], strides = [1, 1]} : vector<16x36xf32> to vector<16x2xf32>
    %cst_93 = arith.constant dense<0.000000e+00> : vector<16x16xf32>
    %247 = tpu.matmul %244, %245, %cst_93 {dimension_numbers = #tpu.dot_dimension_numbers<[1], [1], [0], [0], [0, 0, 1, 0], [], []>} : vector<16x2xf32>, vector<16x2xf32>, vector<16x16xf32> -> vector<16x16xf32>
    %cst_94 = arith.constant 0.707106769 : f32
    %248 = vector.broadcast %cst_94 : f32 to vector<16x16xf32>
    %249 = arith.mulf %247, %248 : vector<16x16xf32>
    %250 = arith.addf %249, %5 : vector<16x16xf32>
    %cst_95 = arith.constant dense<0xFF800000> : vector<16xf32>
    %251 = vector.multi_reduction <maximumf>, %250, %cst_95 [1] : vector<16x16xf32> to vector<16xf32>
    %252 = vector.shape_cast %251 : vector<16xf32> to vector<16x1xf32>
    %253 = vector.broadcast %252 : vector<16x1xf32> to vector<16x16xf32>
    %254 = arith.subf %250, %253 : vector<16x16xf32>
    %255 = math.exp %254 : vector<16x16xf32>
    %cst_96 = arith.constant dense<0.000000e+00> : vector<16xf32>
    %256 = vector.multi_reduction <add>, %255, %cst_96 [1] : vector<16x16xf32> to vector<16xf32>
    %257 = vector.shape_cast %256 : vector<16xf32> to vector<16x1xf32>
    %258 = vector.broadcast %257 : vector<16x1xf32> to vector<16x16xf32>
    %259 = arith.divf %255, %258 : vector<16x16xf32>
    %cst_97 = arith.constant dense<0.000000e+00> : vector<16x2xf32>
    %260 = tpu.matmul %259, %246, %cst_97 {dimension_numbers = #tpu.dot_dimension_numbers<[1], [0], [0], [1], [0, 0, 1, 1], [], []>} : vector<16x16xf32>, vector<16x2xf32>, vector<16x2xf32> -> vector<16x2xf32>
    %261 = vector.extract_strided_slice %241 {offsets = [0, 2], sizes = [16, 2], strides = [1, 1]} : vector<16x36xf32> to vector<16x2xf32>
    %262 = vector.extract_strided_slice %241 {offsets = [0, 8], sizes = [16, 2], strides = [1, 1]} : vector<16x36xf32> to vector<16x2xf32>
    %263 = vector.extract_strided_slice %241 {offsets = [0, 14], sizes = [16, 2], strides = [1, 1]} : vector<16x36xf32> to vector<16x2xf32>
    %cst_98 = arith.constant dense<0.000000e+00> : vector<16x16xf32>
    %264 = tpu.matmul %261, %262, %cst_98 {dimension_numbers = #tpu.dot_dimension_numbers<[1], [1], [0], [0], [0, 0, 1, 0], [], []>} : vector<16x2xf32>, vector<16x2xf32>, vector<16x16xf32> -> vector<16x16xf32>
    %cst_99 = arith.constant 0.707106769 : f32
    %265 = vector.broadcast %cst_99 : f32 to vector<16x16xf32>
    %266 = arith.mulf %264, %265 : vector<16x16xf32>
    %267 = arith.addf %266, %5 : vector<16x16xf32>
    %cst_100 = arith.constant dense<0xFF800000> : vector<16xf32>
    %268 = vector.multi_reduction <maximumf>, %267, %cst_100 [1] : vector<16x16xf32> to vector<16xf32>
    %269 = vector.shape_cast %268 : vector<16xf32> to vector<16x1xf32>
    %270 = vector.broadcast %269 : vector<16x1xf32> to vector<16x16xf32>
    %271 = arith.subf %267, %270 : vector<16x16xf32>
    %272 = math.exp %271 : vector<16x16xf32>
    %cst_101 = arith.constant dense<0.000000e+00> : vector<16xf32>
    %273 = vector.multi_reduction <add>, %272, %cst_101 [1] : vector<16x16xf32> to vector<16xf32>
    %274 = vector.shape_cast %273 : vector<16xf32> to vector<16x1xf32>
    %275 = vector.broadcast %274 : vector<16x1xf32> to vector<16x16xf32>
    %276 = arith.divf %272, %275 : vector<16x16xf32>
    %cst_102 = arith.constant dense<0.000000e+00> : vector<16x2xf32>
    %277 = tpu.matmul %276, %263, %cst_102 {dimension_numbers = #tpu.dot_dimension_numbers<[1], [0], [0], [1], [0, 0, 1, 1], [], []>} : vector<16x16xf32>, vector<16x2xf32>, vector<16x2xf32> -> vector<16x2xf32>
    %278 = vector.extract_strided_slice %241 {offsets = [0, 4], sizes = [16, 2], strides = [1, 1]} : vector<16x36xf32> to vector<16x2xf32>
    %279 = vector.extract_strided_slice %241 {offsets = [0, 10], sizes = [16, 2], strides = [1, 1]} : vector<16x36xf32> to vector<16x2xf32>
    %280 = vector.extract_strided_slice %241 {offsets = [0, 16], sizes = [16, 2], strides = [1, 1]} : vector<16x36xf32> to vector<16x2xf32>
    %cst_103 = arith.constant dense<0.000000e+00> : vector<16x16xf32>
    %281 = tpu.matmul %278, %279, %cst_103 {dimension_numbers = #tpu.dot_dimension_numbers<[1], [1], [0], [0], [0, 0, 1, 0], [], []>} : vector<16x2xf32>, vector<16x2xf32>, vector<16x16xf32> -> vector<16x16xf32>
    %cst_104 = arith.constant 0.707106769 : f32
    %282 = vector.broadcast %cst_104 : f32 to vector<16x16xf32>
    %283 = arith.mulf %281, %282 : vector<16x16xf32>
    %284 = arith.addf %283, %5 : vector<16x16xf32>
    %cst_105 = arith.constant dense<0xFF800000> : vector<16xf32>
    %285 = vector.multi_reduction <maximumf>, %284, %cst_105 [1] : vector<16x16xf32> to vector<16xf32>
    %286 = vector.shape_cast %285 : vector<16xf32> to vector<16x1xf32>
    %287 = vector.broadcast %286 : vector<16x1xf32> to vector<16x16xf32>
    %288 = arith.subf %284, %287 : vector<16x16xf32>
    %289 = math.exp %288 : vector<16x16xf32>
    %cst_106 = arith.constant dense<0.000000e+00> : vector<16xf32>
    %290 = vector.multi_reduction <add>, %289, %cst_106 [1] : vector<16x16xf32> to vector<16xf32>
    %291 = vector.shape_cast %290 : vector<16xf32> to vector<16x1xf32>
    %292 = vector.broadcast %291 : vector<16x1xf32> to vector<16x16xf32>
    %293 = arith.divf %289, %292 : vector<16x16xf32>
    %cst_107 = arith.constant dense<0.000000e+00> : vector<16x2xf32>
    %294 = tpu.matmul %293, %280, %cst_107 {dimension_numbers = #tpu.dot_dimension_numbers<[1], [0], [0], [1], [0, 0, 1, 1], [], []>} : vector<16x16xf32>, vector<16x2xf32>, vector<16x2xf32> -> vector<16x2xf32>
    %295 = tpu.concatenate %260, %277, %294 in 1 : vector<16x2xf32>, vector<16x2xf32>, vector<16x2xf32> -> vector<16x6xf32>
    %cst_108 = arith.constant dense<0.000000e+00> : vector<16x6xf32>
    %296 = tpu.matmul %295, %242, %cst_108 {dimension_numbers = #tpu.dot_dimension_numbers<[1], [0], [0], [1], [0, 0, 1, 1], [], []>} : vector<16x6xf32>, vector<6x6xf32>, vector<16x6xf32> -> vector<16x6xf32>
    %297 = vector.broadcast %243 : vector<1x6xf32> to vector<16x6xf32>
    %298 = arith.addf %296, %297 : vector<16x6xf32>
    %c101_109 = arith.constant 101 : index
    %c6_110 = arith.constant 6 : index
    %299 = vector.load %arg5[%c101_109, %c6_110] : memref<331x48xf32, #tpu.memory_space<vmem>>, vector<6x6xf32>
    %c3_111 = arith.constant 3 : index
    %c6_112 = arith.constant 6 : index
    %300 = vector.load %arg5[%c3_111, %c6_112] : memref<331x48xf32, #tpu.memory_space<vmem>>, vector<1x6xf32>
    %301 = vector.extract_strided_slice %241 {offsets = [0, 18], sizes = [16, 2], strides = [1, 1]} : vector<16x36xf32> to vector<16x2xf32>
    %302 = vector.extract_strided_slice %241 {offsets = [0, 24], sizes = [16, 2], strides = [1, 1]} : vector<16x36xf32> to vector<16x2xf32>
    %303 = vector.extract_strided_slice %241 {offsets = [0, 30], sizes = [16, 2], strides = [1, 1]} : vector<16x36xf32> to vector<16x2xf32>
    %cst_113 = arith.constant dense<0.000000e+00> : vector<16x16xf32>
    %304 = tpu.matmul %301, %302, %cst_113 {dimension_numbers = #tpu.dot_dimension_numbers<[1], [1], [0], [0], [0, 0, 1, 0], [], []>} : vector<16x2xf32>, vector<16x2xf32>, vector<16x16xf32> -> vector<16x16xf32>
    %cst_114 = arith.constant 0.707106769 : f32
    %305 = vector.broadcast %cst_114 : f32 to vector<16x16xf32>
    %306 = arith.mulf %304, %305 : vector<16x16xf32>
    %307 = arith.addf %306, %5 : vector<16x16xf32>
    %cst_115 = arith.constant dense<0xFF800000> : vector<16xf32>
    %308 = vector.multi_reduction <maximumf>, %307, %cst_115 [1] : vector<16x16xf32> to vector<16xf32>
    %309 = vector.shape_cast %308 : vector<16xf32> to vector<16x1xf32>
    %310 = vector.broadcast %309 : vector<16x1xf32> to vector<16x16xf32>
    %311 = arith.subf %307, %310 : vector<16x16xf32>
    %312 = math.exp %311 : vector<16x16xf32>
    %cst_116 = arith.constant dense<0.000000e+00> : vector<16xf32>
    %313 = vector.multi_reduction <add>, %312, %cst_116 [1] : vector<16x16xf32> to vector<16xf32>
    %314 = vector.shape_cast %313 : vector<16xf32> to vector<16x1xf32>
    %315 = vector.broadcast %314 : vector<16x1xf32> to vector<16x16xf32>
    %316 = arith.divf %312, %315 : vector<16x16xf32>
    %cst_117 = arith.constant dense<0.000000e+00> : vector<16x2xf32>
    %317 = tpu.matmul %316, %303, %cst_117 {dimension_numbers = #tpu.dot_dimension_numbers<[1], [0], [0], [1], [0, 0, 1, 1], [], []>} : vector<16x16xf32>, vector<16x2xf32>, vector<16x2xf32> -> vector<16x2xf32>
    %318 = vector.extract_strided_slice %241 {offsets = [0, 20], sizes = [16, 2], strides = [1, 1]} : vector<16x36xf32> to vector<16x2xf32>
    %319 = vector.extract_strided_slice %241 {offsets = [0, 26], sizes = [16, 2], strides = [1, 1]} : vector<16x36xf32> to vector<16x2xf32>
    %320 = vector.extract_strided_slice %241 {offsets = [0, 32], sizes = [16, 2], strides = [1, 1]} : vector<16x36xf32> to vector<16x2xf32>
    %cst_118 = arith.constant dense<0.000000e+00> : vector<16x16xf32>
    %321 = tpu.matmul %318, %319, %cst_118 {dimension_numbers = #tpu.dot_dimension_numbers<[1], [1], [0], [0], [0, 0, 1, 0], [], []>} : vector<16x2xf32>, vector<16x2xf32>, vector<16x16xf32> -> vector<16x16xf32>
    %cst_119 = arith.constant 0.707106769 : f32
    %322 = vector.broadcast %cst_119 : f32 to vector<16x16xf32>
    %323 = arith.mulf %321, %322 : vector<16x16xf32>
    %324 = arith.addf %323, %5 : vector<16x16xf32>
    %cst_120 = arith.constant dense<0xFF800000> : vector<16xf32>
    %325 = vector.multi_reduction <maximumf>, %324, %cst_120 [1] : vector<16x16xf32> to vector<16xf32>
    %326 = vector.shape_cast %325 : vector<16xf32> to vector<16x1xf32>
    %327 = vector.broadcast %326 : vector<16x1xf32> to vector<16x16xf32>
    %328 = arith.subf %324, %327 : vector<16x16xf32>
    %329 = math.exp %328 : vector<16x16xf32>
    %cst_121 = arith.constant dense<0.000000e+00> : vector<16xf32>
    %330 = vector.multi_reduction <add>, %329, %cst_121 [1] : vector<16x16xf32> to vector<16xf32>
    %331 = vector.shape_cast %330 : vector<16xf32> to vector<16x1xf32>
    %332 = vector.broadcast %331 : vector<16x1xf32> to vector<16x16xf32>
    %333 = arith.divf %329, %332 : vector<16x16xf32>
    %cst_122 = arith.constant dense<0.000000e+00> : vector<16x2xf32>
    %334 = tpu.matmul %333, %320, %cst_122 {dimension_numbers = #tpu.dot_dimension_numbers<[1], [0], [0], [1], [0, 0, 1, 1], [], []>} : vector<16x16xf32>, vector<16x2xf32>, vector<16x2xf32> -> vector<16x2xf32>
    %335 = vector.extract_strided_slice %241 {offsets = [0, 22], sizes = [16, 2], strides = [1, 1]} : vector<16x36xf32> to vector<16x2xf32>
    %336 = vector.extract_strided_slice %241 {offsets = [0, 28], sizes = [16, 2], strides = [1, 1]} : vector<16x36xf32> to vector<16x2xf32>
    %337 = vector.extract_strided_slice %241 {offsets = [0, 34], sizes = [16, 2], strides = [1, 1]} : vector<16x36xf32> to vector<16x2xf32>
    %cst_123 = arith.constant dense<0.000000e+00> : vector<16x16xf32>
    %338 = tpu.matmul %335, %336, %cst_123 {dimension_numbers = #tpu.dot_dimension_numbers<[1], [1], [0], [0], [0, 0, 1, 0], [], []>} : vector<16x2xf32>, vector<16x2xf32>, vector<16x16xf32> -> vector<16x16xf32>
    %cst_124 = arith.constant 0.707106769 : f32
    %339 = vector.broadcast %cst_124 : f32 to vector<16x16xf32>
    %340 = arith.mulf %338, %339 : vector<16x16xf32>
    %341 = arith.addf %340, %5 : vector<16x16xf32>
    %cst_125 = arith.constant dense<0xFF800000> : vector<16xf32>
    %342 = vector.multi_reduction <maximumf>, %341, %cst_125 [1] : vector<16x16xf32> to vector<16xf32>
    %343 = vector.shape_cast %342 : vector<16xf32> to vector<16x1xf32>
    %344 = vector.broadcast %343 : vector<16x1xf32> to vector<16x16xf32>
    %345 = arith.subf %341, %344 : vector<16x16xf32>
    %346 = math.exp %345 : vector<16x16xf32>
    %cst_126 = arith.constant dense<0.000000e+00> : vector<16xf32>
    %347 = vector.multi_reduction <add>, %346, %cst_126 [1] : vector<16x16xf32> to vector<16xf32>
    %348 = vector.shape_cast %347 : vector<16xf32> to vector<16x1xf32>
    %349 = vector.broadcast %348 : vector<16x1xf32> to vector<16x16xf32>
    %350 = arith.divf %346, %349 : vector<16x16xf32>
    %cst_127 = arith.constant dense<0.000000e+00> : vector<16x2xf32>
    %351 = tpu.matmul %350, %337, %cst_127 {dimension_numbers = #tpu.dot_dimension_numbers<[1], [0], [0], [1], [0, 0, 1, 1], [], []>} : vector<16x16xf32>, vector<16x2xf32>, vector<16x2xf32> -> vector<16x2xf32>
    %352 = tpu.concatenate %317, %334, %351 in 1 : vector<16x2xf32>, vector<16x2xf32>, vector<16x2xf32> -> vector<16x6xf32>
    %cst_128 = arith.constant dense<0.000000e+00> : vector<16x6xf32>
    %353 = tpu.matmul %352, %299, %cst_128 {dimension_numbers = #tpu.dot_dimension_numbers<[1], [0], [0], [1], [0, 0, 1, 1], [], []>} : vector<16x6xf32>, vector<6x6xf32>, vector<16x6xf32> -> vector<16x6xf32>
    %354 = vector.broadcast %300 : vector<1x6xf32> to vector<16x6xf32>
    %355 = arith.addf %353, %354 : vector<16x6xf32>
    %356 = vector.extract_strided_slice %236 {offsets = [0, 6], sizes = [16, 12], strides = [1, 1]} : vector<16x24xf32> to vector<16x12xf32>
    %c107_129 = arith.constant 107 : index
    %c0_130 = arith.constant 0 : index
    %357 = vector.load %arg5[%c107_129, %c0_130] : memref<331x48xf32, #tpu.memory_space<vmem>>, vector<16x12xf32>
    %358 = vector.extract_strided_slice %356 {offsets = [0, 9], sizes = [16, 3], strides = [1, 1]} : vector<16x12xf32> to vector<16x3xf32>
    %359 = vector.extract_strided_slice %356 {offsets = [0, 0], sizes = [16, 9], strides = [1, 1]} : vector<16x12xf32> to vector<16x9xf32>
    %360 = tpu.concatenate %358, %359 in 1 : vector<16x3xf32>, vector<16x9xf32> -> vector<16x12xf32>
    %361 = vector.extract_strided_slice %360 {offsets = [15, 0], sizes = [1, 12], strides = [1, 1]} : vector<16x12xf32> to vector<1x12xf32>
    %362 = vector.extract_strided_slice %360 {offsets = [0, 0], sizes = [15, 12], strides = [1, 1]} : vector<16x12xf32> to vector<15x12xf32>
    %363 = tpu.concatenate %361, %362 in 0 : vector<1x12xf32>, vector<15x12xf32> -> vector<16x12xf32>
    %364 = arith.mulf %363, %357 : vector<16x12xf32>
    %c219 = arith.constant 219 : index
    %c0_131 = arith.constant 0 : index
    %365 = vector.load %arg5[%c219, %c0_131] : memref<331x48xf32, #tpu.memory_space<vmem>>, vector<16x12xf32>
    %366 = arith.mulf %360, %365 : vector<16x12xf32>
    %367 = arith.addf %364, %366 : vector<16x12xf32>
    %c123_132 = arith.constant 123 : index
    %c0_133 = arith.constant 0 : index
    %368 = vector.load %arg5[%c123_132, %c0_133] : memref<331x48xf32, #tpu.memory_space<vmem>>, vector<16x12xf32>
    %369 = vector.extract_strided_slice %356 {offsets = [0, 10], sizes = [16, 2], strides = [1, 1]} : vector<16x12xf32> to vector<16x2xf32>
    %370 = vector.extract_strided_slice %356 {offsets = [0, 0], sizes = [16, 10], strides = [1, 1]} : vector<16x12xf32> to vector<16x10xf32>
    %371 = tpu.concatenate %369, %370 in 1 : vector<16x2xf32>, vector<16x10xf32> -> vector<16x12xf32>
    %372 = vector.extract_strided_slice %371 {offsets = [15, 0], sizes = [1, 12], strides = [1, 1]} : vector<16x12xf32> to vector<1x12xf32>
    %373 = vector.extract_strided_slice %371 {offsets = [0, 0], sizes = [15, 12], strides = [1, 1]} : vector<16x12xf32> to vector<15x12xf32>
    %374 = tpu.concatenate %372, %373 in 0 : vector<1x12xf32>, vector<15x12xf32> -> vector<16x12xf32>
    %375 = arith.mulf %374, %368 : vector<16x12xf32>
    %c235 = arith.constant 235 : index
    %c0_134 = arith.constant 0 : index
    %376 = vector.load %arg5[%c235, %c0_134] : memref<331x48xf32, #tpu.memory_space<vmem>>, vector<16x12xf32>
    %377 = arith.mulf %371, %376 : vector<16x12xf32>
    %378 = arith.addf %375, %377 : vector<16x12xf32>
    %379 = arith.addf %367, %378 : vector<16x12xf32>
    %c139_135 = arith.constant 139 : index
    %c0_136 = arith.constant 0 : index
    %380 = vector.load %arg5[%c139_135, %c0_136] : memref<331x48xf32, #tpu.memory_space<vmem>>, vector<16x12xf32>
    %381 = vector.extract_strided_slice %356 {offsets = [0, 11], sizes = [16, 1], strides = [1, 1]} : vector<16x12xf32> to vector<16x1xf32>
    %382 = vector.extract_strided_slice %356 {offsets = [0, 0], sizes = [16, 11], strides = [1, 1]} : vector<16x12xf32> to vector<16x11xf32>
    %383 = tpu.concatenate %381, %382 in 1 : vector<16x1xf32>, vector<16x11xf32> -> vector<16x12xf32>
    %384 = vector.extract_strided_slice %383 {offsets = [15, 0], sizes = [1, 12], strides = [1, 1]} : vector<16x12xf32> to vector<1x12xf32>
    %385 = vector.extract_strided_slice %383 {offsets = [0, 0], sizes = [15, 12], strides = [1, 1]} : vector<16x12xf32> to vector<15x12xf32>
    %386 = tpu.concatenate %384, %385 in 0 : vector<1x12xf32>, vector<15x12xf32> -> vector<16x12xf32>
    %387 = arith.mulf %386, %380 : vector<16x12xf32>
    %c251 = arith.constant 251 : index
    %c0_137 = arith.constant 0 : index
    %388 = vector.load %arg5[%c251, %c0_137] : memref<331x48xf32, #tpu.memory_space<vmem>>, vector<16x12xf32>
    %389 = arith.mulf %383, %388 : vector<16x12xf32>
    %390 = arith.addf %387, %389 : vector<16x12xf32>
    %391 = arith.addf %379, %390 : vector<16x12xf32>
    %c155_138 = arith.constant 155 : index
    %c0_139 = arith.constant 0 : index
    %392 = vector.load %arg5[%c155_138, %c0_139] : memref<331x48xf32, #tpu.memory_space<vmem>>, vector<16x12xf32>
    %393 = arith.mulf %356, %392 : vector<16x12xf32>
    %394 = arith.addf %391, %393 : vector<16x12xf32>
    %c171 = arith.constant 171 : index
    %c0_140 = arith.constant 0 : index
    %395 = vector.load %arg5[%c171, %c0_140] : memref<331x48xf32, #tpu.memory_space<vmem>>, vector<16x12xf32>
    %396 = vector.extract_strided_slice %356 {offsets = [0, 1], sizes = [16, 11], strides = [1, 1]} : vector<16x12xf32> to vector<16x11xf32>
    %397 = vector.extract_strided_slice %356 {offsets = [0, 0], sizes = [16, 1], strides = [1, 1]} : vector<16x12xf32> to vector<16x1xf32>
    %398 = tpu.concatenate %396, %397 in 1 : vector<16x11xf32>, vector<16x1xf32> -> vector<16x12xf32>
    %399 = arith.mulf %398, %395 : vector<16x12xf32>
    %c283 = arith.constant 283 : index
    %c0_141 = arith.constant 0 : index
    %400 = vector.load %arg5[%c283, %c0_141] : memref<331x48xf32, #tpu.memory_space<vmem>>, vector<16x12xf32>
    %401 = vector.extract_strided_slice %398 {offsets = [1, 0], sizes = [15, 12], strides = [1, 1]} : vector<16x12xf32> to vector<15x12xf32>
    %402 = vector.extract_strided_slice %398 {offsets = [0, 0], sizes = [1, 12], strides = [1, 1]} : vector<16x12xf32> to vector<1x12xf32>
    %403 = tpu.concatenate %401, %402 in 0 : vector<15x12xf32>, vector<1x12xf32> -> vector<16x12xf32>
    %404 = arith.mulf %403, %400 : vector<16x12xf32>
    %405 = arith.addf %399, %404 : vector<16x12xf32>
    %406 = arith.addf %394, %405 : vector<16x12xf32>
    %c187_142 = arith.constant 187 : index
    %c0_143 = arith.constant 0 : index
    %407 = vector.load %arg5[%c187_142, %c0_143] : memref<331x48xf32, #tpu.memory_space<vmem>>, vector<16x12xf32>
    %408 = vector.extract_strided_slice %356 {offsets = [0, 2], sizes = [16, 10], strides = [1, 1]} : vector<16x12xf32> to vector<16x10xf32>
    %409 = vector.extract_strided_slice %356 {offsets = [0, 0], sizes = [16, 2], strides = [1, 1]} : vector<16x12xf32> to vector<16x2xf32>
    %410 = tpu.concatenate %408, %409 in 1 : vector<16x10xf32>, vector<16x2xf32> -> vector<16x12xf32>
    %411 = arith.mulf %410, %407 : vector<16x12xf32>
    %c299 = arith.constant 299 : index
    %c0_144 = arith.constant 0 : index
    %412 = vector.load %arg5[%c299, %c0_144] : memref<331x48xf32, #tpu.memory_space<vmem>>, vector<16x12xf32>
    %413 = vector.extract_strided_slice %410 {offsets = [1, 0], sizes = [15, 12], strides = [1, 1]} : vector<16x12xf32> to vector<15x12xf32>
    %414 = vector.extract_strided_slice %410 {offsets = [0, 0], sizes = [1, 12], strides = [1, 1]} : vector<16x12xf32> to vector<1x12xf32>
    %415 = tpu.concatenate %413, %414 in 0 : vector<15x12xf32>, vector<1x12xf32> -> vector<16x12xf32>
    %416 = arith.mulf %415, %412 : vector<16x12xf32>
    %417 = arith.addf %411, %416 : vector<16x12xf32>
    %418 = arith.addf %406, %417 : vector<16x12xf32>
    %c203 = arith.constant 203 : index
    %c0_145 = arith.constant 0 : index
    %419 = vector.load %arg5[%c203, %c0_145] : memref<331x48xf32, #tpu.memory_space<vmem>>, vector<16x12xf32>
    %420 = vector.extract_strided_slice %356 {offsets = [0, 3], sizes = [16, 9], strides = [1, 1]} : vector<16x12xf32> to vector<16x9xf32>
    %421 = vector.extract_strided_slice %356 {offsets = [0, 0], sizes = [16, 3], strides = [1, 1]} : vector<16x12xf32> to vector<16x3xf32>
    %422 = tpu.concatenate %420, %421 in 1 : vector<16x9xf32>, vector<16x3xf32> -> vector<16x12xf32>
    %423 = arith.mulf %422, %419 : vector<16x12xf32>
    %c315 = arith.constant 315 : index
    %c0_146 = arith.constant 0 : index
    %424 = vector.load %arg5[%c315, %c0_146] : memref<331x48xf32, #tpu.memory_space<vmem>>, vector<16x12xf32>
    %425 = vector.extract_strided_slice %422 {offsets = [1, 0], sizes = [15, 12], strides = [1, 1]} : vector<16x12xf32> to vector<15x12xf32>
    %426 = vector.extract_strided_slice %422 {offsets = [0, 0], sizes = [1, 12], strides = [1, 1]} : vector<16x12xf32> to vector<1x12xf32>
    %427 = tpu.concatenate %425, %426 in 0 : vector<15x12xf32>, vector<1x12xf32> -> vector<16x12xf32>
    %428 = arith.mulf %427, %424 : vector<16x12xf32>
    %429 = arith.addf %423, %428 : vector<16x12xf32>
    %430 = arith.addf %418, %429 : vector<16x12xf32>
    %431 = tpu.concatenate %298, %430, %355 in 1 : vector<16x6xf32>, vector<16x12xf32>, vector<16x6xf32> -> vector<16x24xf32>
    %432 = arith.addf %431, %214 : vector<16x24xf32>
    %c1_147 = arith.constant 1 : index
    %c0_148 = arith.constant 0 : index
    %433 = vector.load %arg5[%c1_147, %c0_148] : memref<331x48xf32, #tpu.memory_space<vmem>>, vector<1x24xf32>
    %c1_149 = arith.constant 1 : index
    %c24_150 = arith.constant 24 : index
    %434 = vector.load %arg5[%c1_149, %c24_150] : memref<331x48xf32, #tpu.memory_space<vmem>>, vector<1x24xf32>
    %cst_151 = arith.constant dense<0.000000e+00> : vector<16xf32>
    %435 = vector.multi_reduction <add>, %432, %cst_151 [1] : vector<16x24xf32> to vector<16xf32>
    %436 = vector.shape_cast %435 : vector<16xf32> to vector<16x1xf32>
    %cst_152 = arith.constant 2.400000e+01 : f32
    %437 = vector.broadcast %cst_152 : f32 to vector<16x1xf32>
    %438 = arith.divf %436, %437 : vector<16x1xf32>
    %439 = vector.broadcast %438 : vector<16x1xf32> to vector<16x24xf32>
    %440 = arith.subf %432, %439 : vector<16x24xf32>
    %441 = arith.mulf %440, %440 : vector<16x24xf32>
    %cst_153 = arith.constant dense<0.000000e+00> : vector<16xf32>
    %442 = vector.multi_reduction <add>, %441, %cst_153 [1] : vector<16x24xf32> to vector<16xf32>
    %443 = vector.shape_cast %442 : vector<16xf32> to vector<16x1xf32>
    %cst_154 = arith.constant 2.400000e+01 : f32
    %444 = vector.broadcast %cst_154 : f32 to vector<16x1xf32>
    %445 = arith.divf %443, %444 : vector<16x1xf32>
    %cst_155 = arith.constant 9.99999997E-7 : f32
    %446 = vector.broadcast %cst_155 : f32 to vector<16x1xf32>
    %447 = arith.addf %445, %446 : vector<16x1xf32>
    %448 = math.rsqrt %447 : vector<16x1xf32>
    %449 = vector.broadcast %448 : vector<16x1xf32> to vector<16x24xf32>
    %450 = arith.mulf %440, %449 : vector<16x24xf32>
    %451 = vector.broadcast %433 : vector<1x24xf32> to vector<16x24xf32>
    %452 = arith.mulf %450, %451 : vector<16x24xf32>
    %453 = vector.broadcast %434 : vector<1x24xf32> to vector<16x24xf32>
    %454 = arith.addf %452, %453 : vector<16x24xf32>
    %c29_156 = arith.constant 29 : index
    %c0_157 = arith.constant 0 : index
    %455 = vector.load %arg5[%c29_156, %c0_157] : memref<331x48xf32, #tpu.memory_space<vmem>>, vector<24x48xf32>
    %c4_158 = arith.constant 4 : index
    %c0_159 = arith.constant 0 : index
    %456 = vector.load %arg5[%c4_158, %c0_159] : memref<331x48xf32, #tpu.memory_space<vmem>>, vector<1x48xf32>
    %cst_160 = arith.constant dense<0.000000e+00> : vector<16x48xf32>
    %457 = tpu.matmul %454, %455, %cst_160 {dimension_numbers = #tpu.dot_dimension_numbers<[1], [0], [0], [1], [0, 0, 1, 1], [], []>} : vector<16x24xf32>, vector<24x48xf32>, vector<16x48xf32> -> vector<16x48xf32>
    %458 = vector.broadcast %456 : vector<1x48xf32> to vector<16x48xf32>
    %459 = arith.addf %457, %458 : vector<16x48xf32>
    %460 = arith.negf %459 : vector<16x48xf32>
    %461 = math.exp %460 : vector<16x48xf32>
    %cst_161 = arith.constant 1.000000e+00 : f32
    %462 = vector.broadcast %cst_161 : f32 to vector<16x48xf32>
    %463 = arith.addf %462, %461 : vector<16x48xf32>
    %464 = arith.divf %462, %463 : vector<16x48xf32>
    %465 = arith.mulf %459, %464 : vector<16x48xf32>
    %c53_162 = arith.constant 53 : index
    %c0_163 = arith.constant 0 : index
    %466 = vector.load %arg5[%c53_162, %c0_163] : memref<331x48xf32, #tpu.memory_space<vmem>>, vector<48x24xf32>
    %c3_164 = arith.constant 3 : index
    %c12_165 = arith.constant 12 : index
    %467 = vector.load %arg5[%c3_164, %c12_165] : memref<331x48xf32, #tpu.memory_space<vmem>>, vector<1x24xf32>
    %cst_166 = arith.constant dense<0.000000e+00> : vector<16x24xf32>
    %468 = tpu.matmul %465, %466, %cst_166 {dimension_numbers = #tpu.dot_dimension_numbers<[1], [0], [0], [1], [0, 0, 1, 1], [], []>} : vector<16x48xf32>, vector<48x24xf32>, vector<16x24xf32> -> vector<16x24xf32>
    %469 = vector.broadcast %467 : vector<1x24xf32> to vector<16x24xf32>
    %470 = arith.addf %468, %469 : vector<16x24xf32>
    %471 = arith.addf %470, %432 : vector<16x24xf32>
    %c0_167 = arith.constant 0 : index
    %c0_168 = arith.constant 0 : index
    %472 = vector.load %arg6[%c0_167, %c0_168] : memref<27x32xf32, #tpu.memory_space<vmem>>, vector<1x24xf32>
    %c1_169 = arith.constant 1 : index
    %c0_170 = arith.constant 0 : index
    %473 = vector.load %arg6[%c1_169, %c0_170] : memref<27x32xf32, #tpu.memory_space<vmem>>, vector<1x24xf32>
    %c2_171 = arith.constant 2 : index
    %c0_172 = arith.constant 0 : index
    %474 = vector.load %arg6[%c2_171, %c0_172] : memref<27x32xf32, #tpu.memory_space<vmem>>, vector<1x32xf32>
    %c3_173 = arith.constant 3 : index
    %c0_174 = arith.constant 0 : index
    %475 = vector.load %arg6[%c3_173, %c0_174] : memref<27x32xf32, #tpu.memory_space<vmem>>, vector<24x32xf32>
    %cst_175 = arith.constant dense<0.000000e+00> : vector<16xf32>
    %476 = vector.multi_reduction <add>, %471, %cst_175 [1] : vector<16x24xf32> to vector<16xf32>
    %477 = vector.shape_cast %476 : vector<16xf32> to vector<16x1xf32>
    %cst_176 = arith.constant 2.400000e+01 : f32
    %478 = vector.broadcast %cst_176 : f32 to vector<16x1xf32>
    %479 = arith.divf %477, %478 : vector<16x1xf32>
    %480 = vector.broadcast %479 : vector<16x1xf32> to vector<16x24xf32>
    %481 = arith.subf %471, %480 : vector<16x24xf32>
    %482 = arith.mulf %481, %481 : vector<16x24xf32>
    %cst_177 = arith.constant dense<0.000000e+00> : vector<16xf32>
    %483 = vector.multi_reduction <add>, %482, %cst_177 [1] : vector<16x24xf32> to vector<16xf32>
    %484 = vector.shape_cast %483 : vector<16xf32> to vector<16x1xf32>
    %cst_178 = arith.constant 2.400000e+01 : f32
    %485 = vector.broadcast %cst_178 : f32 to vector<16x1xf32>
    %486 = arith.divf %484, %485 : vector<16x1xf32>
    %cst_179 = arith.constant 9.99999997E-7 : f32
    %487 = vector.broadcast %cst_179 : f32 to vector<16x1xf32>
    %488 = arith.addf %486, %487 : vector<16x1xf32>
    %489 = math.rsqrt %488 : vector<16x1xf32>
    %490 = vector.broadcast %489 : vector<16x1xf32> to vector<16x24xf32>
    %491 = arith.mulf %481, %490 : vector<16x24xf32>
    %492 = vector.broadcast %472 : vector<1x24xf32> to vector<16x24xf32>
    %493 = arith.mulf %491, %492 : vector<16x24xf32>
    %494 = vector.broadcast %473 : vector<1x24xf32> to vector<16x24xf32>
    %495 = arith.addf %493, %494 : vector<16x24xf32>
    %496 = vector.extract_strided_slice %495 {offsets = [0, 0], sizes = [8, 24], strides = [1, 1]} : vector<16x24xf32> to vector<8x24xf32>
    %cst_180 = arith.constant dense<0.000000e+00> : vector<24xf32>
    %497 = vector.multi_reduction <add>, %496, %cst_180 [0] : vector<8x24xf32> to vector<24xf32>
    %498 = vector.shape_cast %497 : vector<24xf32> to vector<1x24xf32>
    %cst_181 = arith.constant 8.000000e+00 : f32
    %499 = vector.broadcast %cst_181 : f32 to vector<1x24xf32>
    %500 = arith.divf %498, %499 : vector<1x24xf32>
    %501 = vector.extract_strided_slice %495 {offsets = [8, 0], sizes = [8, 24], strides = [1, 1]} : vector<16x24xf32> to vector<8x24xf32>
    %cst_182 = arith.constant dense<0.000000e+00> : vector<24xf32>
    %502 = vector.multi_reduction <add>, %501, %cst_182 [0] : vector<8x24xf32> to vector<24xf32>
    %503 = vector.shape_cast %502 : vector<24xf32> to vector<1x24xf32>
    %cst_183 = arith.constant 8.000000e+00 : f32
    %504 = vector.broadcast %cst_183 : f32 to vector<1x24xf32>
    %505 = arith.divf %503, %504 : vector<1x24xf32>
    %506 = tpu.concatenate %500, %505 in 0 : vector<1x24xf32>, vector<1x24xf32> -> vector<2x24xf32>
    %cst_184 = arith.constant dense<0.000000e+00> : vector<2x32xf32>
    %507 = tpu.matmul %506, %475, %cst_184 {dimension_numbers = #tpu.dot_dimension_numbers<[1], [0], [0], [1], [0, 0, 1, 1], [], []>} : vector<2x24xf32>, vector<24x32xf32>, vector<2x32xf32> -> vector<2x32xf32>
    %508 = vector.broadcast %474 : vector<1x32xf32> to vector<2x32xf32>
    %509 = arith.addf %507, %508 : vector<2x32xf32>
    %510 = arith.negf %509 : vector<2x32xf32>
    %511 = math.exp %510 : vector<2x32xf32>
    %cst_185 = arith.constant 1.000000e+00 : f32
    %512 = vector.broadcast %cst_185 : f32 to vector<2x32xf32>
    %513 = arith.addf %512, %511 : vector<2x32xf32>
    %514 = arith.divf %512, %513 : vector<2x32xf32>
    %515 = arith.mulf %509, %514 : vector<2x32xf32>
    %c0_186 = arith.constant 0 : index
    %c0_187 = arith.constant 0 : index
    %516 = vector.load %arg7[%c0_186, %c0_187] : memref<2x32xf32, #tpu.memory_space<vmem>>, vector<2x32xf32>
    tpu.vector_store %arg7[%c0_186, %c0_187], %515 {strides = array<i32>} : memref<2x32xf32, #tpu.memory_space<vmem>>, vector<2x32xf32>,
    return
  }
}

</mosaic_0001>

<llo_original>
// kernel: tile.13
$region0: #{tile.13}
  #allocation0 [shape = 's32[1]{0}', space=sflag, size = 0x4, scoped, tag = 'scoped memory for tile.13']
  %s0 = inlined_call_operand.vmem [shape: f32[6], index: 0, kind: input, shape index: {}]
  %s1 = inlined_call_operand.vmem [shape: f32[8,6], index: 1, kind: output, shape index: {}]
  // Predicated region
  $region2: #{tile.13} parent=0 // pred_check
    _
  $region3: #{tile.13} parent=0 // pred_check_branch
    %3 = sbr.rel (0) target = $region5
  $region4: #{tile.13} parent=0 // pred_region
    _
  $region5: #{tile.13} parent=0 // pred_fallthru
    _
  %v4 = vld [vmem:[%s0] ss:$0 sm:$0xff]
  %5 = vst [vmem:[%s1] sm:$0xff] %v4

// kernel: tile.14
$region0: #{tile.14}
  %s0 = inlined_call_operand.vmem [shape: f32[8,6], index: 0, kind: input, shape index: {}]
  %s1 = inlined_call_operand.vmem [shape: f32[48], index: 1, kind: output, shape index: {}]
  $region1: #{tile.14} parent=0
    #allocation0 [shape = 'u8[4096]{0}', space=vmem, size = 0x1000, scoped, tag = 'scoped mem for output reshape']
    %v2 = vld [vmem:[%s0] sm:$0x1]
    %vm3 = vcmask 48128
    %4 = vst.msk [vmem:[#allocation0] sm:$0x1] %vm3, %v2
    %s5 = scalar_lea.vmem %s0, 7
    %v6 = vld [vmem:[%s5] sm:$0x1]
    %7 = vrot.lane.b32.xlu0 %v6, 42
    %v8 = vpop.permute.xlu0 %7
    %vm9 = vcmask 392528
    %10 = vst.msk [vmem:[#allocation0] sm:$0x1] %vm9, %v8
    %s11 = scalar_lea.vmem %s0, 6
    %v12 = vld [vmem:[%s11] sm:$0x1]
    %13 = vrot.lane.b32.xlu0 %v12, 36
    %v14 = vpop.permute.xlu0 %13
    %vm15 = vcmask 343328
    %16 = vst.msk [vmem:[#allocation0] sm:$0x1] %vm15, %v14
    %s17 = scalar_lea.vmem %s0, 5
    %v18 = vld [vmem:[%s17] sm:$0x1]
    %19 = vrot.lane.b32.xlu0 %v18, 30
    %v20 = vpop.permute.xlu0 %19
    %vm21 = vcmask 294128
    %22 = vst.msk [vmem:[#allocation0] sm:$0x1] %vm21, %v20
    %s23 = scalar_lea.vmem %s0, 4
    %v24 = vld [vmem:[%s23] sm:$0x1]
    %25 = vrot.lane.b32.xlu0 %v24, 24
    %v26 = vpop.permute.xlu0 %25
    %vm27 = vcmask 244928
    %28 = vst.msk [vmem:[#allocation0] sm:$0x1] %vm27, %v26
    %s29 = scalar_lea.vmem %s0, 3
    %v30 = vld [vmem:[%s29] sm:$0x1]
    %31 = vrot.lane.b32.xlu0 %v30, 18
    %v32 = vpop.permute.xlu0 %31
    %vm33 = vcmask 195728
    %34 = vst.msk [vmem:[#allocation0] sm:$0x1] %vm33, %v32
    %s35 = scalar_lea.vmem %s0, 2
    %v36 = vld [vmem:[%s35] sm:$0x1]
    %37 = vrot.lane.b32.xlu0 %v36, 12
    %v38 = vpop.permute.xlu0 %37
    %vm39 = vcmask 146528
    %40 = vst.msk [vmem:[#allocation0] sm:$0x1] %vm39, %v38
    %s41 = scalar_lea.vmem %s0, 1
    %v42 = vld [vmem:[%s41] sm:$0x1]
    %43 = vrot.lane.b32.xlu0 %v42, 6
    %v44 = vpop.permute.xlu0 %43
    %vm45 = vcmask 97328
    %46 = vst.msk [vmem:[#allocation0] sm:$0x1] %vm45, %v44
    %s48 = sshll.u32 1, 1
    %s49 = ssub.s32 %s48, 1
    %v51 = vld [vmem:[#allocation0] sm:%s49]
    %s52 = sshll.u32 1, 1
    %s53 = ssub.s32 %s52, 1
    %54 = vst [vmem:[%s1] sm:%s53] %v51

// kernel: _lambda_.1
$region0: #{_lambda_.1}
  #allocation0 [shape = 'u32[]', space=smem, size = 0x4, offset = 0x4, fixed_abs, tag = 'smem constant byte address 0x4 - core index']
  #allocation1 [shape = 'u32[144,128]{1,0:T(1,128)}', space=vmem, size = 0x12000, scoped, tag = 'internal scratch']
  %s0 = inlined_call_operand.vmem [shape: f32[16,48], index: 0, kind: input, shape index: {}]
  %s1 = inlined_call_operand.vmem [shape: f32[48,24], index: 1, kind: input, shape index: {}]
  %s2 = inlined_call_operand.vmem [shape: f32[16,24], index: 2, kind: input, shape index: {}]
  %s3 = inlined_call_operand.vmem [shape: f32[16,16], index: 3, kind: input, shape index: {}]
  %s4 = inlined_call_operand.vmem [shape: f32[203,48], index: 4, kind: input, shape index: {}]
  %s5 = inlined_call_operand.vmem [shape: f32[331,48], index: 5, kind: input, shape index: {}]
  %s6 = inlined_call_operand.vmem [shape: f32[27,32], index: 6, kind: input, shape index: {}]
  %s7 = inlined_call_operand.hbm [shape: f32[2,32], index: 7, kind: output, shape index: {}]
  %s8 = sld [smem:[#allocation0]]
  $region38: #{_lambda_.1} parent=0
    _
  %s10 = ssub.s32 1, %s8
  %s11 = scalar_select 0, %s10, %s8
  $region1: #{_lambda_.1} parent=0
    #allocation2 [shape = 'u8[1024]{0}', space=vmem, size = 0x400, scoped, tag = 'output window, operand 0, single buffered']
    #allocation3 [shape = 's32[1]{0}', space=sflag, size = 0x4, scoped, tag = 'scoped memory for _lambda_.1']
    %12 = vsyncpa [#allocation3], 0
    // Predicated region
    $region2: #{_lambda_.1} parent=1 // pred_check
      _
    $region3: #{_lambda_.1} parent=1 // pred_check_branch
      %14 = sbr.rel (0) target = $region5
    $region4: #{_lambda_.1} parent=1 // pred_region
      _
    $region5: #{_lambda_.1} parent=1 // pred_fallthru
      _
    // Predicated region
    $region6: #{_lambda_.1} parent=1 // pred_check
      _
    $region7: #{_lambda_.1} parent=1 // pred_check_branch
      %16 = sbr.rel (0) target = $region9
    $region8: #{_lambda_.1} parent=1 // pred_region
      _
    $region9: #{_lambda_.1} parent=1 // pred_fallthru
      _
    // Predicated region
    $region10: #{_lambda_.1} parent=1 // pred_check
      _
    $region11: #{_lambda_.1} parent=1 // pred_check_branch
      %18 = sbr.rel (0) target = $region13
    $region12: #{_lambda_.1} parent=1 // pred_region
      _
    $region13: #{_lambda_.1} parent=1 // pred_fallthru
      _
    // Predicated region
    $region14: #{_lambda_.1} parent=1 // pred_check
      _
    $region15: #{_lambda_.1} parent=1 // pred_check_branch
      %20 = sbr.rel (0) target = $region17
    $region16: #{_lambda_.1} parent=1 // pred_region
      _
    $region17: #{_lambda_.1} parent=1 // pred_fallthru
      _
    // Predicated region
    $region18: #{_lambda_.1} parent=1 // pred_check
      _
    $region19: #{_lambda_.1} parent=1 // pred_check_branch
      %22 = sbr.rel (0) target = $region21
    $region20: #{_lambda_.1} parent=1 // pred_region
      _
    $region21: #{_lambda_.1} parent=1 // pred_fallthru
      _
    // Predicated region
    $region22: #{_lambda_.1} parent=1 // pred_check
      _
    $region23: #{_lambda_.1} parent=1 // pred_check_branch
      %24 = sbr.rel (0) target = $region25
    $region24: #{_lambda_.1} parent=1 // pred_region
      _
    $region25: #{_lambda_.1} parent=1 // pred_fallthru
      _
    // Predicated region
    $region26: #{_lambda_.1} parent=1 // pred_check
      _
    $region27: #{_lambda_.1} parent=1 // pred_check_branch
      %26 = sbr.rel (0) target = $region29
    $region28: #{_lambda_.1} parent=1 // pred_region
      _
    $region29: #{_lambda_.1} parent=1 // pred_fallthru
      _
    %v27 = vld [vmem:[%s0] sm:$0xff]
    %v28 = vld [vmem:[%s0 + $0x8] sm:$0xff]
    %v29 = vld [vmem:[%s1] sm:$0xff]
    %v30 = vld [vmem:[%s1 + $0x8] sm:$0xff]
    %v31 = vld [vmem:[%s1 + $0x10] sm:$0xff]
    %v32 = vld [vmem:[%s1 + $0x18] sm:$0xff]
    %v33 = vld [vmem:[%s1 + $0x20] sm:$0xff]
    %v34 = vld [vmem:[%s1 + $0x28] sm:$0xff]
    %v35 = vld [vmem:[%s2] sm:$0xff]
    %v36 = vld [vmem:[%s2 + $0x8] sm:$0xff]
    %vm37 = vcmask 392192
    %v39 = vsel %vm37, %v27, 0
    %v42 = vsel %vm37, %v28, 0
    %44 = vmatprep.subr.mxu0 0.0
    %45 = vmatpush1.msra.mxu0 0.0
    %46 = vmatprep.subr.mxu0 0.0
    %47 = vmatpush1.msra.mxu0 0.0
    %48 = vmatprep.subr.mxu0 0.0
    %49 = vmatpush1.msra.mxu0 0.0
    %50 = vmatprep.subr.mxu0 0.0
    %51 = vmatpush1.msra.mxu0 0.0
    %52 = vmatprep.subr.mxu0 0.0
    %53 = vmatpush1.msra.mxu0 0.0
    %54 = vmatprep.subr.mxu0 0.0
    %55 = vmatpush1.msra.mxu0 0.0
    %56 = vmatprep.subr.mxu0 0.0
    %57 = vmatpush1.msra.mxu0 0.0
    %58 = vmatprep.subr.mxu0 0.0
    %59 = vmatpush1.msra.mxu0 0.0
    %60 = vmatprep.subr.mxu0 0.0
    %61 = vmatpush1.msra.mxu0 0.0
    %62 = vmatprep.subr.mxu0 0.0
    %63 = vmatpush1.msra.mxu0 0.0
    %64 = vmatprep.subr.mxu0 0.0
    %65 = vmatpush1.msra.mxu0 %v34
    %66 = vmatprep.subr.mxu0 0.0
    %67 = vmatpush1.msra.mxu0 %v33
    %68 = vmatprep.subr.mxu0 0.0
    %69 = vmatpush1.msra.mxu0 %v32
    %70 = vmatprep.subr.mxu0 0.0
    %71 = vmatpush1.msra.mxu0 %v31
    %72 = vmatprep.subr.mxu0 0.0
    %73 = vmatpush1.msra.mxu0 %v30
    %74 = vmatprep.subr.mxu0 0.0
    %75 = vmatpush1.msra.mxu0 %v29
    %76 = vmatprep.subr.mxu0 0.0
    %77 = vmatpush2.msra.mxu0 0.0
    %78 = vmatprep.subr.mxu0 0.0
    %79 = vmatpush2.msra.mxu0 0.0
    %80 = vmatprep.subr.mxu0 0.0
    %81 = vmatpush2.msra.mxu0 0.0
    %82 = vmatprep.subr.mxu0 0.0
    %83 = vmatpush2.msra.mxu0 0.0
    %84 = vmatprep.subr.mxu0 0.0
    %85 = vmatpush2.msra.mxu0 0.0
    %86 = vmatprep.subr.mxu0 0.0
    %87 = vmatpush2.msra.mxu0 0.0
    %88 = vmatprep.subr.mxu0 0.0
    %89 = vmatpush2.msra.mxu0 0.0
    %90 = vmatprep.subr.mxu0 0.0
    %91 = vmatpush2.msra.mxu0 0.0
    %92 = vmatprep.subr.mxu0 0.0
    %93 = vmatpush2.msra.mxu0 0.0
    %94 = vmatprep.subr.mxu0 0.0
    %95 = vmatpush2.msra.mxu0 0.0
    %96 = vmatprep.subr.mxu0 0.0
    %97 = vmatpush2.msra.mxu0 0.0
    %98 = vmatprep.subr.mxu0 0.0
    %99 = vmatpush2.msra.mxu0 0.0
    %100 = vmatprep.subr.mxu0 0.0
    %101 = vmatpush2.msra.mxu0 0.0
    %102 = vmatprep.subr.mxu0 0.0
    %103 = vmatpush2.msra.mxu0 0.0
    %104 = vmatprep.subr.mxu0 0.0
    %105 = vmatpush2.msra.mxu0 0.0
    %106 = vmatprep.subr.mxu0 0.0
    %107 = vmatpush2.msra.mxu0 0.0
    %108 = vmatprep.mubr.f32.mxu0 0.0
    %109 = vmatmul.mubr.f32.gmra.mxu0 %v39
    %v110 = vpop.f32.mrf.mxu0
    %v111 = vadd.f32 %v35, %v110
    %v112 = vpop.f32.mrf.mxu0
    %113 = vmatprep.mubr.f32.mxu0 0.0
    %114 = vmatmul.mubr.f32.gmra.mxu0 %v42
    %v115 = vpop.f32.mrf.mxu0
    %v116 = vadd.f32 %v36, %v115
    %v117 = vpop.f32.mrf.mxu0
    %118 = vdwg.mxu0
    %v119 = vld [vmem:[%s3] sm:$0xff]
    %v120 = vld [vmem:[%s3 + $0x8] sm:$0xff]
    %v121 = vld [vmem:[%s4] sm:$0x1]
    %vm122 = vcmask 195584
    %v123 = vsel %vm122, %v111, 0.0
    %124 = vadd.xlane.f32.xlu0 %v123
    %v125 = vpop.xlane.xlu0 %124
    %v126 = vsel %vm122, %v116, 0.0
    %127 = vadd.xlane.f32.xlu0 %v126
    %v128 = vpop.xlane.xlu0 %127
    %v129 = vrcp.pop 24.0
    %v130 = vmul.f32 %v125, %v129
    %v131 = vmul.f32 %v128, %v129
    %v132 = vsub.f32 %v111, %v130
    %v133 = vsub.f32 %v116, %v131
    %v134 = vmul.f32 %v132, %v132
    %v135 = vmul.f32 %v133, %v133
    %v136 = vsel %vm122, %v134, 0.0
    %137 = vadd.xlane.f32.xlu0 %v136
    %v138 = vpop.xlane.xlu0 %137
    %v139 = vsel %vm122, %v135, 0.0
    %140 = vadd.xlane.f32.xlu0 %v139
    %v141 = vpop.xlane.xlu0 %140
    %v142 = vmul.f32 %v138, %v129
    %v143 = vmul.f32 %v141, %v129
    %v144 = vadd.f32 %v142, 1e-06
    %v145 = vadd.f32 %v143, 1e-06
    %v146 = vrsqrt.pop %v144
    %v147 = vrsqrt.pop %v145
    %v148 = vmul.f32 %v132, %v146
    %v149 = vmul.f32 %v133, %v147
    %v150 = vlaneseq
    %v151 = vshrl.u32 %v150, 7
    %v152 = vsub.s32 0, %v151
    %v153 = vrot.slane %v121, %v152
    %v154 = vmul.f32 %v148, %v153
    %v155 = vmul.f32 %v149, %v153
    %157 = vrot.lane.b32.xlu0 %v153, 104
    %v158 = vpop.permute.xlu0 %157
    %v160 = vadd.f32 %v154, %v158
    %v161 = vadd.f32 %v155, %v158
    %v162 = vld [vmem:[%s4 + $0x5] sm:$0xff]
    %v163 = vld [vmem:[%s4 + $0xd] sm:$0xff]
    %v164 = vld [vmem:[%s4 + $0x15] sm:$0xff]
    %v165 = vld [vmem:[%s4 + $0x2] sm:$0x1]
    %v166 = vlaneseq
    %v167 = vshrl.u32 %v166, 7
    %v168 = vsub.s32 0, %v167
    %v169 = vrot.slane %v165, %v168
    %v171 = vsel %vm122, %v160, 0
    %v174 = vsel %vm122, %v161, 0
    %176 = vmatprep.subr.mxu0 0.0
    %177 = vmatpush1.msra.mxu0 0.0
    %178 = vmatprep.subr.mxu0 0.0
    %179 = vmatpush1.msra.mxu0 0.0
    %180 = vmatprep.subr.mxu0 0.0
    %181 = vmatpush1.msra.mxu0 0.0
    %182 = vmatprep.subr.mxu0 0.0
    %183 = vmatpush1.msra.mxu0 0.0
    %184 = vmatprep.subr.mxu0 0.0
    %185 = vmatpush1.msra.mxu0 0.0
    %186 = vmatprep.subr.mxu0 0.0
    %187 = vmatpush1.msra.mxu0 0.0
    %188 = vmatprep.subr.mxu0 0.0
    %189 = vmatpush1.msra.mxu0 0.0
    %190 = vmatprep.subr.mxu0 0.0
    %191 = vmatpush1.msra.mxu0 0.0
    %192 = vmatprep.subr.mxu0 0.0
    %193 = vmatpush1.msra.mxu0 0.0
    %194 = vmatprep.subr.mxu0 0.0
    %195 = vmatpush1.msra.mxu0 0.0
    %196 = vmatprep.subr.mxu0 0.0
    %197 = vmatpush1.msra.mxu0 0.0
    %198 = vmatprep.subr.mxu0 0.0
    %199 = vmatpush1.msra.mxu0 0.0
    %200 = vmatprep.subr.mxu0 0.0
    %201 = vmatpush1.msra.mxu0 0.0
    %202 = vmatprep.subr.mxu0 0.0
    %203 = vmatpush1.msra.mxu0 %v164
    %204 = vmatprep.subr.mxu0 0.0
    %205 = vmatpush1.msra.mxu0 %v163
    %206 = vmatprep.subr.mxu0 0.0
    %207 = vmatpush1.msra.mxu0 %v162
    %208 = vmatprep.subr.mxu0 0.0
    %209 = vmatpush2.msra.mxu0 0.0
    %210 = vmatprep.subr.mxu0 0.0
    %211 = vmatpush2.msra.mxu0 0.0
    %212 = vmatprep.subr.mxu0 0.0
    %213 = vmatpush2.msra.mxu0 0.0
    %214 = vmatprep.subr.mxu0 0.0
    %215 = vmatpush2.msra.mxu0 0.0
    %216 = vmatprep.subr.mxu0 0.0
    %217 = vmatpush2.msra.mxu0 0.0
    %218 = vmatprep.subr.mxu0 0.0
    %219 = vmatpush2.msra.mxu0 0.0
    %220 = vmatprep.subr.mxu0 0.0
    %221 = vmatpush2.msra.mxu0 0.0
    %222 = vmatprep.subr.mxu0 0.0
    %223 = vmatpush2.msra.mxu0 0.0
    %224 = vmatprep.subr.mxu0 0.0
    %225 = vmatpush2.msra.mxu0 0.0
    %226 = vmatprep.subr.mxu0 0.0
    %227 = vmatpush2.msra.mxu0 0.0
    %228 = vmatprep.subr.mxu0 0.0
    %229 = vmatpush2.msra.mxu0 0.0
    %230 = vmatprep.subr.mxu0 0.0
    %231 = vmatpush2.msra.mxu0 0.0
    %232 = vmatprep.subr.mxu0 0.0
    %233 = vmatpush2.msra.mxu0 0.0
    %234 = vmatprep.subr.mxu0 0.0
    %235 = vmatpush2.msra.mxu0 0.0
    %236 = vmatprep.subr.mxu0 0.0
    %237 = vmatpush2.msra.mxu0 0.0
    %238 = vmatprep.subr.mxu0 0.0
    %239 = vmatpush2.msra.mxu0 0.0
    %240 = vmatprep.mubr.f32.mxu0 0.0
    %241 = vmatmul.mubr.f32.gmra.mxu0 %v171
    %v242 = vpop.f32.mrf.mxu0
    %v243 = vadd.f32 %v169, %v242
    %v244 = vpop.f32.mrf.mxu0
    %245 = vmatprep.mubr.f32.mxu0 0.0
    %246 = vmatmul.mubr.f32.gmra.mxu0 %v174
    %v247 = vpop.f32.mrf.mxu0
    %v248 = vadd.f32 %v169, %v247
    %v249 = vpop.f32.mrf.mxu0
    %250 = vdwg.mxu0
    %v251 = vld [vmem:[%s4 + $0x65] sm:$0x3f]
    %v252 = vld [vmem:[%s4 + $0x3] sm:$0x1]
    %255 = vrot.lane.b32.xlu0 %v243, 122
    %v256 = vpop.permute.xlu0 %255
    %257 = vrot.lane.b32.xlu0 %v248, 122
    %v258 = vpop.permute.xlu0 %257
    %vm259 = vcmask 15360
    %v260 = vsel %vm259, %v243, 0
    %v262 = vsel %vm259, %v248, 0
    %v264 = vsel %vm259, %v256, 0
    %v266 = vsel %vm259, %v258, 0
    %268 = vmatprep.subr.mxu0 0.0
    %269 = vmatpush1.xpose.msra.mxu0 0.0
    %270 = vmatprep.subr.mxu0 0.0
    %271 = vmatpush1.xpose.msra.mxu0 0.0
    %272 = vmatprep.subr.mxu0 0.0
    %273 = vmatpush1.xpose.msra.mxu0 0.0
    %274 = vmatprep.subr.mxu0 0.0
    %275 = vmatpush1.xpose.msra.mxu0 0.0
    %276 = vmatprep.subr.mxu0 0.0
    %277 = vmatpush1.xpose.msra.mxu0 0.0
    %278 = vmatprep.subr.mxu0 0.0
    %279 = vmatpush1.xpose.msra.mxu0 0.0
    %280 = vmatprep.subr.mxu0 0.0
    %281 = vmatpush1.xpose.msra.mxu0 0.0
    %282 = vmatprep.subr.mxu0 0.0
    %283 = vmatpush1.xpose.msra.mxu0 0.0
    %284 = vmatprep.subr.mxu0 0.0
    %285 = vmatpush1.xpose.msra.mxu0 0.0
    %286 = vmatprep.subr.mxu0 0.0
    %287 = vmatpush1.xpose.msra.mxu0 0.0
    %288 = vmatprep.subr.mxu0 0.0
    %289 = vmatpush1.xpose.msra.mxu0 0.0
    %290 = vmatprep.subr.mxu0 0.0
    %291 = vmatpush1.xpose.msra.mxu0 0.0
    %292 = vmatprep.subr.mxu0 0.0
    %293 = vmatpush1.xpose.msra.mxu0 0.0
    %294 = vmatprep.subr.mxu0 0.0
    %295 = vmatpush1.xpose.msra.mxu0 0.0
    %296 = vmatprep.subr.mxu0 0.0
    %297 = vmatpush1.xpose.msra.mxu0 %v266
    %298 = vmatprep.subr.mxu0 0.0
    %299 = vmatpush1.xpose.msra.mxu0 %v264
    %300 = vmatprep.subr.mxu0 0.0
    %301 = vmatpush2.xpose.msra.mxu0 0.0
    %302 = vmatprep.subr.mxu0 0.0
    %303 = vmatpush2.xpose.msra.mxu0 0.0
    %304 = vmatprep.subr.mxu0 0.0
    %305 = vmatpush2.xpose.msra.mxu0 0.0
    %306 = vmatprep.subr.mxu0 0.0
    %307 = vmatpush2.xpose.msra.mxu0 0.0
    %308 = vmatprep.subr.mxu0 0.0
    %309 = vmatpush2.xpose.msra.mxu0 0.0
    %310 = vmatprep.subr.mxu0 0.0
    %311 = vmatpush2.xpose.msra.mxu0 0.0
    %312 = vmatprep.subr.mxu0 0.0
    %313 = vmatpush2.xpose.msra.mxu0 0.0
    %314 = vmatprep.subr.mxu0 0.0
    %315 = vmatpush2.xpose.msra.mxu0 0.0
    %316 = vmatprep.subr.mxu0 0.0
    %317 = vmatpush2.xpose.msra.mxu0 0.0
    %318 = vmatprep.subr.mxu0 0.0
    %319 = vmatpush2.xpose.msra.mxu0 0.0
    %320 = vmatprep.subr.mxu0 0.0
    %321 = vmatpush2.xpose.msra.mxu0 0.0
    %322 = vmatprep.subr.mxu0 0.0
    %323 = vmatpush2.xpose.msra.mxu0 0.0
    %324 = vmatprep.subr.mxu0 0.0
    %325 = vmatpush2.xpose.msra.mxu0 0.0
    %326 = vmatprep.subr.mxu0 0.0
    %327 = vmatpush2.xpose.msra.mxu0 0.0
    %328 = vmatprep.subr.mxu0 0.0
    %329 = vmatpush2.xpose.msra.mxu0 0.0
    %330 = vmatprep.subr.mxu0 0.0
    %331 = vmatpush2.xpose.msra.mxu0 0.0
    %332 = vmatprep.mubr.f32.mxu0 0.0
    %333 = vmatmul.mubr.f32.gmra.mxu0 %v260
    %v334 = vpop.f32.mrf.mxu0
    %v335 = vadd.f32 0.0, %v334
    %v336 = vpop.f32.mrf.mxu0
    %337 = vmatprep.mubr.f32.mxu0 0.0
    %338 = vmatmul.mubr.f32.gmra.mxu0 %v262
    %v339 = vpop.f32.mrf.mxu0
    %v340 = vadd.f32 0.0, %v339
    %v341 = vpop.f32.mrf.mxu0
    %342 = vdwg.mxu0
    %v343 = vmul.f32 %v335, 0.70710677
    %v344 = vmul.f32 %v340, 0.70710677
    %v345 = vadd.f32 %v343, %v119
    %v346 = vadd.f32 %v344, %v120
    %vm347 = vcmask 130048
    %v348 = vsel %vm347, %v345, -inf
    %349 = vmax.xlane.f32.xlu0 %v348
    %v350 = vpop.xlane.xlu0 %349
    %v351 = vsel %vm347, %v346, -inf
    %352 = vmax.xlane.f32.xlu0 %v351
    %v353 = vpop.xlane.xlu0 %352
    %v354 = vsub.f32 %v345, %v350
    %v355 = vsub.f32 %v346, %v353
    %v356 = vmul.f32 %v354, 1.442695
    %v357 = vpow.pop %v356
    %v358 = vmul.f32 %v355, 1.442695
    %v359 = vpow.pop %v358
    %v360 = vsel %vm347, %v357, 0.0
    %361 = vadd.xlane.f32.xlu0 %v360
    %v362 = vpop.xlane.xlu0 %361
    %v363 = vsel %vm347, %v359, 0.0
    %364 = vadd.xlane.f32.xlu0 %v363
    %v365 = vpop.xlane.xlu0 %364
    %v366 = vrcp.pop %v362
    %v367 = vmul.f32 %v357, %v366
    %v368 = vrcp.pop %v365
    %v369 = vmul.f32 %v359, %v368
    %370 = vrot.lane.b32.xlu0 %v243, 116
    %v371 = vpop.permute.xlu0 %370
    %372 = vrot.lane.b32.xlu0 %v248, 116
    %v373 = vpop.permute.xlu0 %372
    %v377 = vsel %vm347, %v367, 0
    %v380 = vsel %vm347, %v369, 0
    %382 = vmatprep.subr.mxu0 0.0
    %383 = vmatpush1.msra.mxu0 0.0
    %384 = vmatprep.subr.mxu0 0.0
    %385 = vmatpush1.msra.mxu0 0.0
    %386 = vmatprep.subr.mxu0 0.0
    %387 = vmatpush1.msra.mxu0 0.0
    %388 = vmatprep.subr.mxu0 0.0
    %389 = vmatpush1.msra.mxu0 0.0
    %390 = vmatprep.subr.mxu0 0.0
    %391 = vmatpush1.msra.mxu0 0.0
    %392 = vmatprep.subr.mxu0 0.0
    %393 = vmatpush1.msra.mxu0 0.0
    %394 = vmatprep.subr.mxu0 0.0
    %395 = vmatpush1.msra.mxu0 0.0
    %396 = vmatprep.subr.mxu0 0.0
    %397 = vmatpush1.msra.mxu0 0.0
    %398 = vmatprep.subr.mxu0 0.0
    %399 = vmatpush1.msra.mxu0 0.0
    %400 = vmatprep.subr.mxu0 0.0
    %401 = vmatpush1.msra.mxu0 0.0
    %402 = vmatprep.subr.mxu0 0.0
    %403 = vmatpush1.msra.mxu0 0.0
    %404 = vmatprep.subr.mxu0 0.0
    %405 = vmatpush1.msra.mxu0 0.0
    %406 = vmatprep.subr.mxu0 0.0
    %407 = vmatpush1.msra.mxu0 0.0
    %408 = vmatprep.subr.mxu0 0.0
    %409 = vmatpush1.msra.mxu0 0.0
    %410 = vmatprep.subr.mxu0 0.0
    %411 = vmatpush1.msra.mxu0 %v373
    %412 = vmatprep.subr.mxu0 0.0
    %413 = vmatpush1.msra.mxu0 %v371
    %414 = vmatprep.subr.mxu0 0.0
    %415 = vmatpush2.msra.mxu0 0.0
    %416 = vmatprep.subr.mxu0 0.0
    %417 = vmatpush2.msra.mxu0 0.0
    %418 = vmatprep.subr.mxu0 0.0
    %419 = vmatpush2.msra.mxu0 0.0
    %420 = vmatprep.subr.mxu0 0.0
    %421 = vmatpush2.msra.mxu0 0.0
    %422 = vmatprep.subr.mxu0 0.0
    %423 = vmatpush2.msra.mxu0 0.0
    %424 = vmatprep.subr.mxu0 0.0
    %425 = vmatpush2.msra.mxu0 0.0
    %426 = vmatprep.subr.mxu0 0.0
    %427 = vmatpush2.msra.mxu0 0.0
    %428 = vmatprep.subr.mxu0 0.0
    %429 = vmatpush2.msra.mxu0 0.0
    %430 = vmatprep.subr.mxu0 0.0
    %431 = vmatpush2.msra.mxu0 0.0
    %432 = vmatprep.subr.mxu0 0.0
    %433 = vmatpush2.msra.mxu0 0.0
    %434 = vmatprep.subr.mxu0 0.0
    %435 = vmatpush2.msra.mxu0 0.0
    %436 = vmatprep.subr.mxu0 0.0
    %437 = vmatpush2.msra.mxu0 0.0
    %438 = vmatprep.subr.mxu0 0.0
    %439 = vmatpush2.msra.mxu0 0.0
    %440 = vmatprep.subr.mxu0 0.0
    %441 = vmatpush2.msra.mxu0 0.0
    %442 = vmatprep.subr.mxu0 0.0
    %443 = vmatpush2.msra.mxu0 0.0
    %444 = vmatprep.subr.mxu0 0.0
    %445 = vmatpush2.msra.mxu0 0.0
    %446 = vmatprep.mubr.f32.mxu0 0.0
    %447 = vmatmul.mubr.f32.gmra.mxu0 %v377
    %v448 = vpop.f32.mrf.mxu0
    %v449 = vadd.f32 0.0, %v448
    %v450 = vpop.f32.mrf.mxu0
    %451 = vmatprep.mubr.f32.mxu0 0.0
    %452 = vmatmul.mubr.f32.gmra.mxu0 %v380
    %v453 = vpop.f32.mrf.mxu0
    %v454 = vadd.f32 0.0, %v453
    %v455 = vpop.f32.mrf.mxu0
    %456 = vdwg.mxu0
    %457 = vrot.lane.b32.xlu0 %v243, 126
    %v458 = vpop.permute.xlu0 %457
    %459 = vrot.lane.b32.xlu0 %v248, 126
    %v460 = vpop.permute.xlu0 %459
    %461 = vrot.lane.b32.xlu0 %v243, 120
    %v462 = vpop.permute.xlu0 %461
    %463 = vrot.lane.b32.xlu0 %v248, 120
    %v464 = vpop.permute.xlu0 %463
    %v465 = vsel %vm259, %v458, 0
    %v467 = vsel %vm259, %v460, 0
    %v469 = vsel %vm259, %v462, 0
    %v471 = vsel %vm259, %v464, 0
    %473 = vmatprep.subr.mxu0 0.0
    %474 = vmatpush1.xpose.msra.mxu0 0.0
    %475 = vmatprep.subr.mxu0 0.0
    %476 = vmatpush1.xpose.msra.mxu0 0.0
    %477 = vmatprep.subr.mxu0 0.0
    %478 = vmatpush1.xpose.msra.mxu0 0.0
    %479 = vmatprep.subr.mxu0 0.0
    %480 = vmatpush1.xpose.msra.mxu0 0.0
    %481 = vmatprep.subr.mxu0 0.0
    %482 = vmatpush1.xpose.msra.mxu0 0.0
    %483 = vmatprep.subr.mxu0 0.0
    %484 = vmatpush1.xpose.msra.mxu0 0.0
    %485 = vmatprep.subr.mxu0 0.0
    %486 = vmatpush1.xpose.msra.mxu0 0.0
    %487 = vmatprep.subr.mxu0 0.0
    %488 = vmatpush1.xpose.msra.mxu0 0.0
    %489 = vmatprep.subr.mxu0 0.0
    %490 = vmatpush1.xpose.msra.mxu0 0.0
    %491 = vmatprep.subr.mxu0 0.0
    %492 = vmatpush1.xpose.msra.mxu0 0.0
    %493 = vmatprep.subr.mxu0 0.0
    %494 = vmatpush1.xpose.msra.mxu0 0.0
    %495 = vmatprep.subr.mxu0 0.0
    %496 = vmatpush1.xpose.msra.mxu0 0.0
    %497 = vmatprep.subr.mxu0 0.0
    %498 = vmatpush1.xpose.msra.mxu0 0.0
    %499 = vmatprep.subr.mxu0 0.0
    %500 = vmatpush1.xpose.msra.mxu0 0.0
    %501 = vmatprep.subr.mxu0 0.0
    %502 = vmatpush1.xpose.msra.mxu0 %v471
    %503 = vmatprep.subr.mxu0 0.0
    %504 = vmatpush1.xpose.msra.mxu0 %v469
    %505 = vmatprep.subr.mxu0 0.0
    %506 = vmatpush2.xpose.msra.mxu0 0.0
    %507 = vmatprep.subr.mxu0 0.0
    %508 = vmatpush2.xpose.msra.mxu0 0.0
    %509 = vmatprep.subr.mxu0 0.0
    %510 = vmatpush2.xpose.msra.mxu0 0.0
    %511 = vmatprep.subr.mxu0 0.0
    %512 = vmatpush2.xpose.msra.mxu0 0.0
    %513 = vmatprep.subr.mxu0 0.0
    %514 = vmatpush2.xpose.msra.mxu0 0.0
    %515 = vmatprep.subr.mxu0 0.0
    %516 = vmatpush2.xpose.msra.mxu0 0.0
    %517 = vmatprep.subr.mxu0 0.0
    %518 = vmatpush2.xpose.msra.mxu0 0.0
    %519 = vmatprep.subr.mxu0 0.0
    %520 = vmatpush2.xpose.msra.mxu0 0.0
    %521 = vmatprep.subr.mxu0 0.0
    %522 = vmatpush2.xpose.msra.mxu0 0.0
    %523 = vmatprep.subr.mxu0 0.0
    %524 = vmatpush2.xpose.msra.mxu0 0.0
    %525 = vmatprep.subr.mxu0 0.0
    %526 = vmatpush2.xpose.msra.mxu0 0.0
    %527 = vmatprep.subr.mxu0 0.0
    %528 = vmatpush2.xpose.msra.mxu0 0.0
    %529 = vmatprep.subr.mxu0 0.0
    %530 = vmatpush2.xpose.msra.mxu0 0.0
    %531 = vmatprep.subr.mxu0 0.0
    %532 = vmatpush2.xpose.msra.mxu0 0.0
    %533 = vmatprep.subr.mxu0 0.0
    %534 = vmatpush2.xpose.msra.mxu0 0.0
    %535 = vmatprep.subr.mxu0 0.0
    %536 = vmatpush2.xpose.msra.mxu0 0.0
    %537 = vmatprep.mubr.f32.mxu0 0.0
    %538 = vmatmul.mubr.f32.gmra.mxu0 %v465
    %v539 = vpop.f32.mrf.mxu0
    %v540 = vadd.f32 0.0, %v539
    %v541 = vpop.f32.mrf.mxu0
    %542 = vmatprep.mubr.f32.mxu0 0.0
    %543 = vmatmul.mubr.f32.gmra.mxu0 %v467
    %v544 = vpop.f32.mrf.mxu0
    %v545 = vadd.f32 0.0, %v544
    %v546 = vpop.f32.mrf.mxu0
    %547 = vdwg.mxu0
    %v548 = vmul.f32 %v540, 0.70710677
    %v549 = vmul.f32 %v545, 0.70710677
    %v550 = vadd.f32 %v548, %v119
    %v551 = vadd.f32 %v549, %v120
    %v552 = vsel %vm347, %v550, -inf
    %553 = vmax.xlane.f32.xlu0 %v552
    %v554 = vpop.xlane.xlu0 %553
    %v555 = vsel %vm347, %v551, -inf
    %556 = vmax.xlane.f32.xlu0 %v555
    %v557 = vpop.xlane.xlu0 %556
    %v558 = vsub.f32 %v550, %v554
    %v559 = vsub.f32 %v551, %v557
    %v560 = vmul.f32 %v558, 1.442695
    %v561 = vpow.pop %v560
    %v562 = vmul.f32 %v559, 1.442695
    %v563 = vpow.pop %v562
    %v564 = vsel %vm347, %v561, 0.0
    %565 = vadd.xlane.f32.xlu0 %v564
    %v566 = vpop.xlane.xlu0 %565
    %v567 = vsel %vm347, %v563, 0.0
    %568 = vadd.xlane.f32.xlu0 %v567
    %v569 = vpop.xlane.xlu0 %568
    %v570 = vrcp.pop %v566
    %v571 = vmul.f32 %v561, %v570
    %v572 = vrcp.pop %v569
    %v573 = vmul.f32 %v563, %v572
    %574 = vrot.lane.b32.xlu0 %v243, 114
    %v575 = vpop.permute.xlu0 %574
    %576 = vrot.lane.b32.xlu0 %v248, 114
    %v577 = vpop.permute.xlu0 %576
    %v581 = vsel %vm347, %v571, 0
    %v584 = vsel %vm347, %v573, 0
    %586 = vmatprep.subr.mxu0 0.0
    %587 = vmatpush1.msra.mxu0 0.0
    %588 = vmatprep.subr.mxu0 0.0
    %589 = vmatpush1.msra.mxu0 0.0
    %590 = vmatprep.subr.mxu0 0.0
    %591 = vmatpush1.msra.mxu0 0.0
    %592 = vmatprep.subr.mxu0 0.0
    %593 = vmatpush1.msra.mxu0 0.0
    %594 = vmatprep.subr.mxu0 0.0
    %595 = vmatpush1.msra.mxu0 0.0
    %596 = vmatprep.subr.mxu0 0.0
    %597 = vmatpush1.msra.mxu0 0.0
    %598 = vmatprep.subr.mxu0 0.0
    %599 = vmatpush1.msra.mxu0 0.0
    %600 = vmatprep.subr.mxu0 0.0
    %601 = vmatpush1.msra.mxu0 0.0
    %602 = vmatprep.subr.mxu0 0.0
    %603 = vmatpush1.msra.mxu0 0.0
    %604 = vmatprep.subr.mxu0 0.0
    %605 = vmatpush1.msra.mxu0 0.0
    %606 = vmatprep.subr.mxu0 0.0
    %607 = vmatpush1.msra.mxu0 0.0
    %608 = vmatprep.subr.mxu0 0.0
    %609 = vmatpush1.msra.mxu0 0.0
    %610 = vmatprep.subr.mxu0 0.0
    %611 = vmatpush1.msra.mxu0 0.0
    %612 = vmatprep.subr.mxu0 0.0
    %613 = vmatpush1.msra.mxu0 0.0
    %614 = vmatprep.subr.mxu0 0.0
    %615 = vmatpush1.msra.mxu0 %v577
    %616 = vmatprep.subr.mxu0 0.0
    %617 = vmatpush1.msra.mxu0 %v575
    %618 = vmatprep.subr.mxu0 0.0
    %619 = vmatpush2.msra.mxu0 0.0
    %620 = vmatprep.subr.mxu0 0.0
    %621 = vmatpush2.msra.mxu0 0.0
    %622 = vmatprep.subr.mxu0 0.0
    %623 = vmatpush2.msra.mxu0 0.0
    %624 = vmatprep.subr.mxu0 0.0
    %625 = vmatpush2.msra.mxu0 0.0
    %626 = vmatprep.subr.mxu0 0.0
    %627 = vmatpush2.msra.mxu0 0.0
    %628 = vmatprep.subr.mxu0 0.0
    %629 = vmatpush2.msra.mxu0 0.0
    %630 = vmatprep.subr.mxu0 0.0
    %631 = vmatpush2.msra.mxu0 0.0
    %632 = vmatprep.subr.mxu0 0.0
    %633 = vmatpush2.msra.mxu0 0.0
    %634 = vmatprep.subr.mxu0 0.0
    %635 = vmatpush2.msra.mxu0 0.0
    %636 = vmatprep.subr.mxu0 0.0
    %637 = vmatpush2.msra.mxu0 0.0
    %638 = vmatprep.subr.mxu0 0.0
    %639 = vmatpush2.msra.mxu0 0.0
    %640 = vmatprep.subr.mxu0 0.0
    %641 = vmatpush2.msra.mxu0 0.0
    %642 = vmatprep.subr.mxu0 0.0
    %643 = vmatpush2.msra.mxu0 0.0
    %644 = vmatprep.subr.mxu0 0.0
    %645 = vmatpush2.msra.mxu0 0.0
    %646 = vmatprep.subr.mxu0 0.0
    %647 = vmatpush2.msra.mxu0 0.0
    %648 = vmatprep.subr.mxu0 0.0
    %649 = vmatpush2.msra.mxu0 0.0
    %650 = vmatprep.mubr.f32.mxu0 0.0
    %651 = vmatmul.mubr.f32.gmra.mxu0 %v581
    %v652 = vpop.f32.mrf.mxu0
    %v653 = vadd.f32 0.0, %v652
    %v654 = vpop.f32.mrf.mxu0
    %655 = vmatprep.mubr.f32.mxu0 0.0
    %656 = vmatmul.mubr.f32.gmra.mxu0 %v584
    %v657 = vpop.f32.mrf.mxu0
    %v658 = vadd.f32 0.0, %v657
    %v659 = vpop.f32.mrf.mxu0
    %660 = vdwg.mxu0
    %661 = vrot.lane.b32.xlu0 %v243, 124
    %v662 = vpop.permute.xlu0 %661
    %663 = vrot.lane.b32.xlu0 %v248, 124
    %v664 = vpop.permute.xlu0 %663
    %665 = vrot.lane.b32.xlu0 %v243, 118
    %v666 = vpop.permute.xlu0 %665
    %667 = vrot.lane.b32.xlu0 %v248, 118
    %v668 = vpop.permute.xlu0 %667
    %v669 = vsel %vm259, %v662, 0
    %v671 = vsel %vm259, %v664, 0
    %v673 = vsel %vm259, %v666, 0
    %v675 = vsel %vm259, %v668, 0
    %677 = vmatprep.subr.mxu0 0.0
    %678 = vmatpush1.xpose.msra.mxu0 0.0
    %679 = vmatprep.subr.mxu0 0.0
    %680 = vmatpush1.xpose.msra.mxu0 0.0
    %681 = vmatprep.subr.mxu0 0.0
    %682 = vmatpush1.xpose.msra.mxu0 0.0
    %683 = vmatprep.subr.mxu0 0.0
    %684 = vmatpush1.xpose.msra.mxu0 0.0
    %685 = vmatprep.subr.mxu0 0.0
    %686 = vmatpush1.xpose.msra.mxu0 0.0
    %687 = vmatprep.subr.mxu0 0.0
    %688 = vmatpush1.xpose.msra.mxu0 0.0
    %689 = vmatprep.subr.mxu0 0.0
    %690 = vmatpush1.xpose.msra.mxu0 0.0
    %691 = vmatprep.subr.mxu0 0.0
    %692 = vmatpush1.xpose.msra.mxu0 0.0
    %693 = vmatprep.subr.mxu0 0.0
    %694 = vmatpush1.xpose.msra.mxu0 0.0
    %695 = vmatprep.subr.mxu0 0.0
    %696 = vmatpush1.xpose.msra.mxu0 0.0
    %697 = vmatprep.subr.mxu0 0.0
    %698 = vmatpush1.xpose.msra.mxu0 0.0
    %699 = vmatprep.subr.mxu0 0.0
    %700 = vmatpush1.xpose.msra.mxu0 0.0
    %701 = vmatprep.subr.mxu0 0.0
    %702 = vmatpush1.xpose.msra.mxu0 0.0
    %703 = vmatprep.subr.mxu0 0.0
    %704 = vmatpush1.xpose.msra.mxu0 0.0
    %705 = vmatprep.subr.mxu0 0.0
    %706 = vmatpush1.xpose.msra.mxu0 %v675
    %707 = vmatprep.subr.mxu0 0.0
    %708 = vmatpush1.xpose.msra.mxu0 %v673
    %709 = vmatprep.subr.mxu0 0.0
    %710 = vmatpush2.xpose.msra.mxu0 0.0
    %711 = vmatprep.subr.mxu0 0.0
    %712 = vmatpush2.xpose.msra.mxu0 0.0
    %713 = vmatprep.subr.mxu0 0.0
    %714 = vmatpush2.xpose.msra.mxu0 0.0
    %715 = vmatprep.subr.mxu0 0.0
    %716 = vmatpush2.xpose.msra.mxu0 0.0
    %717 = vmatprep.subr.mxu0 0.0
    %718 = vmatpush2.xpose.msra.mxu0 0.0
    %719 = vmatprep.subr.mxu0 0.0
    %720 = vmatpush2.xpose.msra.mxu0 0.0
    %721 = vmatprep.subr.mxu0 0.0
    %722 = vmatpush2.xpose.msra.mxu0 0.0
    %723 = vmatprep.subr.mxu0 0.0
    %724 = vmatpush2.xpose.msra.mxu0 0.0
    %725 = vmatprep.subr.mxu0 0.0
    %726 = vmatpush2.xpose.msra.mxu0 0.0
    %727 = vmatprep.subr.mxu0 0.0
    %728 = vmatpush2.xpose.msra.mxu0 0.0
    %729 = vmatprep.subr.mxu0 0.0
    %730 = vmatpush2.xpose.msra.mxu0 0.0
    %731 = vmatprep.subr.mxu0 0.0
    %732 = vmatpush2.xpose.msra.mxu0 0.0
    %733 = vmatprep.subr.mxu0 0.0
    %734 = vmatpush2.xpose.msra.mxu0 0.0
    %735 = vmatprep.subr.mxu0 0.0
    %736 = vmatpush2.xpose.msra.mxu0 0.0
    %737 = vmatprep.subr.mxu0 0.0
    %738 = vmatpush2.xpose.msra.mxu0 0.0
    %739 = vmatprep.subr.mxu0 0.0
    %740 = vmatpush2.xpose.msra.mxu0 0.0
    %741 = vmatprep.mubr.f32.mxu0 0.0
    %742 = vmatmul.mubr.f32.gmra.mxu0 %v669
    %v743 = vpop.f32.mrf.mxu0
    %v744 = vadd.f32 0.0, %v743
    %v745 = vpop.f32.mrf.mxu0
    %746 = vmatprep.mubr.f32.mxu0 0.0
    %747 = vmatmul.mubr.f32.gmra.mxu0 %v671
    %v748 = vpop.f32.mrf.mxu0
    %v749 = vadd.f32 0.0, %v748
    %v750 = vpop.f32.mrf.mxu0
    %751 = vdwg.mxu0
    %v752 = vmul.f32 %v744, 0.70710677
    %v753 = vmul.f32 %v749, 0.70710677
    %v754 = vadd.f32 %v752, %v119
    %v755 = vadd.f32 %v753, %v120
    %v756 = vsel %vm347, %v754, -inf
    %757 = vmax.xlane.f32.xlu0 %v756
    %v758 = vpop.xlane.xlu0 %757
    %v759 = vsel %vm347, %v755, -inf
    %760 = vmax.xlane.f32.xlu0 %v759
    %v761 = vpop.xlane.xlu0 %760
    %v762 = vsub.f32 %v754, %v758
    %v763 = vsub.f32 %v755, %v761
    %v764 = vmul.f32 %v762, 1.442695
    %v765 = vpow.pop %v764
    %v766 = vmul.f32 %v763, 1.442695
    %v767 = vpow.pop %v766
    %v768 = vsel %vm347, %v765, 0.0
    %769 = vadd.xlane.f32.xlu0 %v768
    %v770 = vpop.xlane.xlu0 %769
    %v771 = vsel %vm347, %v767, 0.0
    %772 = vadd.xlane.f32.xlu0 %v771
    %v773 = vpop.xlane.xlu0 %772
    %v774 = vrcp.pop %v770
    %v775 = vmul.f32 %v765, %v774
    %v776 = vrcp.pop %v773
    %v777 = vmul.f32 %v767, %v776
    %778 = vrot.lane.b32.xlu0 %v243, 112
    %v779 = vpop.permute.xlu0 %778
    %780 = vrot.lane.b32.xlu0 %v248, 112
    %v781 = vpop.permute.xlu0 %780
    %v785 = vsel %vm347, %v775, 0
    %v788 = vsel %vm347, %v777, 0
    %790 = vmatprep.subr.mxu0 0.0
    %791 = vmatpush1.msra.mxu0 0.0
    %792 = vmatprep.subr.mxu0 0.0
    %793 = vmatpush1.msra.mxu0 0.0
    %794 = vmatprep.subr.mxu0 0.0
    %795 = vmatpush1.msra.mxu0 0.0
    %796 = vmatprep.subr.mxu0 0.0
    %797 = vmatpush1.msra.mxu0 0.0
    %798 = vmatprep.subr.mxu0 0.0
    %799 = vmatpush1.msra.mxu0 0.0
    %800 = vmatprep.subr.mxu0 0.0
    %801 = vmatpush1.msra.mxu0 0.0
    %802 = vmatprep.subr.mxu0 0.0
    %803 = vmatpush1.msra.mxu0 0.0
    %804 = vmatprep.subr.mxu0 0.0
    %805 = vmatpush1.msra.mxu0 0.0
    %806 = vmatprep.subr.mxu0 0.0
    %807 = vmatpush1.msra.mxu0 0.0
    %808 = vmatprep.subr.mxu0 0.0
    %809 = vmatpush1.msra.mxu0 0.0
    %810 = vmatprep.subr.mxu0 0.0
    %811 = vmatpush1.msra.mxu0 0.0
    %812 = vmatprep.subr.mxu0 0.0
    %813 = vmatpush1.msra.mxu0 0.0
    %814 = vmatprep.subr.mxu0 0.0
    %815 = vmatpush1.msra.mxu0 0.0
    %816 = vmatprep.subr.mxu0 0.0
    %817 = vmatpush1.msra.mxu0 0.0
    %818 = vmatprep.subr.mxu0 0.0
    %819 = vmatpush1.msra.mxu0 %v781
    %820 = vmatprep.subr.mxu0 0.0
    %821 = vmatpush1.msra.mxu0 %v779
    %822 = vmatprep.subr.mxu0 0.0
    %823 = vmatpush2.msra.mxu0 0.0
    %824 = vmatprep.subr.mxu0 0.0
    %825 = vmatpush2.msra.mxu0 0.0
    %826 = vmatprep.subr.mxu0 0.0
    %827 = vmatpush2.msra.mxu0 0.0
    %828 = vmatprep.subr.mxu0 0.0
    %829 = vmatpush2.msra.mxu0 0.0
    %830 = vmatprep.subr.mxu0 0.0
    %831 = vmatpush2.msra.mxu0 0.0
    %832 = vmatprep.subr.mxu0 0.0
    %833 = vmatpush2.msra.mxu0 0.0
    %834 = vmatprep.subr.mxu0 0.0
    %835 = vmatpush2.msra.mxu0 0.0
    %836 = vmatprep.subr.mxu0 0.0
    %837 = vmatpush2.msra.mxu0 0.0
    %838 = vmatprep.subr.mxu0 0.0
    %839 = vmatpush2.msra.mxu0 0.0
    %840 = vmatprep.subr.mxu0 0.0
    %841 = vmatpush2.msra.mxu0 0.0
    %842 = vmatprep.subr.mxu0 0.0
    %843 = vmatpush2.msra.mxu0 0.0
    %844 = vmatprep.subr.mxu0 0.0
    %845 = vmatpush2.msra.mxu0 0.0
    %846 = vmatprep.subr.mxu0 0.0
    %847 = vmatpush2.msra.mxu0 0.0
    %848 = vmatprep.subr.mxu0 0.0
    %849 = vmatpush2.msra.mxu0 0.0
    %850 = vmatprep.subr.mxu0 0.0
    %851 = vmatpush2.msra.mxu0 0.0
    %852 = vmatprep.subr.mxu0 0.0
    %853 = vmatpush2.msra.mxu0 0.0
    %854 = vmatprep.mubr.f32.mxu0 0.0
    %855 = vmatmul.mubr.f32.gmra.mxu0 %v785
    %v856 = vpop.f32.mrf.mxu0
    %v857 = vadd.f32 0.0, %v856
    %v858 = vpop.f32.mrf.mxu0
    %859 = vmatprep.mubr.f32.mxu0 0.0
    %860 = vmatmul.mubr.f32.gmra.mxu0 %v788
    %v861 = vpop.f32.mrf.mxu0
    %v862 = vadd.f32 0.0, %v861
    %v863 = vpop.f32.mrf.mxu0
    %864 = vdwg.mxu0
    %867 = vrot.lane.b32.xlu0 %v653, 2
    %v868 = vpop.permute.xlu0 %867
    %869 = vrot.lane.b32.xlu0 %v658, 2
    %v870 = vpop.permute.xlu0 %869
    %875 = vrot.lane.b32.xlu0 %v857, 4
    %v876 = vpop.permute.xlu0 %875
    %877 = vrot.lane.b32.xlu0 %v862, 4
    %v878 = vpop.permute.xlu0 %877
    %v881 = vsel %vm259, %v449, %v868
    %v882 = vsel %vm259, %v454, %v870
    %vm883 = vcmask 31744
    %v884 = vsel %vm883, %v881, %v876
    %v885 = vsel %vm883, %v882, %v878
    %v886 = vlaneseq
    %v887 = vshrl.u32 %v886, 7
    %v888 = vsub.s32 0, %v887
    %v889 = vrot.slane %v252, %v888
    %vm890 = vcmask 48128
    %v892 = vsel %vm890, %v884, 0
    %v895 = vsel %vm890, %v885, 0
    %vm897 = vcmask 1045504
    %v899 = vsel %vm897, %v251, 0
    %901 = vmatprep.subr.mxu0 0.0
    %902 = vmatpush1.msra.mxu0 0.0
    %903 = vmatprep.subr.mxu0 0.0
    %904 = vmatpush1.msra.mxu0 0.0
    %905 = vmatprep.subr.mxu0 0.0
    %906 = vmatpush1.msra.mxu0 0.0
    %907 = vmatprep.subr.mxu0 0.0
    %908 = vmatpush1.msra.mxu0 0.0
    %909 = vmatprep.subr.mxu0 0.0
    %910 = vmatpush1.msra.mxu0 0.0
    %911 = vmatprep.subr.mxu0 0.0
    %912 = vmatpush1.msra.mxu0 0.0
    %913 = vmatprep.subr.mxu0 0.0
    %914 = vmatpush1.msra.mxu0 0.0
    %915 = vmatprep.subr.mxu0 0.0
    %916 = vmatpush1.msra.mxu0 0.0
    %917 = vmatprep.subr.mxu0 0.0
    %918 = vmatpush1.msra.mxu0 0.0
    %919 = vmatprep.subr.mxu0 0.0
    %920 = vmatpush1.msra.mxu0 0.0
    %921 = vmatprep.subr.mxu0 0.0
    %922 = vmatpush1.msra.mxu0 0.0
    %923 = vmatprep.subr.mxu0 0.0
    %924 = vmatpush1.msra.mxu0 0.0
    %925 = vmatprep.subr.mxu0 0.0
    %926 = vmatpush1.msra.mxu0 0.0
    %927 = vmatprep.subr.mxu0 0.0
    %928 = vmatpush1.msra.mxu0 0.0
    %929 = vmatprep.subr.mxu0 0.0
    %930 = vmatpush1.msra.mxu0 0.0
    %931 = vmatprep.subr.mxu0 0.0
    %932 = vmatpush1.msra.mxu0 %v899
    %933 = vmatprep.subr.mxu0 0.0
    %934 = vmatpush2.msra.mxu0 0.0
    %935 = vmatprep.subr.mxu0 0.0
    %936 = vmatpush2.msra.mxu0 0.0
    %937 = vmatprep.subr.mxu0 0.0
    %938 = vmatpush2.msra.mxu0 0.0
    %939 = vmatprep.subr.mxu0 0.0
    %940 = vmatpush2.msra.mxu0 0.0
    %941 = vmatprep.subr.mxu0 0.0
    %942 = vmatpush2.msra.mxu0 0.0
    %943 = vmatprep.subr.mxu0 0.0
    %944 = vmatpush2.msra.mxu0 0.0
    %945 = vmatprep.subr.mxu0 0.0
    %946 = vmatpush2.msra.mxu0 0.0
    %947 = vmatprep.subr.mxu0 0.0
    %948 = vmatpush2.msra.mxu0 0.0
    %949 = vmatprep.subr.mxu0 0.0
    %950 = vmatpush2.msra.mxu0 0.0
    %951 = vmatprep.subr.mxu0 0.0
    %952 = vmatpush2.msra.mxu0 0.0
    %953 = vmatprep.subr.mxu0 0.0
    %954 = vmatpush2.msra.mxu0 0.0
    %955 = vmatprep.subr.mxu0 0.0
    %956 = vmatpush2.msra.mxu0 0.0
    %957 = vmatprep.subr.mxu0 0.0
    %958 = vmatpush2.msra.mxu0 0.0
    %959 = vmatprep.subr.mxu0 0.0
    %960 = vmatpush2.msra.mxu0 0.0
    %961 = vmatprep.subr.mxu0 0.0
    %962 = vmatpush2.msra.mxu0 0.0
    %963 = vmatprep.subr.mxu0 0.0
    %964 = vmatpush2.msra.mxu0 0.0
    %965 = vmatprep.mubr.f32.mxu0 0.0
    %966 = vmatmul.mubr.f32.gmra.mxu0 %v892
    %v967 = vpop.f32.mrf.mxu0
    %v968 = vadd.f32 %v889, %v967
    %v969 = vpop.f32.mrf.mxu0
    %970 = vmatprep.mubr.f32.mxu0 0.0
    %971 = vmatmul.mubr.f32.gmra.mxu0 %v895
    %v972 = vpop.f32.mrf.mxu0
    %v973 = vadd.f32 %v889, %v972
    %v974 = vpop.f32.mrf.mxu0
    %975 = vdwg.mxu0
    %976 = vrot.lane.b32.xlu0 %v243, 110
    %v977 = vpop.permute.xlu0 %976
    %978 = vrot.lane.b32.xlu0 %v248, 110
    %v979 = vpop.permute.xlu0 %978
    %980 = vrot.lane.b32.xlu0 %v243, 104
    %v981 = vpop.permute.xlu0 %980
    %982 = vrot.lane.b32.xlu0 %v248, 104
    %v983 = vpop.permute.xlu0 %982
    %v984 = vsel %vm259, %v977, 0
    %v986 = vsel %vm259, %v979, 0
    %v988 = vsel %vm259, %v981, 0
    %v990 = vsel %vm259, %v983, 0
    %992 = vmatprep.subr.mxu0 0.0
    %993 = vmatpush1.xpose.msra.mxu0 0.0
    %994 = vmatprep.subr.mxu0 0.0
    %995 = vmatpush1.xpose.msra.mxu0 0.0
    %996 = vmatprep.subr.mxu0 0.0
    %997 = vmatpush1.xpose.msra.mxu0 0.0
    %998 = vmatprep.subr.mxu0 0.0
    %999 = vmatpush1.xpose.msra.mxu0 0.0
    %1000 = vmatprep.subr.mxu0 0.0
    %1001 = vmatpush1.xpose.msra.mxu0 0.0
    %1002 = vmatprep.subr.mxu0 0.0
    %1003 = vmatpush1.xpose.msra.mxu0 0.0
    %1004 = vmatprep.subr.mxu0 0.0
    %1005 = vmatpush1.xpose.msra.mxu0 0.0
    %1006 = vmatprep.subr.mxu0 0.0
    %1007 = vmatpush1.xpose.msra.mxu0 0.0
    %1008 = vmatprep.subr.mxu0 0.0
    %1009 = vmatpush1.xpose.msra.mxu0 0.0
    %1010 = vmatprep.subr.mxu0 0.0
    %1011 = vmatpush1.xpose.msra.mxu0 0.0
    %1012 = vmatprep.subr.mxu0 0.0
    %1013 = vmatpush1.xpose.msra.mxu0 0.0
    %1014 = vmatprep.subr.mxu0 0.0
    %1015 = vmatpush1.xpose.msra.mxu0 0.0
    %1016 = vmatprep.subr.mxu0 0.0
    %1017 = vmatpush1.xpose.msra.mxu0 0.0
    %1018 = vmatprep.subr.mxu0 0.0
    %1019 = vmatpush1.xpose.msra.mxu0 0.0
    %1020 = vmatprep.subr.mxu0 0.0
    %1021 = vmatpush1.xpose.msra.mxu0 %v990
    %1022 = vmatprep.subr.mxu0 0.0
    %1023 = vmatpush1.xpose.msra.mxu0 %v988
    %1024 = vmatprep.subr.mxu0 0.0
    %1025 = vmatpush2.xpose.msra.mxu0 0.0
    %1026 = vmatprep.subr.mxu0 0.0
    %1027 = vmatpush2.xpose.msra.mxu0 0.0
    %1028 = vmatprep.subr.mxu0 0.0
    %1029 = vmatpush2.xpose.msra.mxu0 0.0
    %1030 = vmatprep.subr.mxu0 0.0
    %1031 = vmatpush2.xpose.msra.mxu0 0.0
    %1032 = vmatprep.subr.mxu0 0.0
    %1033 = vmatpush2.xpose.msra.mxu0 0.0
    %1034 = vmatprep.subr.mxu0 0.0
    %1035 = vmatpush2.xpose.msra.mxu0 0.0
    %1036 = vmatprep.subr.mxu0 0.0
    %1037 = vmatpush2.xpose.msra.mxu0 0.0
    %1038 = vmatprep.subr.mxu0 0.0
    %1039 = vmatpush2.xpose.msra.mxu0 0.0
    %1040 = vmatprep.subr.mxu0 0.0
    %1041 = vmatpush2.xpose.msra.mxu0 0.0
    %1042 = vmatprep.subr.mxu0 0.0
    %1043 = vmatpush2.xpose.msra.mxu0 0.0
    %1044 = vmatprep.subr.mxu0 0.0
    %1045 = vmatpush2.xpose.msra.mxu0 0.0
    %1046 = vmatprep.subr.mxu0 0.0
    %1047 = vmatpush2.xpose.msra.mxu0 0.0
    %1048 = vmatprep.subr.mxu0 0.0
    %1049 = vmatpush2.xpose.msra.mxu0 0.0
    %1050 = vmatprep.subr.mxu0 0.0
    %1051 = vmatpush2.xpose.msra.mxu0 0.0
    %1052 = vmatprep.subr.mxu0 0.0
    %1053 = vmatpush2.xpose.msra.mxu0 0.0
    %1054 = vmatprep.subr.mxu0 0.0
    %1055 = vmatpush2.xpose.msra.mxu0 0.0
    %1056 = vmatprep.mubr.f32.mxu0 0.0
    %1057 = vmatmul.mubr.f32.gmra.mxu0 %v984
    %v1058 = vpop.f32.mrf.mxu0
    %v1059 = vadd.f32 0.0, %v1058
    %v1060 = vpop.f32.mrf.mxu0
    %1061 = vmatprep.mubr.f32.mxu0 0.0
    %1062 = vmatmul.mubr.f32.gmra.mxu0 %v986
    %v1063 = vpop.f32.mrf.mxu0
    %v1064 = vadd.f32 0.0, %v1063
    %v1065 = vpop.f32.mrf.mxu0
    %1066 = vdwg.mxu0
    %v1067 = vmul.f32 %v1059, 0.70710677
    %v1068 = vmul.f32 %v1064, 0.70710677
    %v1069 = vadd.f32 %v1067, %v119
    %v1070 = vadd.f32 %v1068, %v120
    %v1071 = vsel %vm347, %v1069, -inf
    %1072 = vmax.xlane.f32.xlu0 %v1071
    %v1073 = vpop.xlane.xlu0 %1072
    %v1074 = vsel %vm347, %v1070, -inf
    %1075 = vmax.xlane.f32.xlu0 %v1074
    %v1076 = vpop.xlane.xlu0 %1075
    %v1077 = vsub.f32 %v1069, %v1073
    %v1078 = vsub.f32 %v1070, %v1076
    %v1079 = vmul.f32 %v1077, 1.442695
    %v1080 = vpow.pop %v1079
    %v1081 = vmul.f32 %v1078, 1.442695
    %v1082 = vpow.pop %v1081
    %v1083 = vsel %vm347, %v1080, 0.0
    %1084 = vadd.xlane.f32.xlu0 %v1083
    %v1085 = vpop.xlane.xlu0 %1084
    %v1086 = vsel %vm347, %v1082, 0.0
    %1087 = vadd.xlane.f32.xlu0 %v1086
    %v1088 = vpop.xlane.xlu0 %1087
    %v1089 = vrcp.pop %v1085
    %v1090 = vmul.f32 %v1080, %v1089
    %v1091 = vrcp.pop %v1088
    %v1092 = vmul.f32 %v1082, %v1091
    %1093 = vrot.lane.b32.xlu0 %v243, 98
    %v1094 = vpop.permute.xlu0 %1093
    %1095 = vrot.lane.b32.xlu0 %v248, 98
    %v1096 = vpop.permute.xlu0 %1095
    %v1100 = vsel %vm347, %v1090, 0
    %v1103 = vsel %vm347, %v1092, 0
    %1105 = vmatprep.subr.mxu0 0.0
    %1106 = vmatpush1.msra.mxu0 0.0
    %1107 = vmatprep.subr.mxu0 0.0
    %1108 = vmatpush1.msra.mxu0 0.0
    %1109 = vmatprep.subr.mxu0 0.0
    %1110 = vmatpush1.msra.mxu0 0.0
    %1111 = vmatprep.subr.mxu0 0.0
    %1112 = vmatpush1.msra.mxu0 0.0
    %1113 = vmatprep.subr.mxu0 0.0
    %1114 = vmatpush1.msra.mxu0 0.0
    %1115 = vmatprep.subr.mxu0 0.0
    %1116 = vmatpush1.msra.mxu0 0.0
    %1117 = vmatprep.subr.mxu0 0.0
    %1118 = vmatpush1.msra.mxu0 0.0
    %1119 = vmatprep.subr.mxu0 0.0
    %1120 = vmatpush1.msra.mxu0 0.0
    %1121 = vmatprep.subr.mxu0 0.0
    %1122 = vmatpush1.msra.mxu0 0.0
    %1123 = vmatprep.subr.mxu0 0.0
    %1124 = vmatpush1.msra.mxu0 0.0
    %1125 = vmatprep.subr.mxu0 0.0
    %1126 = vmatpush1.msra.mxu0 0.0
    %1127 = vmatprep.subr.mxu0 0.0
    %1128 = vmatpush1.msra.mxu0 0.0
    %1129 = vmatprep.subr.mxu0 0.0
    %1130 = vmatpush1.msra.mxu0 0.0
    %1131 = vmatprep.subr.mxu0 0.0
    %1132 = vmatpush1.msra.mxu0 0.0
    %1133 = vmatprep.subr.mxu0 0.0
    %1134 = vmatpush1.msra.mxu0 %v1096
    %1135 = vmatprep.subr.mxu0 0.0
    %1136 = vmatpush1.msra.mxu0 %v1094
    %1137 = vmatprep.subr.mxu0 0.0
    %1138 = vmatpush2.msra.mxu0 0.0
    %1139 = vmatprep.subr.mxu0 0.0
    %1140 = vmatpush2.msra.mxu0 0.0
    %1141 = vmatprep.subr.mxu0 0.0
    %1142 = vmatpush2.msra.mxu0 0.0
    %1143 = vmatprep.subr.mxu0 0.0
    %1144 = vmatpush2.msra.mxu0 0.0
    %1145 = vmatprep.subr.mxu0 0.0
    %1146 = vmatpush2.msra.mxu0 0.0
    %1147 = vmatprep.subr.mxu0 0.0
    %1148 = vmatpush2.msra.mxu0 0.0
    %1149 = vmatprep.subr.mxu0 0.0
    %1150 = vmatpush2.msra.mxu0 0.0
    %1151 = vmatprep.subr.mxu0 0.0
    %1152 = vmatpush2.msra.mxu0 0.0
    %1153 = vmatprep.subr.mxu0 0.0
    %1154 = vmatpush2.msra.mxu0 0.0
    %1155 = vmatprep.subr.mxu0 0.0
    %1156 = vmatpush2.msra.mxu0 0.0
    %1157 = vmatprep.subr.mxu0 0.0
    %1158 = vmatpush2.msra.mxu0 0.0
    %1159 = vmatprep.subr.mxu0 0.0
    %1160 = vmatpush2.msra.mxu0 0.0
    %1161 = vmatprep.subr.mxu0 0.0
    %1162 = vmatpush2.msra.mxu0 0.0
    %1163 = vmatprep.subr.mxu0 0.0
    %1164 = vmatpush2.msra.mxu0 0.0
    %1165 = vmatprep.subr.mxu0 0.0
    %1166 = vmatpush2.msra.mxu0 0.0
    %1167 = vmatprep.subr.mxu0 0.0
    %1168 = vmatpush2.msra.mxu0 0.0
    %1169 = vmatprep.mubr.f32.mxu0 0.0
    %1170 = vmatmul.mubr.f32.gmra.mxu0 %v1100
    %v1171 = vpop.f32.mrf.mxu0
    %v1172 = vadd.f32 0.0, %v1171
    %v1173 = vpop.f32.mrf.mxu0
    %1174 = vmatprep.mubr.f32.mxu0 0.0
    %1175 = vmatmul.mubr.f32.gmra.mxu0 %v1103
    %v1176 = vpop.f32.mrf.mxu0
    %v1177 = vadd.f32 0.0, %v1176
    %v1178 = vpop.f32.mrf.mxu0
    %1179 = vdwg.mxu0
    %1180 = vrot.lane.b32.xlu0 %v243, 108
    %v1181 = vpop.permute.xlu0 %1180
    %1182 = vrot.lane.b32.xlu0 %v248, 108
    %v1183 = vpop.permute.xlu0 %1182
    %1184 = vrot.lane.b32.xlu0 %v243, 102
    %v1185 = vpop.permute.xlu0 %1184
    %1186 = vrot.lane.b32.xlu0 %v248, 102
    %v1187 = vpop.permute.xlu0 %1186
    %v1188 = vsel %vm259, %v1181, 0
    %v1190 = vsel %vm259, %v1183, 0
    %v1192 = vsel %vm259, %v1185, 0
    %v1194 = vsel %vm259, %v1187, 0
    %1196 = vmatprep.subr.mxu0 0.0
    %1197 = vmatpush1.xpose.msra.mxu0 0.0
    %1198 = vmatprep.subr.mxu0 0.0
    %1199 = vmatpush1.xpose.msra.mxu0 0.0
    %1200 = vmatprep.subr.mxu0 0.0
    %1201 = vmatpush1.xpose.msra.mxu0 0.0
    %1202 = vmatprep.subr.mxu0 0.0
    %1203 = vmatpush1.xpose.msra.mxu0 0.0
    %1204 = vmatprep.subr.mxu0 0.0
    %1205 = vmatpush1.xpose.msra.mxu0 0.0
    %1206 = vmatprep.subr.mxu0 0.0
    %1207 = vmatpush1.xpose.msra.mxu0 0.0
    %1208 = vmatprep.subr.mxu0 0.0
    %1209 = vmatpush1.xpose.msra.mxu0 0.0
    %1210 = vmatprep.subr.mxu0 0.0
    %1211 = vmatpush1.xpose.msra.mxu0 0.0
    %1212 = vmatprep.subr.mxu0 0.0
    %1213 = vmatpush1.xpose.msra.mxu0 0.0
    %1214 = vmatprep.subr.mxu0 0.0
    %1215 = vmatpush1.xpose.msra.mxu0 0.0
    %1216 = vmatprep.subr.mxu0 0.0
    %1217 = vmatpush1.xpose.msra.mxu0 0.0
    %1218 = vmatprep.subr.mxu0 0.0
    %1219 = vmatpush1.xpose.msra.mxu0 0.0
    %1220 = vmatprep.subr.mxu0 0.0
    %1221 = vmatpush1.xpose.msra.mxu0 0.0
    %1222 = vmatprep.subr.mxu0 0.0
    %1223 = vmatpush1.xpose.msra.mxu0 0.0
    %1224 = vmatprep.subr.mxu0 0.0
    %1225 = vmatpush1.xpose.msra.mxu0 %v1194
    %1226 = vmatprep.subr.mxu0 0.0
    %1227 = vmatpush1.xpose.msra.mxu0 %v1192
    %1228 = vmatprep.subr.mxu0 0.0
    %1229 = vmatpush2.xpose.msra.mxu0 0.0
    %1230 = vmatprep.subr.mxu0 0.0
    %1231 = vmatpush2.xpose.msra.mxu0 0.0
    %1232 = vmatprep.subr.mxu0 0.0
    %1233 = vmatpush2.xpose.msra.mxu0 0.0
    %1234 = vmatprep.subr.mxu0 0.0
    %1235 = vmatpush2.xpose.msra.mxu0 0.0
    %1236 = vmatprep.subr.mxu0 0.0
    %1237 = vmatpush2.xpose.msra.mxu0 0.0
    %1238 = vmatprep.subr.mxu0 0.0
    %1239 = vmatpush2.xpose.msra.mxu0 0.0
    %1240 = vmatprep.subr.mxu0 0.0
    %1241 = vmatpush2.xpose.msra.mxu0 0.0
    %1242 = vmatprep.subr.mxu0 0.0
    %1243 = vmatpush2.xpose.msra.mxu0 0.0
    %1244 = vmatprep.subr.mxu0 0.0
    %1245 = vmatpush2.xpose.msra.mxu0 0.0
    %1246 = vmatprep.subr.mxu0 0.0
    %1247 = vmatpush2.xpose.msra.mxu0 0.0
    %1248 = vmatprep.subr.mxu0 0.0
    %1249 = vmatpush2.xpose.msra.mxu0 0.0
    %1250 = vmatprep.subr.mxu0 0.0
    %1251 = vmatpush2.xpose.msra.mxu0 0.0
    %1252 = vmatprep.subr.mxu0 0.0
    %1253 = vmatpush2.xpose.msra.mxu0 0.0
    %1254 = vmatprep.subr.mxu0 0.0
    %1255 = vmatpush2.xpose.msra.mxu0 0.0
    %1256 = vmatprep.subr.mxu0 0.0
    %1257 = vmatpush2.xpose.msra.mxu0 0.0
    %1258 = vmatprep.subr.mxu0 0.0
    %1259 = vmatpush2.xpose.msra.mxu0 0.0
    %1260 = vmatprep.mubr.f32.mxu0 0.0
    %1261 = vmatmul.mubr.f32.gmra.mxu0 %v1188
    %v1262 = vpop.f32.mrf.mxu0
    %v1263 = vadd.f32 0.0, %v1262
    %v1264 = vpop.f32.mrf.mxu0
    %1265 = vmatprep.mubr.f32.mxu0 0.0
    %1266 = vmatmul.mubr.f32.gmra.mxu0 %v1190
    %v1267 = vpop.f32.mrf.mxu0
    %v1268 = vadd.f32 0.0, %v1267
    %v1269 = vpop.f32.mrf.mxu0
    %1270 = vdwg.mxu0
    %v1271 = vmul.f32 %v1263, 0.70710677
    %v1272 = vmul.f32 %v1268, 0.70710677
    %v1273 = vadd.f32 %v1271, %v119
    %v1274 = vadd.f32 %v1272, %v120
    %v1275 = vsel %vm347, %v1273, -inf
    %1276 = vmax.xlane.f32.xlu0 %v1275
    %v1277 = vpop.xlane.xlu0 %1276
    %v1278 = vsel %vm347, %v1274, -inf
    %1279 = vmax.xlane.f32.xlu0 %v1278
    %v1280 = vpop.xlane.xlu0 %1279
    %v1281 = vsub.f32 %v1273, %v1277
    %v1282 = vsub.f32 %v1274, %v1280
    %v1283 = vmul.f32 %v1281, 1.442695
    %v1284 = vpow.pop %v1283
    %v1285 = vmul.f32 %v1282, 1.442695
    %v1286 = vpow.pop %v1285
    %v1287 = vsel %vm347, %v1284, 0.0
    %1288 = vadd.xlane.f32.xlu0 %v1287
    %v1289 = vpop.xlane.xlu0 %1288
    %v1290 = vsel %vm347, %v1286, 0.0
    %1291 = vadd.xlane.f32.xlu0 %v1290
    %v1292 = vpop.xlane.xlu0 %1291
    %v1293 = vrcp.pop %v1289
    %v1294 = vmul.f32 %v1284, %v1293
    %v1295 = vrcp.pop %v1292
    %v1296 = vmul.f32 %v1286, %v1295
    %1297 = vrot.lane.b32.xlu0 %v243, 96
    %v1298 = vpop.permute.xlu0 %1297
    %1299 = vrot.lane.b32.xlu0 %v248, 96
    %v1300 = vpop.permute.xlu0 %1299
    %v1304 = vsel %vm347, %v1294, 0
    %v1307 = vsel %vm347, %v1296, 0
    %1309 = vmatprep.subr.mxu0 0.0
    %1310 = vmatpush1.msra.mxu0 0.0
    %1311 = vmatprep.subr.mxu0 0.0
    %1312 = vmatpush1.msra.mxu0 0.0
    %1313 = vmatprep.subr.mxu0 0.0
    %1314 = vmatpush1.msra.mxu0 0.0
    %1315 = vmatprep.subr.mxu0 0.0
    %1316 = vmatpush1.msra.mxu0 0.0
    %1317 = vmatprep.subr.mxu0 0.0
    %1318 = vmatpush1.msra.mxu0 0.0
    %1319 = vmatprep.subr.mxu0 0.0
    %1320 = vmatpush1.msra.mxu0 0.0
    %1321 = vmatprep.subr.mxu0 0.0
    %1322 = vmatpush1.msra.mxu0 0.0
    %1323 = vmatprep.subr.mxu0 0.0
    %1324 = vmatpush1.msra.mxu0 0.0
    %1325 = vmatprep.subr.mxu0 0.0
    %1326 = vmatpush1.msra.mxu0 0.0
    %1327 = vmatprep.subr.mxu0 0.0
    %1328 = vmatpush1.msra.mxu0 0.0
    %1329 = vmatprep.subr.mxu0 0.0
    %1330 = vmatpush1.msra.mxu0 0.0
    %1331 = vmatprep.subr.mxu0 0.0
    %1332 = vmatpush1.msra.mxu0 0.0
    %1333 = vmatprep.subr.mxu0 0.0
    %1334 = vmatpush1.msra.mxu0 0.0
    %1335 = vmatprep.subr.mxu0 0.0
    %1336 = vmatpush1.msra.mxu0 0.0
    %1337 = vmatprep.subr.mxu0 0.0
    %1338 = vmatpush1.msra.mxu0 %v1300
    %1339 = vmatprep.subr.mxu0 0.0
    %1340 = vmatpush1.msra.mxu0 %v1298
    %1341 = vmatprep.subr.mxu0 0.0
    %1342 = vmatpush2.msra.mxu0 0.0
    %1343 = vmatprep.subr.mxu0 0.0
    %1344 = vmatpush2.msra.mxu0 0.0
    %1345 = vmatprep.subr.mxu0 0.0
    %1346 = vmatpush2.msra.mxu0 0.0
    %1347 = vmatprep.subr.mxu0 0.0
    %1348 = vmatpush2.msra.mxu0 0.0
    %1349 = vmatprep.subr.mxu0 0.0
    %1350 = vmatpush2.msra.mxu0 0.0
    %1351 = vmatprep.subr.mxu0 0.0
    %1352 = vmatpush2.msra.mxu0 0.0
    %1353 = vmatprep.subr.mxu0 0.0
    %1354 = vmatpush2.msra.mxu0 0.0
    %1355 = vmatprep.subr.mxu0 0.0
    %1356 = vmatpush2.msra.mxu0 0.0
    %1357 = vmatprep.subr.mxu0 0.0
    %1358 = vmatpush2.msra.mxu0 0.0
    %1359 = vmatprep.subr.mxu0 0.0
    %1360 = vmatpush2.msra.mxu0 0.0
    %1361 = vmatprep.subr.mxu0 0.0
    %1362 = vmatpush2.msra.mxu0 0.0
    %1363 = vmatprep.subr.mxu0 0.0
    %1364 = vmatpush2.msra.mxu0 0.0
    %1365 = vmatprep.subr.mxu0 0.0
    %1366 = vmatpush2.msra.mxu0 0.0
    %1367 = vmatprep.subr.mxu0 0.0
    %1368 = vmatpush2.msra.mxu0 0.0
    %1369 = vmatprep.subr.mxu0 0.0
    %1370 = vmatpush2.msra.mxu0 0.0
    %1371 = vmatprep.subr.mxu0 0.0
    %1372 = vmatpush2.msra.mxu0 0.0
    %1373 = vmatprep.mubr.f32.mxu0 0.0
    %1374 = vmatmul.mubr.f32.gmra.mxu0 %v1304
    %v1375 = vpop.f32.mrf.mxu0
    %v1376 = vadd.f32 0.0, %v1375
    %v1377 = vpop.f32.mrf.mxu0
    %1378 = vmatprep.mubr.f32.mxu0 0.0
    %1379 = vmatmul.mubr.f32.gmra.mxu0 %v1307
    %v1380 = vpop.f32.mrf.mxu0
    %v1381 = vadd.f32 0.0, %v1380
    %v1382 = vpop.f32.mrf.mxu0
    %1383 = vdwg.mxu0
    %1384 = vrot.lane.b32.xlu0 %v243, 106
    %v1385 = vpop.permute.xlu0 %1384
    %1386 = vrot.lane.b32.xlu0 %v248, 106
    %v1387 = vpop.permute.xlu0 %1386
    %1388 = vrot.lane.b32.xlu0 %v243, 100
    %v1389 = vpop.permute.xlu0 %1388
    %1390 = vrot.lane.b32.xlu0 %v248, 100
    %v1391 = vpop.permute.xlu0 %1390
    %v1392 = vsel %vm259, %v1385, 0
    %v1394 = vsel %vm259, %v1387, 0
    %v1396 = vsel %vm259, %v1389, 0
    %v1398 = vsel %vm259, %v1391, 0
    %1400 = vmatprep.subr.mxu0 0.0
    %1401 = vmatpush1.xpose.msra.mxu0 0.0
    %1402 = vmatprep.subr.mxu0 0.0
    %1403 = vmatpush1.xpose.msra.mxu0 0.0
    %1404 = vmatprep.subr.mxu0 0.0
    %1405 = vmatpush1.xpose.msra.mxu0 0.0
    %1406 = vmatprep.subr.mxu0 0.0
    %1407 = vmatpush1.xpose.msra.mxu0 0.0
    %1408 = vmatprep.subr.mxu0 0.0
    %1409 = vmatpush1.xpose.msra.mxu0 0.0
    %1410 = vmatprep.subr.mxu0 0.0
    %1411 = vmatpush1.xpose.msra.mxu0 0.0
    %1412 = vmatprep.subr.mxu0 0.0
    %1413 = vmatpush1.xpose.msra.mxu0 0.0
    %1414 = vmatprep.subr.mxu0 0.0
    %1415 = vmatpush1.xpose.msra.mxu0 0.0
    %1416 = vmatprep.subr.mxu0 0.0
    %1417 = vmatpush1.xpose.msra.mxu0 0.0
    %1418 = vmatprep.subr.mxu0 0.0
    %1419 = vmatpush1.xpose.msra.mxu0 0.0
    %1420 = vmatprep.subr.mxu0 0.0
    %1421 = vmatpush1.xpose.msra.mxu0 0.0
    %1422 = vmatprep.subr.mxu0 0.0
    %1423 = vmatpush1.xpose.msra.mxu0 0.0
    %1424 = vmatprep.subr.mxu0 0.0
    %1425 = vmatpush1.xpose.msra.mxu0 0.0
    %1426 = vmatprep.subr.mxu0 0.0
    %1427 = vmatpush1.xpose.msra.mxu0 0.0
    %1428 = vmatprep.subr.mxu0 0.0
    %1429 = vmatpush1.xpose.msra.mxu0 %v1398
    %1430 = vmatprep.subr.mxu0 0.0
    %1431 = vmatpush1.xpose.msra.mxu0 %v1396
    %1432 = vmatprep.subr.mxu0 0.0
    %1433 = vmatpush2.xpose.msra.mxu0 0.0
    %1434 = vmatprep.subr.mxu0 0.0
    %1435 = vmatpush2.xpose.msra.mxu0 0.0
    %1436 = vmatprep.subr.mxu0 0.0
    %1437 = vmatpush2.xpose.msra.mxu0 0.0
    %1438 = vmatprep.subr.mxu0 0.0
    %1439 = vmatpush2.xpose.msra.mxu0 0.0
    %1440 = vmatprep.subr.mxu0 0.0
    %1441 = vmatpush2.xpose.msra.mxu0 0.0
    %1442 = vmatprep.subr.mxu0 0.0
    %1443 = vmatpush2.xpose.msra.mxu0 0.0
    %1444 = vmatprep.subr.mxu0 0.0
    %1445 = vmatpush2.xpose.msra.mxu0 0.0
    %1446 = vmatprep.subr.mxu0 0.0
    %1447 = vmatpush2.xpose.msra.mxu0 0.0
    %1448 = vmatprep.subr.mxu0 0.0
    %1449 = vmatpush2.xpose.msra.mxu0 0.0
    %1450 = vmatprep.subr.mxu0 0.0
    %1451 = vmatpush2.xpose.msra.mxu0 0.0
    %1452 = vmatprep.subr.mxu0 0.0
    %1453 = vmatpush2.xpose.msra.mxu0 0.0
    %1454 = vmatprep.subr.mxu0 0.0
    %1455 = vmatpush2.xpose.msra.mxu0 0.0
    %1456 = vmatprep.subr.mxu0 0.0
    %1457 = vmatpush2.xpose.msra.mxu0 0.0
    %1458 = vmatprep.subr.mxu0 0.0
    %1459 = vmatpush2.xpose.msra.mxu0 0.0
    %1460 = vmatprep.subr.mxu0 0.0
    %1461 = vmatpush2.xpose.msra.mxu0 0.0
    %1462 = vmatprep.subr.mxu0 0.0
    %1463 = vmatpush2.xpose.msra.mxu0 0.0
    %1464 = vmatprep.mubr.f32.mxu0 0.0
    %1465 = vmatmul.mubr.f32.gmra.mxu0 %v1392
    %v1466 = vpop.f32.mrf.mxu0
    %v1467 = vadd.f32 0.0, %v1466
    %v1468 = vpop.f32.mrf.mxu0
    %1469 = vmatprep.mubr.f32.mxu0 0.0
    %1470 = vmatmul.mubr.f32.gmra.mxu0 %v1394
    %v1471 = vpop.f32.mrf.mxu0
    %v1472 = vadd.f32 0.0, %v1471
    %v1473 = vpop.f32.mrf.mxu0
    %1474 = vdwg.mxu0
    %v1475 = vmul.f32 %v1467, 0.70710677
    %v1476 = vmul.f32 %v1472, 0.70710677
    %v1477 = vadd.f32 %v1475, %v119
    %v1478 = vadd.f32 %v1476, %v120
    %v1479 = vsel %vm347, %v1477, -inf
    %1480 = vmax.xlane.f32.xlu0 %v1479
    %v1481 = vpop.xlane.xlu0 %1480
    %v1482 = vsel %vm347, %v1478, -inf
    %1483 = vmax.xlane.f32.xlu0 %v1482
    %v1484 = vpop.xlane.xlu0 %1483
    %v1485 = vsub.f32 %v1477, %v1481
    %v1486 = vsub.f32 %v1478, %v1484
    %v1487 = vmul.f32 %v1485, 1.442695
    %v1488 = vpow.pop %v1487
    %v1489 = vmul.f32 %v1486, 1.442695
    %v1490 = vpow.pop %v1489
    %v1491 = vsel %vm347, %v1488, 0.0
    %1492 = vadd.xlane.f32.xlu0 %v1491
    %v1493 = vpop.xlane.xlu0 %1492
    %v1494 = vsel %vm347, %v1490, 0.0
    %1495 = vadd.xlane.f32.xlu0 %v1494
    %v1496 = vpop.xlane.xlu0 %1495
    %v1497 = vrcp.pop %v1493
    %v1498 = vmul.f32 %v1488, %v1497
    %v1499 = vrcp.pop %v1496
    %v1500 = vmul.f32 %v1490, %v1499
    %1501 = vrot.lane.b32.xlu0 %v243, 94
    %v1502 = vpop.permute.xlu0 %1501
    %1503 = vrot.lane.b32.xlu0 %v248, 94
    %v1504 = vpop.permute.xlu0 %1503
    %v1508 = vsel %vm347, %v1498, 0
    %v1511 = vsel %vm347, %v1500, 0
    %1513 = vmatprep.subr.mxu0 0.0
    %1514 = vmatpush1.msra.mxu0 0.0
    %1515 = vmatprep.subr.mxu0 0.0
    %1516 = vmatpush1.msra.mxu0 0.0
    %1517 = vmatprep.subr.mxu0 0.0
    %1518 = vmatpush1.msra.mxu0 0.0
    %1519 = vmatprep.subr.mxu0 0.0
    %1520 = vmatpush1.msra.mxu0 0.0
    %1521 = vmatprep.subr.mxu0 0.0
    %1522 = vmatpush1.msra.mxu0 0.0
    %1523 = vmatprep.subr.mxu0 0.0
    %1524 = vmatpush1.msra.mxu0 0.0
    %1525 = vmatprep.subr.mxu0 0.0
    %1526 = vmatpush1.msra.mxu0 0.0
    %1527 = vmatprep.subr.mxu0 0.0
    %1528 = vmatpush1.msra.mxu0 0.0
    %1529 = vmatprep.subr.mxu0 0.0
    %1530 = vmatpush1.msra.mxu0 0.0
    %1531 = vmatprep.subr.mxu0 0.0
    %1532 = vmatpush1.msra.mxu0 0.0
    %1533 = vmatprep.subr.mxu0 0.0
    %1534 = vmatpush1.msra.mxu0 0.0
    %1535 = vmatprep.subr.mxu0 0.0
    %1536 = vmatpush1.msra.mxu0 0.0
    %1537 = vmatprep.subr.mxu0 0.0
    %1538 = vmatpush1.msra.mxu0 0.0
    %1539 = vmatprep.subr.mxu0 0.0
    %1540 = vmatpush1.msra.mxu0 0.0
    %1541 = vmatprep.subr.mxu0 0.0
    %1542 = vmatpush1.msra.mxu0 %v1504
    %1543 = vmatprep.subr.mxu0 0.0
    %1544 = vmatpush1.msra.mxu0 %v1502
    %1545 = vmatprep.subr.mxu0 0.0
    %1546 = vmatpush2.msra.mxu0 0.0
    %1547 = vmatprep.subr.mxu0 0.0
    %1548 = vmatpush2.msra.mxu0 0.0
    %1549 = vmatprep.subr.mxu0 0.0
    %1550 = vmatpush2.msra.mxu0 0.0
    %1551 = vmatprep.subr.mxu0 0.0
    %1552 = vmatpush2.msra.mxu0 0.0
    %1553 = vmatprep.subr.mxu0 0.0
    %1554 = vmatpush2.msra.mxu0 0.0
    %1555 = vmatprep.subr.mxu0 0.0
    %1556 = vmatpush2.msra.mxu0 0.0
    %1557 = vmatprep.subr.mxu0 0.0
    %1558 = vmatpush2.msra.mxu0 0.0
    %1559 = vmatprep.subr.mxu0 0.0
    %1560 = vmatpush2.msra.mxu0 0.0
    %1561 = vmatprep.subr.mxu0 0.0
    %1562 = vmatpush2.msra.mxu0 0.0
    %1563 = vmatprep.subr.mxu0 0.0
    %1564 = vmatpush2.msra.mxu0 0.0
    %1565 = vmatprep.subr.mxu0 0.0
    %1566 = vmatpush2.msra.mxu0 0.0
    %1567 = vmatprep.subr.mxu0 0.0
    %1568 = vmatpush2.msra.mxu0 0.0
    %1569 = vmatprep.subr.mxu0 0.0
    %1570 = vmatpush2.msra.mxu0 0.0
    %1571 = vmatprep.subr.mxu0 0.0
    %1572 = vmatpush2.msra.mxu0 0.0
    %1573 = vmatprep.subr.mxu0 0.0
    %1574 = vmatpush2.msra.mxu0 0.0
    %1575 = vmatprep.subr.mxu0 0.0
    %1576 = vmatpush2.msra.mxu0 0.0
    %1577 = vmatprep.mubr.f32.mxu0 0.0
    %1578 = vmatmul.mubr.f32.gmra.mxu0 %v1508
    %v1579 = vpop.f32.mrf.mxu0
    %v1580 = vadd.f32 0.0, %v1579
    %v1581 = vpop.f32.mrf.mxu0
    %1582 = vmatprep.mubr.f32.mxu0 0.0
    %1583 = vmatmul.mubr.f32.gmra.mxu0 %v1511
    %v1584 = vpop.f32.mrf.mxu0
    %v1585 = vadd.f32 0.0, %v1584
    %v1586 = vpop.f32.mrf.mxu0
    %1587 = vdwg.mxu0
    %1590 = vrot.lane.b32.xlu0 %v1376, 2
    %v1591 = vpop.permute.xlu0 %1590
    %1592 = vrot.lane.b32.xlu0 %v1381, 2
    %v1593 = vpop.permute.xlu0 %1592
    %1598 = vrot.lane.b32.xlu0 %v1580, 4
    %v1599 = vpop.permute.xlu0 %1598
    %1600 = vrot.lane.b32.xlu0 %v1585, 4
    %v1601 = vpop.permute.xlu0 %1600
    %v1604 = vsel %vm259, %v1172, %v1591
    %v1605 = vsel %vm259, %v1177, %v1593
    %v1606 = vsel %vm883, %v1604, %v1599
    %v1607 = vsel %vm883, %v1605, %v1601
    %1608 = vrot.lane.b32.xlu0 %v251, 122
    %v1609 = vpop.permute.xlu0 %1608
    %1611 = vrot.lane.b32.xlu0 %v889, 122
    %v1612 = vpop.permute.xlu0 %1611
    %v1615 = vsel %vm890, %v1606, 0
    %v1618 = vsel %vm890, %v1607, 0
    %v1620 = vsel %vm897, %v1609, 0
    %1622 = vmatprep.subr.mxu0 0.0
    %1623 = vmatpush1.msra.mxu0 0.0
    %1624 = vmatprep.subr.mxu0 0.0
    %1625 = vmatpush1.msra.mxu0 0.0
    %1626 = vmatprep.subr.mxu0 0.0
    %1627 = vmatpush1.msra.mxu0 0.0
    %1628 = vmatprep.subr.mxu0 0.0
    %1629 = vmatpush1.msra.mxu0 0.0
    %1630 = vmatprep.subr.mxu0 0.0
    %1631 = vmatpush1.msra.mxu0 0.0
    %1632 = vmatprep.subr.mxu0 0.0
    %1633 = vmatpush1.msra.mxu0 0.0
    %1634 = vmatprep.subr.mxu0 0.0
    %1635 = vmatpush1.msra.mxu0 0.0
    %1636 = vmatprep.subr.mxu0 0.0
    %1637 = vmatpush1.msra.mxu0 0.0
    %1638 = vmatprep.subr.mxu0 0.0
    %1639 = vmatpush1.msra.mxu0 0.0
    %1640 = vmatprep.subr.mxu0 0.0
    %1641 = vmatpush1.msra.mxu0 0.0
    %1642 = vmatprep.subr.mxu0 0.0
    %1643 = vmatpush1.msra.mxu0 0.0
    %1644 = vmatprep.subr.mxu0 0.0
    %1645 = vmatpush1.msra.mxu0 0.0
    %1646 = vmatprep.subr.mxu0 0.0
    %1647 = vmatpush1.msra.mxu0 0.0
    %1648 = vmatprep.subr.mxu0 0.0
    %1649 = vmatpush1.msra.mxu0 0.0
    %1650 = vmatprep.subr.mxu0 0.0
    %1651 = vmatpush1.msra.mxu0 0.0
    %1652 = vmatprep.subr.mxu0 0.0
    %1653 = vmatpush1.msra.mxu0 %v1620
    %1654 = vmatprep.subr.mxu0 0.0
    %1655 = vmatpush2.msra.mxu0 0.0
    %1656 = vmatprep.subr.mxu0 0.0
    %1657 = vmatpush2.msra.mxu0 0.0
    %1658 = vmatprep.subr.mxu0 0.0
    %1659 = vmatpush2.msra.mxu0 0.0
    %1660 = vmatprep.subr.mxu0 0.0
    %1661 = vmatpush2.msra.mxu0 0.0
    %1662 = vmatprep.subr.mxu0 0.0
    %1663 = vmatpush2.msra.mxu0 0.0
    %1664 = vmatprep.subr.mxu0 0.0
    %1665 = vmatpush2.msra.mxu0 0.0
    %1666 = vmatprep.subr.mxu0 0.0
    %1667 = vmatpush2.msra.mxu0 0.0
    %1668 = vmatprep.subr.mxu0 0.0
    %1669 = vmatpush2.msra.mxu0 0.0
    %1670 = vmatprep.subr.mxu0 0.0
    %1671 = vmatpush2.msra.mxu0 0.0
    %1672 = vmatprep.subr.mxu0 0.0
    %1673 = vmatpush2.msra.mxu0 0.0
    %1674 = vmatprep.subr.mxu0 0.0
    %1675 = vmatpush2.msra.mxu0 0.0
    %1676 = vmatprep.subr.mxu0 0.0
    %1677 = vmatpush2.msra.mxu0 0.0
    %1678 = vmatprep.subr.mxu0 0.0
    %1679 = vmatpush2.msra.mxu0 0.0
    %1680 = vmatprep.subr.mxu0 0.0
    %1681 = vmatpush2.msra.mxu0 0.0
    %1682 = vmatprep.subr.mxu0 0.0
    %1683 = vmatpush2.msra.mxu0 0.0
    %1684 = vmatprep.subr.mxu0 0.0
    %1685 = vmatpush2.msra.mxu0 0.0
    %1686 = vmatprep.mubr.f32.mxu0 0.0
    %1687 = vmatmul.mubr.f32.gmra.mxu0 %v1615
    %v1688 = vpop.f32.mrf.mxu0
    %v1689 = vadd.f32 %v1612, %v1688
    %v1690 = vpop.f32.mrf.mxu0
    %1691 = vmatprep.mubr.f32.mxu0 0.0
    %1692 = vmatmul.mubr.f32.gmra.mxu0 %v1618
    %v1693 = vpop.f32.mrf.mxu0
    %v1694 = vadd.f32 %v1612, %v1693
    %v1695 = vpop.f32.mrf.mxu0
    %1696 = vdwg.mxu0
    %v1697 = vld [vmem:[%s4 + $0x6b] sm:$0xff]
    %v1698 = vld [vmem:[%s4 + $0x73] sm:$0xff]
    %1699 = vrot.lane.b32.xlu0 %v160, 111
    %v1700 = vpop.permute.xlu0 %1699
    %1701 = vrot.lane.b32.xlu0 %v161, 111
    %v1702 = vpop.permute.xlu0 %1701
    %1705 = vrot.lane.b32.xlu0 %v160, 123
    %v1706 = vpop.permute.xlu0 %1705
    %1707 = vrot.lane.b32.xlu0 %v161, 123
    %v1708 = vpop.permute.xlu0 %1707
    %vm1711 = vcmask 7168
    %v1712 = vsel %vm1711, %v1700, %v1706
    %v1713 = vsel %vm1711, %v1702, %v1708
    %v1715 = vrot.slane %v1713, 7
    %vm1718 = vcmask 1040384
    %v1719 = vrot.slane %v1712, 7
    %v1720 = vsel %vm1718, %v1719, %v1715
    %v1723 = vsel %vm1718, %v1715, %v1719
    %v1724 = vmul.f32 %v1723, %v1697
    %v1725 = vmul.f32 %v1720, %v1698
    %v1726 = vld [vmem:[%s4 + $0x9b] sm:$0xff]
    %v1727 = vld [vmem:[%s4 + $0xa3] sm:$0xff]
    %v1728 = vmul.f32 %v1712, %v1726
    %v1729 = vmul.f32 %v1713, %v1727
    %v1730 = vadd.f32 %v1724, %v1728
    %v1731 = vadd.f32 %v1725, %v1729
    %v1732 = vld [vmem:[%s4 + $0x7b] sm:$0xff]
    %v1733 = vld [vmem:[%s4 + $0x83] sm:$0xff]
    %1736 = vrot.lane.b32.xlu0 %v1732, 6
    %v1737 = vpop.permute.xlu0 %1736
    %1738 = vrot.lane.b32.xlu0 %v1733, 6
    %v1739 = vpop.permute.xlu0 %1738
    %v1742 = vmul.f32 %v160, %v1737
    %v1743 = vmul.f32 %v161, %v1739
    %1746 = vrot.lane.b32.xlu0 %v1742, 122
    %v1747 = vpop.permute.xlu0 %1746
    %1748 = vrot.lane.b32.xlu0 %v1743, 122
    %v1749 = vpop.permute.xlu0 %1748
    %v1752 = vadd.f32 %v1730, %v1747
    %v1753 = vadd.f32 %v1731, %v1749
    %v1754 = vld [vmem:[%s4 + $0x8b] sm:$0xff]
    %v1755 = vld [vmem:[%s4 + $0x93] sm:$0xff]
    %1756 = vrot.lane.b32.xlu0 %v160, 121
    %v1757 = vpop.permute.xlu0 %1756
    %1758 = vrot.lane.b32.xlu0 %v161, 121
    %v1759 = vpop.permute.xlu0 %1758
    %1762 = vrot.lane.b32.xlu0 %v160, 5
    %v1763 = vpop.permute.xlu0 %1762
    %1764 = vrot.lane.b32.xlu0 %v161, 5
    %v1765 = vpop.permute.xlu0 %1764
    %vm1768 = vcmask 89088
    %v1769 = vsel %vm1768, %v1757, %v1763
    %v1770 = vsel %vm1768, %v1759, %v1765
    %v1771 = vmul.f32 %v1769, %v1754
    %v1772 = vmul.f32 %v1770, %v1755
    %v1773 = vld [vmem:[%s4 + $0xbb] sm:$0xff]
    %v1774 = vld [vmem:[%s4 + $0xc3] sm:$0xff]
    %vm1777 = vcmask 1046528
    %v1778 = vrot.slane %v1769, 1
    %v1779 = vrot.slane %v1770, 1
    %v1780 = vsel %vm1777, %v1778, %v1779
    %v1784 = vsel %vm1777, %v1779, %v1778
    %v1785 = vmul.f32 %v1780, %v1773
    %v1786 = vmul.f32 %v1784, %v1774
    %v1787 = vadd.f32 %v1771, %v1785
    %v1788 = vadd.f32 %v1772, %v1786
    %v1789 = vadd.f32 %v1752, %v1787
    %v1790 = vadd.f32 %v1753, %v1788
    %1793 = vrot.lane.b32.xlu0 %v1789, 6
    %v1794 = vpop.permute.xlu0 %1793
    %1795 = vrot.lane.b32.xlu0 %v1790, 6
    %v1796 = vpop.permute.xlu0 %1795
    %1801 = vrot.lane.b32.xlu0 %v1689, 18
    %v1802 = vpop.permute.xlu0 %1801
    %1803 = vrot.lane.b32.xlu0 %v1694, 18
    %v1804 = vpop.permute.xlu0 %1803
    %v1807 = vsel %vm890, %v968, %v1794
    %v1808 = vsel %vm890, %v973, %v1796
    %vm1809 = vcmask 146432
    %v1810 = vsel %vm1809, %v1807, %v1802
    %v1811 = vsel %vm1809, %v1808, %v1804
    %v1812 = vadd.f32 %v1810, %v111
    %v1813 = vadd.f32 %v1811, %v116
    %v1814 = vld [vmem:[%s4 + $0x1] sm:$0x1]
    %v1815 = vsel %vm122, %v1812, 0.0
    %1816 = vadd.xlane.f32.xlu0 %v1815
    %v1817 = vpop.xlane.xlu0 %1816
    %v1818 = vsel %vm122, %v1813, 0.0
    %1819 = vadd.xlane.f32.xlu0 %v1818
    %v1820 = vpop.xlane.xlu0 %1819
    %v1821 = vmul.f32 %v1817, %v129
    %v1822 = vmul.f32 %v1820, %v129
    %v1823 = vsub.f32 %v1812, %v1821
    %v1824 = vsub.f32 %v1813, %v1822
    %v1825 = vmul.f32 %v1823, %v1823
    %v1826 = vmul.f32 %v1824, %v1824
    %v1827 = vsel %vm122, %v1825, 0.0
    %1828 = vadd.xlane.f32.xlu0 %v1827
    %v1829 = vpop.xlane.xlu0 %1828
    %v1830 = vsel %vm122, %v1826, 0.0
    %1831 = vadd.xlane.f32.xlu0 %v1830
    %v1832 = vpop.xlane.xlu0 %1831
    %v1833 = vmul.f32 %v1829, %v129
    %v1834 = vmul.f32 %v1832, %v129
    %v1835 = vadd.f32 %v1833, 1e-06
    %v1836 = vadd.f32 %v1834, 1e-06
    %v1837 = vrsqrt.pop %v1835
    %v1838 = vrsqrt.pop %v1836
    %v1839 = vmul.f32 %v1823, %v1837
    %v1840 = vmul.f32 %v1824, %v1838
    %v1841 = vlaneseq
    %v1842 = vshrl.u32 %v1841, 7
    %v1843 = vsub.s32 0, %v1842
    %v1844 = vrot.slane %v1814, %v1843
    %v1845 = vmul.f32 %v1839, %v1844
    %v1846 = vmul.f32 %v1840, %v1844
    %1848 = vrot.lane.b32.xlu0 %v1844, 104
    %v1849 = vpop.permute.xlu0 %1848
    %v1851 = vadd.f32 %v1845, %v1849
    %v1852 = vadd.f32 %v1846, %v1849
    %v1853 = vld [vmem:[%s4 + $0x1d] sm:$0xff]
    %v1854 = vld [vmem:[%s4 + $0x25] sm:$0xff]
    %v1855 = vld [vmem:[%s4 + $0x2d] sm:$0xff]
    %v1856 = vld [vmem:[%s4 + $0x4] sm:$0x1]
    %v1857 = vlaneseq
    %v1858 = vshrl.u32 %v1857, 7
    %v1859 = vsub.s32 0, %v1858
    %v1860 = vrot.slane %v1856, %v1859
    %v1862 = vsel %vm122, %v1851, 0
    %v1865 = vsel %vm122, %v1852, 0
    %1867 = vmatprep.subr.mxu0 0.0
    %1868 = vmatpush1.msra.mxu0 0.0
    %1869 = vmatprep.subr.mxu0 0.0
    %1870 = vmatpush1.msra.mxu0 0.0
    %1871 = vmatprep.subr.mxu0 0.0
    %1872 = vmatpush1.msra.mxu0 0.0
    %1873 = vmatprep.subr.mxu0 0.0
    %1874 = vmatpush1.msra.mxu0 0.0
    %1875 = vmatprep.subr.mxu0 0.0
    %1876 = vmatpush1.msra.mxu0 0.0
    %1877 = vmatprep.subr.mxu0 0.0
    %1878 = vmatpush1.msra.mxu0 0.0
    %1879 = vmatprep.subr.mxu0 0.0
    %1880 = vmatpush1.msra.mxu0 0.0
    %1881 = vmatprep.subr.mxu0 0.0
    %1882 = vmatpush1.msra.mxu0 0.0
    %1883 = vmatprep.subr.mxu0 0.0
    %1884 = vmatpush1.msra.mxu0 0.0
    %1885 = vmatprep.subr.mxu0 0.0
    %1886 = vmatpush1.msra.mxu0 0.0
    %1887 = vmatprep.subr.mxu0 0.0
    %1888 = vmatpush1.msra.mxu0 0.0
    %1889 = vmatprep.subr.mxu0 0.0
    %1890 = vmatpush1.msra.mxu0 0.0
    %1891 = vmatprep.subr.mxu0 0.0
    %1892 = vmatpush1.msra.mxu0 0.0
    %1893 = vmatprep.subr.mxu0 0.0
    %1894 = vmatpush1.msra.mxu0 %v1855
    %1895 = vmatprep.subr.mxu0 0.0
    %1896 = vmatpush1.msra.mxu0 %v1854
    %1897 = vmatprep.subr.mxu0 0.0
    %1898 = vmatpush1.msra.mxu0 %v1853
    %1899 = vmatprep.subr.mxu0 0.0
    %1900 = vmatpush2.msra.mxu0 0.0
    %1901 = vmatprep.subr.mxu0 0.0
    %1902 = vmatpush2.msra.mxu0 0.0
    %1903 = vmatprep.subr.mxu0 0.0
    %1904 = vmatpush2.msra.mxu0 0.0
    %1905 = vmatprep.subr.mxu0 0.0
    %1906 = vmatpush2.msra.mxu0 0.0
    %1907 = vmatprep.subr.mxu0 0.0
    %1908 = vmatpush2.msra.mxu0 0.0
    %1909 = vmatprep.subr.mxu0 0.0
    %1910 = vmatpush2.msra.mxu0 0.0
    %1911 = vmatprep.subr.mxu0 0.0
    %1912 = vmatpush2.msra.mxu0 0.0
    %1913 = vmatprep.subr.mxu0 0.0
    %1914 = vmatpush2.msra.mxu0 0.0
    %1915 = vmatprep.subr.mxu0 0.0
    %1916 = vmatpush2.msra.mxu0 0.0
    %1917 = vmatprep.subr.mxu0 0.0
    %1918 = vmatpush2.msra.mxu0 0.0
    %1919 = vmatprep.subr.mxu0 0.0
    %1920 = vmatpush2.msra.mxu0 0.0
    %1921 = vmatprep.subr.mxu0 0.0
    %1922 = vmatpush2.msra.mxu0 0.0
    %1923 = vmatprep.subr.mxu0 0.0
    %1924 = vmatpush2.msra.mxu0 0.0
    %1925 = vmatprep.subr.mxu0 0.0
    %1926 = vmatpush2.msra.mxu0 0.0
    %1927 = vmatprep.subr.mxu0 0.0
    %1928 = vmatpush2.msra.mxu0 0.0
    %1929 = vmatprep.subr.mxu0 0.0
    %1930 = vmatpush2.msra.mxu0 0.0
    %1931 = vmatprep.mubr.f32.mxu0 0.0
    %1932 = vmatmul.mubr.f32.gmra.mxu0 %v1862
    %v1933 = vpop.f32.mrf.mxu0
    %v1934 = vadd.f32 %v1860, %v1933
    %v1935 = vpop.f32.mrf.mxu0
    %1936 = vmatprep.mubr.f32.mxu0 0.0
    %1937 = vmatmul.mubr.f32.gmra.mxu0 %v1865
    %v1938 = vpop.f32.mrf.mxu0
    %v1939 = vadd.f32 %v1860, %v1938
    %v1940 = vpop.f32.mrf.mxu0
    %1941 = vdwg.mxu0
    %v1942 = vxor.u32 %v1934, 2147483648
    %v1943 = vxor.u32 %v1939, 2147483648
    %v1944 = vmul.f32 %v1942, 1.442695
    %v1945 = vpow.pop %v1944
    %v1946 = vmul.f32 %v1943, 1.442695
    %v1947 = vpow.pop %v1946
    %v1948 = vadd.f32 %v1945, 1.0
    %v1949 = vadd.f32 %v1947, 1.0
    %v1950 = vrcp.pop %v1948
    %v1951 = vmul.f32 1.0, %v1950
    %v1952 = vrcp.pop %v1949
    %v1953 = vmul.f32 1.0, %v1952
    %v1954 = vmul.f32 %v1934, %v1951
    %v1955 = vmul.f32 %v1939, %v1953
    %v1956 = vld [vmem:[%s4 + $0x35] sm:$0xff]
    %v1957 = vld [vmem:[%s4 + $0x3d] sm:$0xff]
    %v1958 = vld [vmem:[%s4 + $0x45] sm:$0xff]
    %v1959 = vld [vmem:[%s4 + $0x4d] sm:$0xff]
    %v1960 = vld [vmem:[%s4 + $0x55] sm:$0xff]
    %v1961 = vld [vmem:[%s4 + $0x5d] sm:$0xff]
    %1962 = vrot.lane.b32.xlu0 %v889, 116
    %v1963 = vpop.permute.xlu0 %1962
    %v1966 = vsel %vm37, %v1954, 0
    %v1969 = vsel %vm37, %v1955, 0
    %1971 = vmatprep.subr.mxu0 0.0
    %1972 = vmatpush1.msra.mxu0 0.0
    %1973 = vmatprep.subr.mxu0 0.0
    %1974 = vmatpush1.msra.mxu0 0.0
    %1975 = vmatprep.subr.mxu0 0.0
    %1976 = vmatpush1.msra.mxu0 0.0
    %1977 = vmatprep.subr.mxu0 0.0
    %1978 = vmatpush1.msra.mxu0 0.0
    %1979 = vmatprep.subr.mxu0 0.0
    %1980 = vmatpush1.msra.mxu0 0.0
    %1981 = vmatprep.subr.mxu0 0.0
    %1982 = vmatpush1.msra.mxu0 0.0
    %1983 = vmatprep.subr.mxu0 0.0
    %1984 = vmatpush1.msra.mxu0 0.0
    %1985 = vmatprep.subr.mxu0 0.0
    %1986 = vmatpush1.msra.mxu0 0.0
    %1987 = vmatprep.subr.mxu0 0.0
    %1988 = vmatpush1.msra.mxu0 0.0
    %1989 = vmatprep.subr.mxu0 0.0
    %1990 = vmatpush1.msra.mxu0 0.0
    %1991 = vmatprep.subr.mxu0 0.0
    %1992 = vmatpush1.msra.mxu0 %v1961
    %1993 = vmatprep.subr.mxu0 0.0
    %1994 = vmatpush1.msra.mxu0 %v1960
    %1995 = vmatprep.subr.mxu0 0.0
    %1996 = vmatpush1.msra.mxu0 %v1959
    %1997 = vmatprep.subr.mxu0 0.0
    %1998 = vmatpush1.msra.mxu0 %v1958
    %1999 = vmatprep.subr.mxu0 0.0
    %2000 = vmatpush1.msra.mxu0 %v1957
    %2001 = vmatprep.subr.mxu0 0.0
    %2002 = vmatpush1.msra.mxu0 %v1956
    %2003 = vmatprep.subr.mxu0 0.0
    %2004 = vmatpush2.msra.mxu0 0.0
    %2005 = vmatprep.subr.mxu0 0.0
    %2006 = vmatpush2.msra.mxu0 0.0
    %2007 = vmatprep.subr.mxu0 0.0
    %2008 = vmatpush2.msra.mxu0 0.0
    %2009 = vmatprep.subr.mxu0 0.0
    %2010 = vmatpush2.msra.mxu0 0.0
    %2011 = vmatprep.subr.mxu0 0.0
    %2012 = vmatpush2.msra.mxu0 0.0
    %2013 = vmatprep.subr.mxu0 0.0
    %2014 = vmatpush2.msra.mxu0 0.0
    %2015 = vmatprep.subr.mxu0 0.0
    %2016 = vmatpush2.msra.mxu0 0.0
    %2017 = vmatprep.subr.mxu0 0.0
    %2018 = vmatpush2.msra.mxu0 0.0
    %2019 = vmatprep.subr.mxu0 0.0
    %2020 = vmatpush2.msra.mxu0 0.0
    %2021 = vmatprep.subr.mxu0 0.0
    %2022 = vmatpush2.msra.mxu0 0.0
    %2023 = vmatprep.subr.mxu0 0.0
    %2024 = vmatpush2.msra.mxu0 0.0
    %2025 = vmatprep.subr.mxu0 0.0
    %2026 = vmatpush2.msra.mxu0 0.0
    %2027 = vmatprep.subr.mxu0 0.0
    %2028 = vmatpush2.msra.mxu0 0.0
    %2029 = vmatprep.subr.mxu0 0.0
    %2030 = vmatpush2.msra.mxu0 0.0
    %2031 = vmatprep.subr.mxu0 0.0
    %2032 = vmatpush2.msra.mxu0 0.0
    %2033 = vmatprep.subr.mxu0 0.0
    %2034 = vmatpush2.msra.mxu0 0.0
    %2035 = vmatprep.mubr.f32.mxu0 0.0
    %2036 = vmatmul.mubr.f32.gmra.mxu0 %v1966
    %v2037 = vpop.f32.mrf.mxu0
    %v2038 = vadd.f32 %v1963, %v2037
    %v2039 = vpop.f32.mrf.mxu0
    %2040 = vmatprep.mubr.f32.mxu0 0.0
    %2041 = vmatmul.mubr.f32.gmra.mxu0 %v1969
    %v2042 = vpop.f32.mrf.mxu0
    %v2043 = vadd.f32 %v1963, %v2042
    %v2044 = vpop.f32.mrf.mxu0
    %2045 = vdwg.mxu0
    %v2046 = vadd.f32 %v2038, %v1812
    %v2047 = vadd.f32 %v2043, %v1813
    %v2048 = vld [vmem:[%s5] sm:$0x1]
    %v2049 = vsel %vm122, %v2046, 0.0
    %2050 = vadd.xlane.f32.xlu0 %v2049
    %v2051 = vpop.xlane.xlu0 %2050
    %v2052 = vsel %vm122, %v2047, 0.0
    %2053 = vadd.xlane.f32.xlu0 %v2052
    %v2054 = vpop.xlane.xlu0 %2053
    %v2055 = vmul.f32 %v2051, %v129
    %v2056 = vmul.f32 %v2054, %v129
    %v2057 = vsub.f32 %v2046, %v2055
    %v2058 = vsub.f32 %v2047, %v2056
    %v2059 = vmul.f32 %v2057, %v2057
    %v2060 = vmul.f32 %v2058, %v2058
    %v2061 = vsel %vm122, %v2059, 0.0
    %2062 = vadd.xlane.f32.xlu0 %v2061
    %v2063 = vpop.xlane.xlu0 %2062
    %v2064 = vsel %vm122, %v2060, 0.0
    %2065 = vadd.xlane.f32.xlu0 %v2064
    %v2066 = vpop.xlane.xlu0 %2065
    %v2067 = vmul.f32 %v2063, %v129
    %v2068 = vmul.f32 %v2066, %v129
    %v2069 = vadd.f32 %v2067, 1e-06
    %v2070 = vadd.f32 %v2068, 1e-06
    %v2071 = vrsqrt.pop %v2069
    %v2072 = vrsqrt.pop %v2070
    %v2073 = vmul.f32 %v2057, %v2071
    %v2074 = vmul.f32 %v2058, %v2072
    %v2075 = vlaneseq
    %v2076 = vshrl.u32 %v2075, 7
    %v2077 = vsub.s32 0, %v2076
    %v2078 = vrot.slane %v2048, %v2077
    %v2079 = vmul.f32 %v2073, %v2078
    %v2080 = vmul.f32 %v2074, %v2078
    %2082 = vrot.lane.b32.xlu0 %v2078, 104
    %v2083 = vpop.permute.xlu0 %2082
    %v2085 = vadd.f32 %v2079, %v2083
    %v2086 = vadd.f32 %v2080, %v2083
    %v2087 = vld [vmem:[%s5 + $0x5] sm:$0xff]
    %v2088 = vld [vmem:[%s5 + $0xd] sm:$0xff]
    %v2089 = vld [vmem:[%s5 + $0x15] sm:$0xff]
    %v2090 = vld [vmem:[%s5 + $0x2] sm:$0x1]
    %v2091 = vlaneseq
    %v2092 = vshrl.u32 %v2091, 7
    %v2093 = vsub.s32 0, %v2092
    %v2094 = vrot.slane %v2090, %v2093
    %v2096 = vsel %vm122, %v2085, 0
    %v2099 = vsel %vm122, %v2086, 0
    %2101 = vmatprep.subr.mxu0 0.0
    %2102 = vmatpush1.msra.mxu0 0.0
    %2103 = vmatprep.subr.mxu0 0.0
    %2104 = vmatpush1.msra.mxu0 0.0
    %2105 = vmatprep.subr.mxu0 0.0
    %2106 = vmatpush1.msra.mxu0 0.0
    %2107 = vmatprep.subr.mxu0 0.0
    %2108 = vmatpush1.msra.mxu0 0.0
    %2109 = vmatprep.subr.mxu0 0.0
    %2110 = vmatpush1.msra.mxu0 0.0
    %2111 = vmatprep.subr.mxu0 0.0
    %2112 = vmatpush1.msra.mxu0 0.0
    %2113 = vmatprep.subr.mxu0 0.0
    %2114 = vmatpush1.msra.mxu0 0.0
    %2115 = vmatprep.subr.mxu0 0.0
    %2116 = vmatpush1.msra.mxu0 0.0
    %2117 = vmatprep.subr.mxu0 0.0
    %2118 = vmatpush1.msra.mxu0 0.0
    %2119 = vmatprep.subr.mxu0 0.0
    %2120 = vmatpush1.msra.mxu0 0.0
    %2121 = vmatprep.subr.mxu0 0.0
    %2122 = vmatpush1.msra.mxu0 0.0
    %2123 = vmatprep.subr.mxu0 0.0
    %2124 = vmatpush1.msra.mxu0 0.0
    %2125 = vmatprep.subr.mxu0 0.0
    %2126 = vmatpush1.msra.mxu0 0.0
    %2127 = vmatprep.subr.mxu0 0.0
    %2128 = vmatpush1.msra.mxu0 %v2089
    %2129 = vmatprep.subr.mxu0 0.0
    %2130 = vmatpush1.msra.mxu0 %v2088
    %2131 = vmatprep.subr.mxu0 0.0
    %2132 = vmatpush1.msra.mxu0 %v2087
    %2133 = vmatprep.subr.mxu0 0.0
    %2134 = vmatpush2.msra.mxu0 0.0
    %2135 = vmatprep.subr.mxu0 0.0
    %2136 = vmatpush2.msra.mxu0 0.0
    %2137 = vmatprep.subr.mxu0 0.0
    %2138 = vmatpush2.msra.mxu0 0.0
    %2139 = vmatprep.subr.mxu0 0.0
    %2140 = vmatpush2.msra.mxu0 0.0
    %2141 = vmatprep.subr.mxu0 0.0
    %2142 = vmatpush2.msra.mxu0 0.0
    %2143 = vmatprep.subr.mxu0 0.0
    %2144 = vmatpush2.msra.mxu0 0.0
    %2145 = vmatprep.subr.mxu0 0.0
    %2146 = vmatpush2.msra.mxu0 0.0
    %2147 = vmatprep.subr.mxu0 0.0
    %2148 = vmatpush2.msra.mxu0 0.0
    %2149 = vmatprep.subr.mxu0 0.0
    %2150 = vmatpush2.msra.mxu0 0.0
    %2151 = vmatprep.subr.mxu0 0.0
    %2152 = vmatpush2.msra.mxu0 0.0
    %2153 = vmatprep.subr.mxu0 0.0
    %2154 = vmatpush2.msra.mxu0 0.0
    %2155 = vmatprep.subr.mxu0 0.0
    %2156 = vmatpush2.msra.mxu0 0.0
    %2157 = vmatprep.subr.mxu0 0.0
    %2158 = vmatpush2.msra.mxu0 0.0
    %2159 = vmatprep.subr.mxu0 0.0
    %2160 = vmatpush2.msra.mxu0 0.0
    %2161 = vmatprep.subr.mxu0 0.0
    %2162 = vmatpush2.msra.mxu0 0.0
    %2163 = vmatprep.subr.mxu0 0.0
    %2164 = vmatpush2.msra.mxu0 0.0
    %2165 = vmatprep.mubr.f32.mxu0 0.0
    %2166 = vmatmul.mubr.f32.gmra.mxu0 %v2096
    %v2167 = vpop.f32.mrf.mxu0
    %v2168 = vadd.f32 %v2094, %v2167
    %v2169 = vpop.f32.mrf.mxu0
    %2170 = vmatprep.mubr.f32.mxu0 0.0
    %2171 = vmatmul.mubr.f32.gmra.mxu0 %v2099
    %v2172 = vpop.f32.mrf.mxu0
    %v2173 = vadd.f32 %v2094, %v2172
    %v2174 = vpop.f32.mrf.mxu0
    %2175 = vdwg.mxu0
    %v2176 = vld [vmem:[%s5 + $0x65] sm:$0x3f]
    %v2177 = vld [vmem:[%s5 + $0x3] sm:$0x1]
    %2180 = vrot.lane.b32.xlu0 %v2168, 122
    %v2181 = vpop.permute.xlu0 %2180
    %2182 = vrot.lane.b32.xlu0 %v2173, 122
    %v2183 = vpop.permute.xlu0 %2182
    %v2184 = vsel %vm259, %v2168, 0
    %v2186 = vsel %vm259, %v2173, 0
    %v2188 = vsel %vm259, %v2181, 0
    %v2190 = vsel %vm259, %v2183, 0
    %2192 = vmatprep.subr.mxu0 0.0
    %2193 = vmatpush1.xpose.msra.mxu0 0.0
    %2194 = vmatprep.subr.mxu0 0.0
    %2195 = vmatpush1.xpose.msra.mxu0 0.0
    %2196 = vmatprep.subr.mxu0 0.0
    %2197 = vmatpush1.xpose.msra.mxu0 0.0
    %2198 = vmatprep.subr.mxu0 0.0
    %2199 = vmatpush1.xpose.msra.mxu0 0.0
    %2200 = vmatprep.subr.mxu0 0.0
    %2201 = vmatpush1.xpose.msra.mxu0 0.0
    %2202 = vmatprep.subr.mxu0 0.0
    %2203 = vmatpush1.xpose.msra.mxu0 0.0
    %2204 = vmatprep.subr.mxu0 0.0
    %2205 = vmatpush1.xpose.msra.mxu0 0.0
    %2206 = vmatprep.subr.mxu0 0.0
    %2207 = vmatpush1.xpose.msra.mxu0 0.0
    %2208 = vmatprep.subr.mxu0 0.0
    %2209 = vmatpush1.xpose.msra.mxu0 0.0
    %2210 = vmatprep.subr.mxu0 0.0
    %2211 = vmatpush1.xpose.msra.mxu0 0.0
    %2212 = vmatprep.subr.mxu0 0.0
    %2213 = vmatpush1.xpose.msra.mxu0 0.0
    %2214 = vmatprep.subr.mxu0 0.0
    %2215 = vmatpush1.xpose.msra.mxu0 0.0
    %2216 = vmatprep.subr.mxu0 0.0
    %2217 = vmatpush1.xpose.msra.mxu0 0.0
    %2218 = vmatprep.subr.mxu0 0.0
    %2219 = vmatpush1.xpose.msra.mxu0 0.0
    %2220 = vmatprep.subr.mxu0 0.0
    %2221 = vmatpush1.xpose.msra.mxu0 %v2190
    %2222 = vmatprep.subr.mxu0 0.0
    %2223 = vmatpush1.xpose.msra.mxu0 %v2188
    %2224 = vmatprep.subr.mxu0 0.0
    %2225 = vmatpush2.xpose.msra.mxu0 0.0
    %2226 = vmatprep.subr.mxu0 0.0
    %2227 = vmatpush2.xpose.msra.mxu0 0.0
    %2228 = vmatprep.subr.mxu0 0.0
    %2229 = vmatpush2.xpose.msra.mxu0 0.0
    %2230 = vmatprep.subr.mxu0 0.0
    %2231 = vmatpush2.xpose.msra.mxu0 0.0
    %2232 = vmatprep.subr.mxu0 0.0
    %2233 = vmatpush2.xpose.msra.mxu0 0.0
    %2234 = vmatprep.subr.mxu0 0.0
    %2235 = vmatpush2.xpose.msra.mxu0 0.0
    %2236 = vmatprep.subr.mxu0 0.0
    %2237 = vmatpush2.xpose.msra.mxu0 0.0
    %2238 = vmatprep.subr.mxu0 0.0
    %2239 = vmatpush2.xpose.msra.mxu0 0.0
    %2240 = vmatprep.subr.mxu0 0.0
    %2241 = vmatpush2.xpose.msra.mxu0 0.0
    %2242 = vmatprep.subr.mxu0 0.0
    %2243 = vmatpush2.xpose.msra.mxu0 0.0
    %2244 = vmatprep.subr.mxu0 0.0
    %2245 = vmatpush2.xpose.msra.mxu0 0.0
    %2246 = vmatprep.subr.mxu0 0.0
    %2247 = vmatpush2.xpose.msra.mxu0 0.0
    %2248 = vmatprep.subr.mxu0 0.0
    %2249 = vmatpush2.xpose.msra.mxu0 0.0
    %2250 = vmatprep.subr.mxu0 0.0
    %2251 = vmatpush2.xpose.msra.mxu0 0.0
    %2252 = vmatprep.subr.mxu0 0.0
    %2253 = vmatpush2.xpose.msra.mxu0 0.0
    %2254 = vmatprep.subr.mxu0 0.0
    %2255 = vmatpush2.xpose.msra.mxu0 0.0
    %2256 = vmatprep.mubr.f32.mxu0 0.0
    %2257 = vmatmul.mubr.f32.gmra.mxu0 %v2184
    %v2258 = vpop.f32.mrf.mxu0
    %v2259 = vadd.f32 0.0, %v2258
    %v2260 = vpop.f32.mrf.mxu0
    %2261 = vmatprep.mubr.f32.mxu0 0.0
    %2262 = vmatmul.mubr.f32.gmra.mxu0 %v2186
    %v2263 = vpop.f32.mrf.mxu0
    %v2264 = vadd.f32 0.0, %v2263
    %v2265 = vpop.f32.mrf.mxu0
    %2266 = vdwg.mxu0
    %v2267 = vmul.f32 %v2259, 0.70710677
    %v2268 = vmul.f32 %v2264, 0.70710677
    %v2269 = vadd.f32 %v2267, %v119
    %v2270 = vadd.f32 %v2268, %v120
    %v2271 = vsel %vm347, %v2269, -inf
    %2272 = vmax.xlane.f32.xlu0 %v2271
    %v2273 = vpop.xlane.xlu0 %2272
    %v2274 = vsel %vm347, %v2270, -inf
    %2275 = vmax.xlane.f32.xlu0 %v2274
    %v2276 = vpop.xlane.xlu0 %2275
    %v2277 = vsub.f32 %v2269, %v2273
    %v2278 = vsub.f32 %v2270, %v2276
    %v2279 = vmul.f32 %v2277, 1.442695
    %v2280 = vpow.pop %v2279
    %v2281 = vmul.f32 %v2278, 1.442695
    %v2282 = vpow.pop %v2281
    %v2283 = vsel %vm347, %v2280, 0.0
    %2284 = vadd.xlane.f32.xlu0 %v2283
    %v2285 = vpop.xlane.xlu0 %2284
    %v2286 = vsel %vm347, %v2282, 0.0
    %2287 = vadd.xlane.f32.xlu0 %v2286
    %v2288 = vpop.xlane.xlu0 %2287
    %v2289 = vrcp.pop %v2285
    %v2290 = vmul.f32 %v2280, %v2289
    %v2291 = vrcp.pop %v2288
    %v2292 = vmul.f32 %v2282, %v2291
    %2293 = vrot.lane.b32.xlu0 %v2168, 116
    %v2294 = vpop.permute.xlu0 %2293
    %2295 = vrot.lane.b32.xlu0 %v2173, 116
    %v2296 = vpop.permute.xlu0 %2295
    %v2300 = vsel %vm347, %v2290, 0
    %v2303 = vsel %vm347, %v2292, 0
    %2305 = vmatprep.subr.mxu0 0.0
    %2306 = vmatpush1.msra.mxu0 0.0
    %2307 = vmatprep.subr.mxu0 0.0
    %2308 = vmatpush1.msra.mxu0 0.0
    %2309 = vmatprep.subr.mxu0 0.0
    %2310 = vmatpush1.msra.mxu0 0.0
    %2311 = vmatprep.subr.mxu0 0.0
    %2312 = vmatpush1.msra.mxu0 0.0
    %2313 = vmatprep.subr.mxu0 0.0
    %2314 = vmatpush1.msra.mxu0 0.0
    %2315 = vmatprep.subr.mxu0 0.0
    %2316 = vmatpush1.msra.mxu0 0.0
    %2317 = vmatprep.subr.mxu0 0.0
    %2318 = vmatpush1.msra.mxu0 0.0
    %2319 = vmatprep.subr.mxu0 0.0
    %2320 = vmatpush1.msra.mxu0 0.0
    %2321 = vmatprep.subr.mxu0 0.0
    %2322 = vmatpush1.msra.mxu0 0.0
    %2323 = vmatprep.subr.mxu0 0.0
    %2324 = vmatpush1.msra.mxu0 0.0
    %2325 = vmatprep.subr.mxu0 0.0
    %2326 = vmatpush1.msra.mxu0 0.0
    %2327 = vmatprep.subr.mxu0 0.0
    %2328 = vmatpush1.msra.mxu0 0.0
    %2329 = vmatprep.subr.mxu0 0.0
    %2330 = vmatpush1.msra.mxu0 0.0
    %2331 = vmatprep.subr.mxu0 0.0
    %2332 = vmatpush1.msra.mxu0 0.0
    %2333 = vmatprep.subr.mxu0 0.0
    %2334 = vmatpush1.msra.mxu0 %v2296
    %2335 = vmatprep.subr.mxu0 0.0
    %2336 = vmatpush1.msra.mxu0 %v2294
    %2337 = vmatprep.subr.mxu0 0.0
    %2338 = vmatpush2.msra.mxu0 0.0
    %2339 = vmatprep.subr.mxu0 0.0
    %2340 = vmatpush2.msra.mxu0 0.0
    %2341 = vmatprep.subr.mxu0 0.0
    %2342 = vmatpush2.msra.mxu0 0.0
    %2343 = vmatprep.subr.mxu0 0.0
    %2344 = vmatpush2.msra.mxu0 0.0
    %2345 = vmatprep.subr.mxu0 0.0
    %2346 = vmatpush2.msra.mxu0 0.0
    %2347 = vmatprep.subr.mxu0 0.0
    %2348 = vmatpush2.msra.mxu0 0.0
    %2349 = vmatprep.subr.mxu0 0.0
    %2350 = vmatpush2.msra.mxu0 0.0
    %2351 = vmatprep.subr.mxu0 0.0
    %2352 = vmatpush2.msra.mxu0 0.0
    %2353 = vmatprep.subr.mxu0 0.0
    %2354 = vmatpush2.msra.mxu0 0.0
    %2355 = vmatprep.subr.mxu0 0.0
    %2356 = vmatpush2.msra.mxu0 0.0
    %2357 = vmatprep.subr.mxu0 0.0
    %2358 = vmatpush2.msra.mxu0 0.0
    %2359 = vmatprep.subr.mxu0 0.0
    %2360 = vmatpush2.msra.mxu0 0.0
    %2361 = vmatprep.subr.mxu0 0.0
    %2362 = vmatpush2.msra.mxu0 0.0
    %2363 = vmatprep.subr.mxu0 0.0
    %2364 = vmatpush2.msra.mxu0 0.0
    %2365 = vmatprep.subr.mxu0 0.0
    %2366 = vmatpush2.msra.mxu0 0.0
    %2367 = vmatprep.subr.mxu0 0.0
    %2368 = vmatpush2.msra.mxu0 0.0
    %2369 = vmatprep.mubr.f32.mxu0 0.0
    %2370 = vmatmul.mubr.f32.gmra.mxu0 %v2300
    %v2371 = vpop.f32.mrf.mxu0
    %v2372 = vadd.f32 0.0, %v2371
    %v2373 = vpop.f32.mrf.mxu0
    %2374 = vmatprep.mubr.f32.mxu0 0.0
    %2375 = vmatmul.mubr.f32.gmra.mxu0 %v2303
    %v2376 = vpop.f32.mrf.mxu0
    %v2377 = vadd.f32 0.0, %v2376
    %v2378 = vpop.f32.mrf.mxu0
    %2379 = vdwg.mxu0
    %2380 = vrot.lane.b32.xlu0 %v2168, 126
    %v2381 = vpop.permute.xlu0 %2380
    %2382 = vrot.lane.b32.xlu0 %v2173, 126
    %v2383 = vpop.permute.xlu0 %2382
    %2384 = vrot.lane.b32.xlu0 %v2168, 120
    %v2385 = vpop.permute.xlu0 %2384
    %2386 = vrot.lane.b32.xlu0 %v2173, 120
    %v2387 = vpop.permute.xlu0 %2386
    %v2388 = vsel %vm259, %v2381, 0
    %v2390 = vsel %vm259, %v2383, 0
    %v2392 = vsel %vm259, %v2385, 0
    %v2394 = vsel %vm259, %v2387, 0
    %2396 = vmatprep.subr.mxu0 0.0
    %2397 = vmatpush1.xpose.msra.mxu0 0.0
    %2398 = vmatprep.subr.mxu0 0.0
    %2399 = vmatpush1.xpose.msra.mxu0 0.0
    %2400 = vmatprep.subr.mxu0 0.0
    %2401 = vmatpush1.xpose.msra.mxu0 0.0
    %2402 = vmatprep.subr.mxu0 0.0
    %2403 = vmatpush1.xpose.msra.mxu0 0.0
    %2404 = vmatprep.subr.mxu0 0.0
    %2405 = vmatpush1.xpose.msra.mxu0 0.0
    %2406 = vmatprep.subr.mxu0 0.0
    %2407 = vmatpush1.xpose.msra.mxu0 0.0
    %2408 = vmatprep.subr.mxu0 0.0
    %2409 = vmatpush1.xpose.msra.mxu0 0.0
    %2410 = vmatprep.subr.mxu0 0.0
    %2411 = vmatpush1.xpose.msra.mxu0 0.0
    %2412 = vmatprep.subr.mxu0 0.0
    %2413 = vmatpush1.xpose.msra.mxu0 0.0
    %2414 = vmatprep.subr.mxu0 0.0
    %2415 = vmatpush1.xpose.msra.mxu0 0.0
    %2416 = vmatprep.subr.mxu0 0.0
    %2417 = vmatpush1.xpose.msra.mxu0 0.0
    %2418 = vmatprep.subr.mxu0 0.0
    %2419 = vmatpush1.xpose.msra.mxu0 0.0
    %2420 = vmatprep.subr.mxu0 0.0
    %2421 = vmatpush1.xpose.msra.mxu0 0.0
    %2422 = vmatprep.subr.mxu0 0.0
    %2423 = vmatpush1.xpose.msra.mxu0 0.0
    %2424 = vmatprep.subr.mxu0 0.0
    %2425 = vmatpush1.xpose.msra.mxu0 %v2394
    %2426 = vmatprep.subr.mxu0 0.0
    %2427 = vmatpush1.xpose.msra.mxu0 %v2392
    %2428 = vmatprep.subr.mxu0 0.0
    %2429 = vmatpush2.xpose.msra.mxu0 0.0
    %2430 = vmatprep.subr.mxu0 0.0
    %2431 = vmatpush2.xpose.msra.mxu0 0.0
    %2432 = vmatprep.subr.mxu0 0.0
    %2433 = vmatpush2.xpose.msra.mxu0 0.0
    %2434 = vmatprep.subr.mxu0 0.0
    %2435 = vmatpush2.xpose.msra.mxu0 0.0
    %2436 = vmatprep.subr.mxu0 0.0
    %2437 = vmatpush2.xpose.msra.mxu0 0.0
    %2438 = vmatprep.subr.mxu0 0.0
    %2439 = vmatpush2.xpose.msra.mxu0 0.0
    %2440 = vmatprep.subr.mxu0 0.0
    %2441 = vmatpush2.xpose.msra.mxu0 0.0
    %2442 = vmatprep.subr.mxu0 0.0
    %2443 = vmatpush2.xpose.msra.mxu0 0.0
    %2444 = vmatprep.subr.mxu0 0.0
    %2445 = vmatpush2.xpose.msra.mxu0 0.0
    %2446 = vmatprep.subr.mxu0 0.0
    %2447 = vmatpush2.xpose.msra.mxu0 0.0
    %2448 = vmatprep.subr.mxu0 0.0
    %2449 = vmatpush2.xpose.msra.mxu0 0.0
    %2450 = vmatprep.subr.mxu0 0.0
    %2451 = vmatpush2.xpose.msra.mxu0 0.0
    %2452 = vmatprep.subr.mxu0 0.0
    %2453 = vmatpush2.xpose.msra.mxu0 0.0
    %2454 = vmatprep.subr.mxu0 0.0
    %2455 = vmatpush2.xpose.msra.mxu0 0.0
    %2456 = vmatprep.subr.mxu0 0.0
    %2457 = vmatpush2.xpose.msra.mxu0 0.0
    %2458 = vmatprep.subr.mxu0 0.0
    %2459 = vmatpush2.xpose.msra.mxu0 0.0
    %2460 = vmatprep.mubr.f32.mxu0 0.0
    %2461 = vmatmul.mubr.f32.gmra.mxu0 %v2388
    %v2462 = vpop.f32.mrf.mxu0
    %v2463 = vadd.f32 0.0, %v2462
    %v2464 = vpop.f32.mrf.mxu0
    %2465 = vmatprep.mubr.f32.mxu0 0.0
    %2466 = vmatmul.mubr.f32.gmra.mxu0 %v2390
    %v2467 = vpop.f32.mrf.mxu0
    %v2468 = vadd.f32 0.0, %v2467
    %v2469 = vpop.f32.mrf.mxu0
    %2470 = vdwg.mxu0
    %v2471 = vmul.f32 %v2463, 0.70710677
    %v2472 = vmul.f32 %v2468, 0.70710677
    %v2473 = vadd.f32 %v2471, %v119
    %v2474 = vadd.f32 %v2472, %v120
    %v2475 = vsel %vm347, %v2473, -inf
    %2476 = vmax.xlane.f32.xlu0 %v2475
    %v2477 = vpop.xlane.xlu0 %2476
    %v2478 = vsel %vm347, %v2474, -inf
    %2479 = vmax.xlane.f32.xlu0 %v2478
    %v2480 = vpop.xlane.xlu0 %2479
    %v2481 = vsub.f32 %v2473, %v2477
    %v2482 = vsub.f32 %v2474, %v2480
    %v2483 = vmul.f32 %v2481, 1.442695
    %v2484 = vpow.pop %v2483
    %v2485 = vmul.f32 %v2482, 1.442695
    %v2486 = vpow.pop %v2485
    %v2487 = vsel %vm347, %v2484, 0.0
    %2488 = vadd.xlane.f32.xlu0 %v2487
    %v2489 = vpop.xlane.xlu0 %2488
    %v2490 = vsel %vm347, %v2486, 0.0
    %2491 = vadd.xlane.f32.xlu0 %v2490
    %v2492 = vpop.xlane.xlu0 %2491
    %v2493 = vrcp.pop %v2489
    %v2494 = vmul.f32 %v2484, %v2493
    %v2495 = vrcp.pop %v2492
    %v2496 = vmul.f32 %v2486, %v2495
    %2497 = vrot.lane.b32.xlu0 %v2168, 114
    %v2498 = vpop.permute.xlu0 %2497
    %2499 = vrot.lane.b32.xlu0 %v2173, 114
    %v2500 = vpop.permute.xlu0 %2499
    %v2504 = vsel %vm347, %v2494, 0
    %v2507 = vsel %vm347, %v2496, 0
    %2509 = vmatprep.subr.mxu0 0.0
    %2510 = vmatpush1.msra.mxu0 0.0
    %2511 = vmatprep.subr.mxu0 0.0
    %2512 = vmatpush1.msra.mxu0 0.0
    %2513 = vmatprep.subr.mxu0 0.0
    %2514 = vmatpush1.msra.mxu0 0.0
    %2515 = vmatprep.subr.mxu0 0.0
    %2516 = vmatpush1.msra.mxu0 0.0
    %2517 = vmatprep.subr.mxu0 0.0
    %2518 = vmatpush1.msra.mxu0 0.0
    %2519 = vmatprep.subr.mxu0 0.0
    %2520 = vmatpush1.msra.mxu0 0.0
    %2521 = vmatprep.subr.mxu0 0.0
    %2522 = vmatpush1.msra.mxu0 0.0
    %2523 = vmatprep.subr.mxu0 0.0
    %2524 = vmatpush1.msra.mxu0 0.0
    %2525 = vmatprep.subr.mxu0 0.0
    %2526 = vmatpush1.msra.mxu0 0.0
    %2527 = vmatprep.subr.mxu0 0.0
    %2528 = vmatpush1.msra.mxu0 0.0
    %2529 = vmatprep.subr.mxu0 0.0
    %2530 = vmatpush1.msra.mxu0 0.0
    %2531 = vmatprep.subr.mxu0 0.0
    %2532 = vmatpush1.msra.mxu0 0.0
    %2533 = vmatprep.subr.mxu0 0.0
    %2534 = vmatpush1.msra.mxu0 0.0
    %2535 = vmatprep.subr.mxu0 0.0
    %2536 = vmatpush1.msra.mxu0 0.0
    %2537 = vmatprep.subr.mxu0 0.0
    %2538 = vmatpush1.msra.mxu0 %v2500
    %2539 = vmatprep.subr.mxu0 0.0
    %2540 = vmatpush1.msra.mxu0 %v2498
    %2541 = vmatprep.subr.mxu0 0.0
    %2542 = vmatpush2.msra.mxu0 0.0
    %2543 = vmatprep.subr.mxu0 0.0
    %2544 = vmatpush2.msra.mxu0 0.0
    %2545 = vmatprep.subr.mxu0 0.0
    %2546 = vmatpush2.msra.mxu0 0.0
    %2547 = vmatprep.subr.mxu0 0.0
    %2548 = vmatpush2.msra.mxu0 0.0
    %2549 = vmatprep.subr.mxu0 0.0
    %2550 = vmatpush2.msra.mxu0 0.0
    %2551 = vmatprep.subr.mxu0 0.0
    %2552 = vmatpush2.msra.mxu0 0.0
    %2553 = vmatprep.subr.mxu0 0.0
    %2554 = vmatpush2.msra.mxu0 0.0
    %2555 = vmatprep.subr.mxu0 0.0
    %2556 = vmatpush2.msra.mxu0 0.0
    %2557 = vmatprep.subr.mxu0 0.0
    %2558 = vmatpush2.msra.mxu0 0.0
    %2559 = vmatprep.subr.mxu0 0.0
    %2560 = vmatpush2.msra.mxu0 0.0
    %2561 = vmatprep.subr.mxu0 0.0
    %2562 = vmatpush2.msra.mxu0 0.0
    %2563 = vmatprep.subr.mxu0 0.0
    %2564 = vmatpush2.msra.mxu0 0.0
    %2565 = vmatprep.subr.mxu0 0.0
    %2566 = vmatpush2.msra.mxu0 0.0
    %2567 = vmatprep.subr.mxu0 0.0
    %2568 = vmatpush2.msra.mxu0 0.0
    %2569 = vmatprep.subr.mxu0 0.0
    %2570 = vmatpush2.msra.mxu0 0.0
    %2571 = vmatprep.subr.mxu0 0.0
    %2572 = vmatpush2.msra.mxu0 0.0
    %2573 = vmatprep.mubr.f32.mxu0 0.0
    %2574 = vmatmul.mubr.f32.gmra.mxu0 %v2504
    %v2575 = vpop.f32.mrf.mxu0
    %v2576 = vadd.f32 0.0, %v2575
    %v2577 = vpop.f32.mrf.mxu0
    %2578 = vmatprep.mubr.f32.mxu0 0.0
    %2579 = vmatmul.mubr.f32.gmra.mxu0 %v2507
    %v2580 = vpop.f32.mrf.mxu0
    %v2581 = vadd.f32 0.0, %v2580
    %v2582 = vpop.f32.mrf.mxu0
    %2583 = vdwg.mxu0
    %2584 = vrot.lane.b32.xlu0 %v2168, 124
    %v2585 = vpop.permute.xlu0 %2584
    %2586 = vrot.lane.b32.xlu0 %v2173, 124
    %v2587 = vpop.permute.xlu0 %2586
    %2588 = vrot.lane.b32.xlu0 %v2168, 118
    %v2589 = vpop.permute.xlu0 %2588
    %2590 = vrot.lane.b32.xlu0 %v2173, 118
    %v2591 = vpop.permute.xlu0 %2590
    %v2592 = vsel %vm259, %v2585, 0
    %v2594 = vsel %vm259, %v2587, 0
    %v2596 = vsel %vm259, %v2589, 0
    %v2598 = vsel %vm259, %v2591, 0
    %2600 = vmatprep.subr.mxu0 0.0
    %2601 = vmatpush1.xpose.msra.mxu0 0.0
    %2602 = vmatprep.subr.mxu0 0.0
    %2603 = vmatpush1.xpose.msra.mxu0 0.0
    %2604 = vmatprep.subr.mxu0 0.0
    %2605 = vmatpush1.xpose.msra.mxu0 0.0
    %2606 = vmatprep.subr.mxu0 0.0
    %2607 = vmatpush1.xpose.msra.mxu0 0.0
    %2608 = vmatprep.subr.mxu0 0.0
    %2609 = vmatpush1.xpose.msra.mxu0 0.0
    %2610 = vmatprep.subr.mxu0 0.0
    %2611 = vmatpush1.xpose.msra.mxu0 0.0
    %2612 = vmatprep.subr.mxu0 0.0
    %2613 = vmatpush1.xpose.msra.mxu0 0.0
    %2614 = vmatprep.subr.mxu0 0.0
    %2615 = vmatpush1.xpose.msra.mxu0 0.0
    %2616 = vmatprep.subr.mxu0 0.0
    %2617 = vmatpush1.xpose.msra.mxu0 0.0
    %2618 = vmatprep.subr.mxu0 0.0
    %2619 = vmatpush1.xpose.msra.mxu0 0.0
    %2620 = vmatprep.subr.mxu0 0.0
    %2621 = vmatpush1.xpose.msra.mxu0 0.0
    %2622 = vmatprep.subr.mxu0 0.0
    %2623 = vmatpush1.xpose.msra.mxu0 0.0
    %2624 = vmatprep.subr.mxu0 0.0
    %2625 = vmatpush1.xpose.msra.mxu0 0.0
    %2626 = vmatprep.subr.mxu0 0.0
    %2627 = vmatpush1.xpose.msra.mxu0 0.0
    %2628 = vmatprep.subr.mxu0 0.0
    %2629 = vmatpush1.xpose.msra.mxu0 %v2598
    %2630 = vmatprep.subr.mxu0 0.0
    %2631 = vmatpush1.xpose.msra.mxu0 %v2596
    %2632 = vmatprep.subr.mxu0 0.0
    %2633 = vmatpush2.xpose.msra.mxu0 0.0
    %2634 = vmatprep.subr.mxu0 0.0
    %2635 = vmatpush2.xpose.msra.mxu0 0.0
    %2636 = vmatprep.subr.mxu0 0.0
    %2637 = vmatpush2.xpose.msra.mxu0 0.0
    %2638 = vmatprep.subr.mxu0 0.0
    %2639 = vmatpush2.xpose.msra.mxu0 0.0
    %2640 = vmatprep.subr.mxu0 0.0
    %2641 = vmatpush2.xpose.msra.mxu0 0.0
    %2642 = vmatprep.subr.mxu0 0.0
    %2643 = vmatpush2.xpose.msra.mxu0 0.0
    %2644 = vmatprep.subr.mxu0 0.0
    %2645 = vmatpush2.xpose.msra.mxu0 0.0
    %2646 = vmatprep.subr.mxu0 0.0
    %2647 = vmatpush2.xpose.msra.mxu0 0.0
    %2648 = vmatprep.subr.mxu0 0.0
    %2649 = vmatpush2.xpose.msra.mxu0 0.0
    %2650 = vmatprep.subr.mxu0 0.0
    %2651 = vmatpush2.xpose.msra.mxu0 0.0
    %2652 = vmatprep.subr.mxu0 0.0
    %2653 = vmatpush2.xpose.msra.mxu0 0.0
    %2654 = vmatprep.subr.mxu0 0.0
    %2655 = vmatpush2.xpose.msra.mxu0 0.0
    %2656 = vmatprep.subr.mxu0 0.0
    %2657 = vmatpush2.xpose.msra.mxu0 0.0
    %2658 = vmatprep.subr.mxu0 0.0
    %2659 = vmatpush2.xpose.msra.mxu0 0.0
    %2660 = vmatprep.subr.mxu0 0.0
    %2661 = vmatpush2.xpose.msra.mxu0 0.0
    %2662 = vmatprep.subr.mxu0 0.0
    %2663 = vmatpush2.xpose.msra.mxu0 0.0
    %2664 = vmatprep.mubr.f32.mxu0 0.0
    %2665 = vmatmul.mubr.f32.gmra.mxu0 %v2592
    %v2666 = vpop.f32.mrf.mxu0
    %v2667 = vadd.f32 0.0, %v2666
    %v2668 = vpop.f32.mrf.mxu0
    %2669 = vmatprep.mubr.f32.mxu0 0.0
    %2670 = vmatmul.mubr.f32.gmra.mxu0 %v2594
    %v2671 = vpop.f32.mrf.mxu0
    %v2672 = vadd.f32 0.0, %v2671
    %v2673 = vpop.f32.mrf.mxu0
    %2674 = vdwg.mxu0
    %v2675 = vmul.f32 %v2667, 0.70710677
    %v2676 = vmul.f32 %v2672, 0.70710677
    %v2677 = vadd.f32 %v2675, %v119
    %v2678 = vadd.f32 %v2676, %v120
    %v2679 = vsel %vm347, %v2677, -inf
    %2680 = vmax.xlane.f32.xlu0 %v2679
    %v2681 = vpop.xlane.xlu0 %2680
    %v2682 = vsel %vm347, %v2678, -inf
    %2683 = vmax.xlane.f32.xlu0 %v2682
    %v2684 = vpop.xlane.xlu0 %2683
    %v2685 = vsub.f32 %v2677, %v2681
    %v2686 = vsub.f32 %v2678, %v2684
    %v2687 = vmul.f32 %v2685, 1.442695
    %v2688 = vpow.pop %v2687
    %v2689 = vmul.f32 %v2686, 1.442695
    %v2690 = vpow.pop %v2689
    %v2691 = vsel %vm347, %v2688, 0.0
    %2692 = vadd.xlane.f32.xlu0 %v2691
    %v2693 = vpop.xlane.xlu0 %2692
    %v2694 = vsel %vm347, %v2690, 0.0
    %2695 = vadd.xlane.f32.xlu0 %v2694
    %v2696 = vpop.xlane.xlu0 %2695
    %v2697 = vrcp.pop %v2693
    %v2698 = vmul.f32 %v2688, %v2697
    %v2699 = vrcp.pop %v2696
    %v2700 = vmul.f32 %v2690, %v2699
    %2701 = vrot.lane.b32.xlu0 %v2168, 112
    %v2702 = vpop.permute.xlu0 %2701
    %2703 = vrot.lane.b32.xlu0 %v2173, 112
    %v2704 = vpop.permute.xlu0 %2703
    %v2708 = vsel %vm347, %v2698, 0
    %v2711 = vsel %vm347, %v2700, 0
    %2713 = vmatprep.subr.mxu0 0.0
    %2714 = vmatpush1.msra.mxu0 0.0
    %2715 = vmatprep.subr.mxu0 0.0
    %2716 = vmatpush1.msra.mxu0 0.0
    %2717 = vmatprep.subr.mxu0 0.0
    %2718 = vmatpush1.msra.mxu0 0.0
    %2719 = vmatprep.subr.mxu0 0.0
    %2720 = vmatpush1.msra.mxu0 0.0
    %2721 = vmatprep.subr.mxu0 0.0
    %2722 = vmatpush1.msra.mxu0 0.0
    %2723 = vmatprep.subr.mxu0 0.0
    %2724 = vmatpush1.msra.mxu0 0.0
    %2725 = vmatprep.subr.mxu0 0.0
    %2726 = vmatpush1.msra.mxu0 0.0
    %2727 = vmatprep.subr.mxu0 0.0
    %2728 = vmatpush1.msra.mxu0 0.0
    %2729 = vmatprep.subr.mxu0 0.0
    %2730 = vmatpush1.msra.mxu0 0.0
    %2731 = vmatprep.subr.mxu0 0.0
    %2732 = vmatpush1.msra.mxu0 0.0
    %2733 = vmatprep.subr.mxu0 0.0
    %2734 = vmatpush1.msra.mxu0 0.0
    %2735 = vmatprep.subr.mxu0 0.0
    %2736 = vmatpush1.msra.mxu0 0.0
    %2737 = vmatprep.subr.mxu0 0.0
    %2738 = vmatpush1.msra.mxu0 0.0
    %2739 = vmatprep.subr.mxu0 0.0
    %2740 = vmatpush1.msra.mxu0 0.0
    %2741 = vmatprep.subr.mxu0 0.0
    %2742 = vmatpush1.msra.mxu0 %v2704
    %2743 = vmatprep.subr.mxu0 0.0
    %2744 = vmatpush1.msra.mxu0 %v2702
    %2745 = vmatprep.subr.mxu0 0.0
    %2746 = vmatpush2.msra.mxu0 0.0
    %2747 = vmatprep.subr.mxu0 0.0
    %2748 = vmatpush2.msra.mxu0 0.0
    %2749 = vmatprep.subr.mxu0 0.0
    %2750 = vmatpush2.msra.mxu0 0.0
    %2751 = vmatprep.subr.mxu0 0.0
    %2752 = vmatpush2.msra.mxu0 0.0
    %2753 = vmatprep.subr.mxu0 0.0
    %2754 = vmatpush2.msra.mxu0 0.0
    %2755 = vmatprep.subr.mxu0 0.0
    %2756 = vmatpush2.msra.mxu0 0.0
    %2757 = vmatprep.subr.mxu0 0.0
    %2758 = vmatpush2.msra.mxu0 0.0
    %2759 = vmatprep.subr.mxu0 0.0
    %2760 = vmatpush2.msra.mxu0 0.0
    %2761 = vmatprep.subr.mxu0 0.0
    %2762 = vmatpush2.msra.mxu0 0.0
    %2763 = vmatprep.subr.mxu0 0.0
    %2764 = vmatpush2.msra.mxu0 0.0
    %2765 = vmatprep.subr.mxu0 0.0
    %2766 = vmatpush2.msra.mxu0 0.0
    %2767 = vmatprep.subr.mxu0 0.0
    %2768 = vmatpush2.msra.mxu0 0.0
    %2769 = vmatprep.subr.mxu0 0.0
    %2770 = vmatpush2.msra.mxu0 0.0
    %2771 = vmatprep.subr.mxu0 0.0
    %2772 = vmatpush2.msra.mxu0 0.0
    %2773 = vmatprep.subr.mxu0 0.0
    %2774 = vmatpush2.msra.mxu0 0.0
    %2775 = vmatprep.subr.mxu0 0.0
    %2776 = vmatpush2.msra.mxu0 0.0
    %2777 = vmatprep.mubr.f32.mxu0 0.0
    %2778 = vmatmul.mubr.f32.gmra.mxu0 %v2708
    %v2779 = vpop.f32.mrf.mxu0
    %v2780 = vadd.f32 0.0, %v2779
    %v2781 = vpop.f32.mrf.mxu0
    %2782 = vmatprep.mubr.f32.mxu0 0.0
    %2783 = vmatmul.mubr.f32.gmra.mxu0 %v2711
    %v2784 = vpop.f32.mrf.mxu0
    %v2785 = vadd.f32 0.0, %v2784
    %v2786 = vpop.f32.mrf.mxu0
    %2787 = vdwg.mxu0
    %2790 = vrot.lane.b32.xlu0 %v2576, 2
    %v2791 = vpop.permute.xlu0 %2790
    %2792 = vrot.lane.b32.xlu0 %v2581, 2
    %v2793 = vpop.permute.xlu0 %2792
    %2798 = vrot.lane.b32.xlu0 %v2780, 4
    %v2799 = vpop.permute.xlu0 %2798
    %2800 = vrot.lane.b32.xlu0 %v2785, 4
    %v2801 = vpop.permute.xlu0 %2800
    %v2804 = vsel %vm259, %v2372, %v2791
    %v2805 = vsel %vm259, %v2377, %v2793
    %v2806 = vsel %vm883, %v2804, %v2799
    %v2807 = vsel %vm883, %v2805, %v2801
    %v2808 = vlaneseq
    %v2809 = vshrl.u32 %v2808, 7
    %v2810 = vsub.s32 0, %v2809
    %v2811 = vrot.slane %v2177, %v2810
    %v2813 = vsel %vm890, %v2806, 0
    %v2816 = vsel %vm890, %v2807, 0
    %v2819 = vsel %vm897, %v2176, 0
    %2821 = vmatprep.subr.mxu0 0.0
    %2822 = vmatpush1.msra.mxu0 0.0
    %2823 = vmatprep.subr.mxu0 0.0
    %2824 = vmatpush1.msra.mxu0 0.0
    %2825 = vmatprep.subr.mxu0 0.0
    %2826 = vmatpush1.msra.mxu0 0.0
    %2827 = vmatprep.subr.mxu0 0.0
    %2828 = vmatpush1.msra.mxu0 0.0
    %2829 = vmatprep.subr.mxu0 0.0
    %2830 = vmatpush1.msra.mxu0 0.0
    %2831 = vmatprep.subr.mxu0 0.0
    %2832 = vmatpush1.msra.mxu0 0.0
    %2833 = vmatprep.subr.mxu0 0.0
    %2834 = vmatpush1.msra.mxu0 0.0
    %2835 = vmatprep.subr.mxu0 0.0
    %2836 = vmatpush1.msra.mxu0 0.0
    %2837 = vmatprep.subr.mxu0 0.0
    %2838 = vmatpush1.msra.mxu0 0.0
    %2839 = vmatprep.subr.mxu0 0.0
    %2840 = vmatpush1.msra.mxu0 0.0
    %2841 = vmatprep.subr.mxu0 0.0
    %2842 = vmatpush1.msra.mxu0 0.0
    %2843 = vmatprep.subr.mxu0 0.0
    %2844 = vmatpush1.msra.mxu0 0.0
    %2845 = vmatprep.subr.mxu0 0.0
    %2846 = vmatpush1.msra.mxu0 0.0
    %2847 = vmatprep.subr.mxu0 0.0
    %2848 = vmatpush1.msra.mxu0 0.0
    %2849 = vmatprep.subr.mxu0 0.0
    %2850 = vmatpush1.msra.mxu0 0.0
    %2851 = vmatprep.subr.mxu0 0.0
    %2852 = vmatpush1.msra.mxu0 %v2819
    %2853 = vmatprep.subr.mxu0 0.0
    %2854 = vmatpush2.msra.mxu0 0.0
    %2855 = vmatprep.subr.mxu0 0.0
    %2856 = vmatpush2.msra.mxu0 0.0
    %2857 = vmatprep.subr.mxu0 0.0
    %2858 = vmatpush2.msra.mxu0 0.0
    %2859 = vmatprep.subr.mxu0 0.0
    %2860 = vmatpush2.msra.mxu0 0.0
    %2861 = vmatprep.subr.mxu0 0.0
    %2862 = vmatpush2.msra.mxu0 0.0
    %2863 = vmatprep.subr.mxu0 0.0
    %2864 = vmatpush2.msra.mxu0 0.0
    %2865 = vmatprep.subr.mxu0 0.0
    %2866 = vmatpush2.msra.mxu0 0.0
    %2867 = vmatprep.subr.mxu0 0.0
    %2868 = vmatpush2.msra.mxu0 0.0
    %2869 = vmatprep.subr.mxu0 0.0
    %2870 = vmatpush2.msra.mxu0 0.0
    %2871 = vmatprep.subr.mxu0 0.0
    %2872 = vmatpush2.msra.mxu0 0.0
    %2873 = vmatprep.subr.mxu0 0.0
    %2874 = vmatpush2.msra.mxu0 0.0
    %2875 = vmatprep.subr.mxu0 0.0
    %2876 = vmatpush2.msra.mxu0 0.0
    %2877 = vmatprep.subr.mxu0 0.0
    %2878 = vmatpush2.msra.mxu0 0.0
    %2879 = vmatprep.subr.mxu0 0.0
    %2880 = vmatpush2.msra.mxu0 0.0
    %2881 = vmatprep.subr.mxu0 0.0
    %2882 = vmatpush2.msra.mxu0 0.0
    %2883 = vmatprep.subr.mxu0 0.0
    %2884 = vmatpush2.msra.mxu0 0.0
    %2885 = vmatprep.mubr.f32.mxu0 0.0
    %2886 = vmatmul.mubr.f32.gmra.mxu0 %v2813
    %v2887 = vpop.f32.mrf.mxu0
    %v2888 = vadd.f32 %v2811, %v2887
    %v2889 = vpop.f32.mrf.mxu0
    %2890 = vmatprep.mubr.f32.mxu0 0.0
    %2891 = vmatmul.mubr.f32.gmra.mxu0 %v2816
    %v2892 = vpop.f32.mrf.mxu0
    %v2893 = vadd.f32 %v2811, %v2892
    %v2894 = vpop.f32.mrf.mxu0
    %2895 = vdwg.mxu0
    %2896 = vrot.lane.b32.xlu0 %v2168, 110
    %v2897 = vpop.permute.xlu0 %2896
    %2898 = vrot.lane.b32.xlu0 %v2173, 110
    %v2899 = vpop.permute.xlu0 %2898
    %2900 = vrot.lane.b32.xlu0 %v2168, 104
    %v2901 = vpop.permute.xlu0 %2900
    %2902 = vrot.lane.b32.xlu0 %v2173, 104
    %v2903 = vpop.permute.xlu0 %2902
    %v2904 = vsel %vm259, %v2897, 0
    %v2906 = vsel %vm259, %v2899, 0
    %v2908 = vsel %vm259, %v2901, 0
    %v2910 = vsel %vm259, %v2903, 0
    %2912 = vmatprep.subr.mxu0 0.0
    %2913 = vmatpush1.xpose.msra.mxu0 0.0
    %2914 = vmatprep.subr.mxu0 0.0
    %2915 = vmatpush1.xpose.msra.mxu0 0.0
    %2916 = vmatprep.subr.mxu0 0.0
    %2917 = vmatpush1.xpose.msra.mxu0 0.0
    %2918 = vmatprep.subr.mxu0 0.0
    %2919 = vmatpush1.xpose.msra.mxu0 0.0
    %2920 = vmatprep.subr.mxu0 0.0
    %2921 = vmatpush1.xpose.msra.mxu0 0.0
    %2922 = vmatprep.subr.mxu0 0.0
    %2923 = vmatpush1.xpose.msra.mxu0 0.0
    %2924 = vmatprep.subr.mxu0 0.0
    %2925 = vmatpush1.xpose.msra.mxu0 0.0
    %2926 = vmatprep.subr.mxu0 0.0
    %2927 = vmatpush1.xpose.msra.mxu0 0.0
    %2928 = vmatprep.subr.mxu0 0.0
    %2929 = vmatpush1.xpose.msra.mxu0 0.0
    %2930 = vmatprep.subr.mxu0 0.0
    %2931 = vmatpush1.xpose.msra.mxu0 0.0
    %2932 = vmatprep.subr.mxu0 0.0
    %2933 = vmatpush1.xpose.msra.mxu0 0.0
    %2934 = vmatprep.subr.mxu0 0.0
    %2935 = vmatpush1.xpose.msra.mxu0 0.0
    %2936 = vmatprep.subr.mxu0 0.0
    %2937 = vmatpush1.xpose.msra.mxu0 0.0
    %2938 = vmatprep.subr.mxu0 0.0
    %2939 = vmatpush1.xpose.msra.mxu0 0.0
    %2940 = vmatprep.subr.mxu0 0.0
    %2941 = vmatpush1.xpose.msra.mxu0 %v2910
    %2942 = vmatprep.subr.mxu0 0.0
    %2943 = vmatpush1.xpose.msra.mxu0 %v2908
    %2944 = vmatprep.subr.mxu0 0.0
    %2945 = vmatpush2.xpose.msra.mxu0 0.0
    %2946 = vmatprep.subr.mxu0 0.0
    %2947 = vmatpush2.xpose.msra.mxu0 0.0
    %2948 = vmatprep.subr.mxu0 0.0
    %2949 = vmatpush2.xpose.msra.mxu0 0.0
    %2950 = vmatprep.subr.mxu0 0.0
    %2951 = vmatpush2.xpose.msra.mxu0 0.0
    %2952 = vmatprep.subr.mxu0 0.0
    %2953 = vmatpush2.xpose.msra.mxu0 0.0
    %2954 = vmatprep.subr.mxu0 0.0
    %2955 = vmatpush2.xpose.msra.mxu0 0.0
    %2956 = vmatprep.subr.mxu0 0.0
    %2957 = vmatpush2.xpose.msra.mxu0 0.0
    %2958 = vmatprep.subr.mxu0 0.0
    %2959 = vmatpush2.xpose.msra.mxu0 0.0
    %2960 = vmatprep.subr.mxu0 0.0
    %2961 = vmatpush2.xpose.msra.mxu0 0.0
    %2962 = vmatprep.subr.mxu0 0.0
    %2963 = vmatpush2.xpose.msra.mxu0 0.0
    %2964 = vmatprep.subr.mxu0 0.0
    %2965 = vmatpush2.xpose.msra.mxu0 0.0
    %2966 = vmatprep.subr.mxu0 0.0
    %2967 = vmatpush2.xpose.msra.mxu0 0.0
    %2968 = vmatprep.subr.mxu0 0.0
    %2969 = vmatpush2.xpose.msra.mxu0 0.0
    %2970 = vmatprep.subr.mxu0 0.0
    %2971 = vmatpush2.xpose.msra.mxu0 0.0
    %2972 = vmatprep.subr.mxu0 0.0
    %2973 = vmatpush2.xpose.msra.mxu0 0.0
    %2974 = vmatprep.subr.mxu0 0.0
    %2975 = vmatpush2.xpose.msra.mxu0 0.0
    %2976 = vmatprep.mubr.f32.mxu0 0.0
    %2977 = vmatmul.mubr.f32.gmra.mxu0 %v2904
    %v2978 = vpop.f32.mrf.mxu0
    %v2979 = vadd.f32 0.0, %v2978
    %v2980 = vpop.f32.mrf.mxu0
    %2981 = vmatprep.mubr.f32.mxu0 0.0
    %2982 = vmatmul.mubr.f32.gmra.mxu0 %v2906
    %v2983 = vpop.f32.mrf.mxu0
    %v2984 = vadd.f32 0.0, %v2983
    %v2985 = vpop.f32.mrf.mxu0
    %2986 = vdwg.mxu0
    %v2987 = vmul.f32 %v2979, 0.70710677
    %v2988 = vmul.f32 %v2984, 0.70710677
    %v2989 = vadd.f32 %v2987, %v119
    %v2990 = vadd.f32 %v2988, %v120
    %v2991 = vsel %vm347, %v2989, -inf
    %2992 = vmax.xlane.f32.xlu0 %v2991
    %v2993 = vpop.xlane.xlu0 %2992
    %v2994 = vsel %vm347, %v2990, -inf
    %2995 = vmax.xlane.f32.xlu0 %v2994
    %v2996 = vpop.xlane.xlu0 %2995
    %v2997 = vsub.f32 %v2989, %v2993
    %v2998 = vsub.f32 %v2990, %v2996
    %v2999 = vmul.f32 %v2997, 1.442695
    %v3000 = vpow.pop %v2999
    %v3001 = vmul.f32 %v2998, 1.442695
    %v3002 = vpow.pop %v3001
    %v3003 = vsel %vm347, %v3000, 0.0
    %3004 = vadd.xlane.f32.xlu0 %v3003
    %v3005 = vpop.xlane.xlu0 %3004
    %v3006 = vsel %vm347, %v3002, 0.0
    %3007 = vadd.xlane.f32.xlu0 %v3006
    %v3008 = vpop.xlane.xlu0 %3007
    %v3009 = vrcp.pop %v3005
    %v3010 = vmul.f32 %v3000, %v3009
    %v3011 = vrcp.pop %v3008
    %v3012 = vmul.f32 %v3002, %v3011
    %3013 = vrot.lane.b32.xlu0 %v2168, 98
    %v3014 = vpop.permute.xlu0 %3013
    %3015 = vrot.lane.b32.xlu0 %v2173, 98
    %v3016 = vpop.permute.xlu0 %3015
    %v3020 = vsel %vm347, %v3010, 0
    %v3023 = vsel %vm347, %v3012, 0
    %3025 = vmatprep.subr.mxu0 0.0
    %3026 = vmatpush1.msra.mxu0 0.0
    %3027 = vmatprep.subr.mxu0 0.0
    %3028 = vmatpush1.msra.mxu0 0.0
    %3029 = vmatprep.subr.mxu0 0.0
    %3030 = vmatpush1.msra.mxu0 0.0
    %3031 = vmatprep.subr.mxu0 0.0
    %3032 = vmatpush1.msra.mxu0 0.0
    %3033 = vmatprep.subr.mxu0 0.0
    %3034 = vmatpush1.msra.mxu0 0.0
    %3035 = vmatprep.subr.mxu0 0.0
    %3036 = vmatpush1.msra.mxu0 0.0
    %3037 = vmatprep.subr.mxu0 0.0
    %3038 = vmatpush1.msra.mxu0 0.0
    %3039 = vmatprep.subr.mxu0 0.0
    %3040 = vmatpush1.msra.mxu0 0.0
    %3041 = vmatprep.subr.mxu0 0.0
    %3042 = vmatpush1.msra.mxu0 0.0
    %3043 = vmatprep.subr.mxu0 0.0
    %3044 = vmatpush1.msra.mxu0 0.0
    %3045 = vmatprep.subr.mxu0 0.0
    %3046 = vmatpush1.msra.mxu0 0.0
    %3047 = vmatprep.subr.mxu0 0.0
    %3048 = vmatpush1.msra.mxu0 0.0
    %3049 = vmatprep.subr.mxu0 0.0
    %3050 = vmatpush1.msra.mxu0 0.0
    %3051 = vmatprep.subr.mxu0 0.0
    %3052 = vmatpush1.msra.mxu0 0.0
    %3053 = vmatprep.subr.mxu0 0.0
    %3054 = vmatpush1.msra.mxu0 %v3016
    %3055 = vmatprep.subr.mxu0 0.0
    %3056 = vmatpush1.msra.mxu0 %v3014
    %3057 = vmatprep.subr.mxu0 0.0
    %3058 = vmatpush2.msra.mxu0 0.0
    %3059 = vmatprep.subr.mxu0 0.0
    %3060 = vmatpush2.msra.mxu0 0.0
    %3061 = vmatprep.subr.mxu0 0.0
    %3062 = vmatpush2.msra.mxu0 0.0
    %3063 = vmatprep.subr.mxu0 0.0
    %3064 = vmatpush2.msra.mxu0 0.0
    %3065 = vmatprep.subr.mxu0 0.0
    %3066 = vmatpush2.msra.mxu0 0.0
    %3067 = vmatprep.subr.mxu0 0.0
    %3068 = vmatpush2.msra.mxu0 0.0
    %3069 = vmatprep.subr.mxu0 0.0
    %3070 = vmatpush2.msra.mxu0 0.0
    %3071 = vmatprep.subr.mxu0 0.0
    %3072 = vmatpush2.msra.mxu0 0.0
    %3073 = vmatprep.subr.mxu0 0.0
    %3074 = vmatpush2.msra.mxu0 0.0
    %3075 = vmatprep.subr.mxu0 0.0
    %3076 = vmatpush2.msra.mxu0 0.0
    %3077 = vmatprep.subr.mxu0 0.0
    %3078 = vmatpush2.msra.mxu0 0.0
    %3079 = vmatprep.subr.mxu0 0.0
    %3080 = vmatpush2.msra.mxu0 0.0
    %3081 = vmatprep.subr.mxu0 0.0
    %3082 = vmatpush2.msra.mxu0 0.0
    %3083 = vmatprep.subr.mxu0 0.0
    %3084 = vmatpush2.msra.mxu0 0.0
    %3085 = vmatprep.subr.mxu0 0.0
    %3086 = vmatpush2.msra.mxu0 0.0
    %3087 = vmatprep.subr.mxu0 0.0
    %3088 = vmatpush2.msra.mxu0 0.0
    %3089 = vmatprep.mubr.f32.mxu0 0.0
    %3090 = vmatmul.mubr.f32.gmra.mxu0 %v3020
    %v3091 = vpop.f32.mrf.mxu0
    %v3092 = vadd.f32 0.0, %v3091
    %v3093 = vpop.f32.mrf.mxu0
    %3094 = vmatprep.mubr.f32.mxu0 0.0
    %3095 = vmatmul.mubr.f32.gmra.mxu0 %v3023
    %v3096 = vpop.f32.mrf.mxu0
    %v3097 = vadd.f32 0.0, %v3096
    %v3098 = vpop.f32.mrf.mxu0
    %3099 = vdwg.mxu0
    %3100 = vrot.lane.b32.xlu0 %v2168, 108
    %v3101 = vpop.permute.xlu0 %3100
    %3102 = vrot.lane.b32.xlu0 %v2173, 108
    %v3103 = vpop.permute.xlu0 %3102
    %3104 = vrot.lane.b32.xlu0 %v2168, 102
    %v3105 = vpop.permute.xlu0 %3104
    %3106 = vrot.lane.b32.xlu0 %v2173, 102
    %v3107 = vpop.permute.xlu0 %3106
    %v3108 = vsel %vm259, %v3101, 0
    %v3110 = vsel %vm259, %v3103, 0
    %v3112 = vsel %vm259, %v3105, 0
    %v3114 = vsel %vm259, %v3107, 0
    %3116 = vmatprep.subr.mxu0 0.0
    %3117 = vmatpush1.xpose.msra.mxu0 0.0
    %3118 = vmatprep.subr.mxu0 0.0
    %3119 = vmatpush1.xpose.msra.mxu0 0.0
    %3120 = vmatprep.subr.mxu0 0.0
    %3121 = vmatpush1.xpose.msra.mxu0 0.0
    %3122 = vmatprep.subr.mxu0 0.0
    %3123 = vmatpush1.xpose.msra.mxu0 0.0
    %3124 = vmatprep.subr.mxu0 0.0
    %3125 = vmatpush1.xpose.msra.mxu0 0.0
    %3126 = vmatprep.subr.mxu0 0.0
    %3127 = vmatpush1.xpose.msra.mxu0 0.0
    %3128 = vmatprep.subr.mxu0 0.0
    %3129 = vmatpush1.xpose.msra.mxu0 0.0
    %3130 = vmatprep.subr.mxu0 0.0
    %3131 = vmatpush1.xpose.msra.mxu0 0.0
    %3132 = vmatprep.subr.mxu0 0.0
    %3133 = vmatpush1.xpose.msra.mxu0 0.0
    %3134 = vmatprep.subr.mxu0 0.0
    %3135 = vmatpush1.xpose.msra.mxu0 0.0
    %3136 = vmatprep.subr.mxu0 0.0
    %3137 = vmatpush1.xpose.msra.mxu0 0.0
    %3138 = vmatprep.subr.mxu0 0.0
    %3139 = vmatpush1.xpose.msra.mxu0 0.0
    %3140 = vmatprep.subr.mxu0 0.0
    %3141 = vmatpush1.xpose.msra.mxu0 0.0
    %3142 = vmatprep.subr.mxu0 0.0
    %3143 = vmatpush1.xpose.msra.mxu0 0.0
    %3144 = vmatprep.subr.mxu0 0.0
    %3145 = vmatpush1.xpose.msra.mxu0 %v3114
    %3146 = vmatprep.subr.mxu0 0.0
    %3147 = vmatpush1.xpose.msra.mxu0 %v3112
    %3148 = vmatprep.subr.mxu0 0.0
    %3149 = vmatpush2.xpose.msra.mxu0 0.0
    %3150 = vmatprep.subr.mxu0 0.0
    %3151 = vmatpush2.xpose.msra.mxu0 0.0
    %3152 = vmatprep.subr.mxu0 0.0
    %3153 = vmatpush2.xpose.msra.mxu0 0.0
    %3154 = vmatprep.subr.mxu0 0.0
    %3155 = vmatpush2.xpose.msra.mxu0 0.0
    %3156 = vmatprep.subr.mxu0 0.0
    %3157 = vmatpush2.xpose.msra.mxu0 0.0
    %3158 = vmatprep.subr.mxu0 0.0
    %3159 = vmatpush2.xpose.msra.mxu0 0.0
    %3160 = vmatprep.subr.mxu0 0.0
    %3161 = vmatpush2.xpose.msra.mxu0 0.0
    %3162 = vmatprep.subr.mxu0 0.0
    %3163 = vmatpush2.xpose.msra.mxu0 0.0
    %3164 = vmatprep.subr.mxu0 0.0
    %3165 = vmatpush2.xpose.msra.mxu0 0.0
    %3166 = vmatprep.subr.mxu0 0.0
    %3167 = vmatpush2.xpose.msra.mxu0 0.0
    %3168 = vmatprep.subr.mxu0 0.0
    %3169 = vmatpush2.xpose.msra.mxu0 0.0
    %3170 = vmatprep.subr.mxu0 0.0
    %3171 = vmatpush2.xpose.msra.mxu0 0.0
    %3172 = vmatprep.subr.mxu0 0.0
    %3173 = vmatpush2.xpose.msra.mxu0 0.0
    %3174 = vmatprep.subr.mxu0 0.0
    %3175 = vmatpush2.xpose.msra.mxu0 0.0
    %3176 = vmatprep.subr.mxu0 0.0
    %3177 = vmatpush2.xpose.msra.mxu0 0.0
    %3178 = vmatprep.subr.mxu0 0.0
    %3179 = vmatpush2.xpose.msra.mxu0 0.0
    %3180 = vmatprep.mubr.f32.mxu0 0.0
    %3181 = vmatmul.mubr.f32.gmra.mxu0 %v3108
    %v3182 = vpop.f32.mrf.mxu0
    %v3183 = vadd.f32 0.0, %v3182
    %v3184 = vpop.f32.mrf.mxu0
    %3185 = vmatprep.mubr.f32.mxu0 0.0
    %3186 = vmatmul.mubr.f32.gmra.mxu0 %v3110
    %v3187 = vpop.f32.mrf.mxu0
    %v3188 = vadd.f32 0.0, %v3187
    %v3189 = vpop.f32.mrf.mxu0
    %3190 = vdwg.mxu0
    %v3191 = vmul.f32 %v3183, 0.70710677
    %v3192 = vmul.f32 %v3188, 0.70710677
    %v3193 = vadd.f32 %v3191, %v119
    %v3194 = vadd.f32 %v3192, %v120
    %v3195 = vsel %vm347, %v3193, -inf
    %3196 = vmax.xlane.f32.xlu0 %v3195
    %v3197 = vpop.xlane.xlu0 %3196
    %v3198 = vsel %vm347, %v3194, -inf
    %3199 = vmax.xlane.f32.xlu0 %v3198
    %v3200 = vpop.xlane.xlu0 %3199
    %v3201 = vsub.f32 %v3193, %v3197
    %v3202 = vsub.f32 %v3194, %v3200
    %v3203 = vmul.f32 %v3201, 1.442695
    %v3204 = vpow.pop %v3203
    %v3205 = vmul.f32 %v3202, 1.442695
    %v3206 = vpow.pop %v3205
    %v3207 = vsel %vm347, %v3204, 0.0
    %3208 = vadd.xlane.f32.xlu0 %v3207
    %v3209 = vpop.xlane.xlu0 %3208
    %v3210 = vsel %vm347, %v3206, 0.0
    %3211 = vadd.xlane.f32.xlu0 %v3210
    %v3212 = vpop.xlane.xlu0 %3211
    %v3213 = vrcp.pop %v3209
    %v3214 = vmul.f32 %v3204, %v3213
    %v3215 = vrcp.pop %v3212
    %v3216 = vmul.f32 %v3206, %v3215
    %3217 = vrot.lane.b32.xlu0 %v2168, 96
    %v3218 = vpop.permute.xlu0 %3217
    %3219 = vrot.lane.b32.xlu0 %v2173, 96
    %v3220 = vpop.permute.xlu0 %3219
    %v3224 = vsel %vm347, %v3214, 0
    %v3227 = vsel %vm347, %v3216, 0
    %3229 = vmatprep.subr.mxu0 0.0
    %3230 = vmatpush1.msra.mxu0 0.0
    %3231 = vmatprep.subr.mxu0 0.0
    %3232 = vmatpush1.msra.mxu0 0.0
    %3233 = vmatprep.subr.mxu0 0.0
    %3234 = vmatpush1.msra.mxu0 0.0
    %3235 = vmatprep.subr.mxu0 0.0
    %3236 = vmatpush1.msra.mxu0 0.0
    %3237 = vmatprep.subr.mxu0 0.0
    %3238 = vmatpush1.msra.mxu0 0.0
    %3239 = vmatprep.subr.mxu0 0.0
    %3240 = vmatpush1.msra.mxu0 0.0
    %3241 = vmatprep.subr.mxu0 0.0
    %3242 = vmatpush1.msra.mxu0 0.0
    %3243 = vmatprep.subr.mxu0 0.0
    %3244 = vmatpush1.msra.mxu0 0.0
    %3245 = vmatprep.subr.mxu0 0.0
    %3246 = vmatpush1.msra.mxu0 0.0
    %3247 = vmatprep.subr.mxu0 0.0
    %3248 = vmatpush1.msra.mxu0 0.0
    %3249 = vmatprep.subr.mxu0 0.0
    %3250 = vmatpush1.msra.mxu0 0.0
    %3251 = vmatprep.subr.mxu0 0.0
    %3252 = vmatpush1.msra.mxu0 0.0
    %3253 = vmatprep.subr.mxu0 0.0
    %3254 = vmatpush1.msra.mxu0 0.0
    %3255 = vmatprep.subr.mxu0 0.0
    %3256 = vmatpush1.msra.mxu0 0.0
    %3257 = vmatprep.subr.mxu0 0.0
    %3258 = vmatpush1.msra.mxu0 %v3220
    %3259 = vmatprep.subr.mxu0 0.0
    %3260 = vmatpush1.msra.mxu0 %v3218
    %3261 = vmatprep.subr.mxu0 0.0
    %3262 = vmatpush2.msra.mxu0 0.0
    %3263 = vmatprep.subr.mxu0 0.0
    %3264 = vmatpush2.msra.mxu0 0.0
    %3265 = vmatprep.subr.mxu0 0.0
    %3266 = vmatpush2.msra.mxu0 0.0
    %3267 = vmatprep.subr.mxu0 0.0
    %3268 = vmatpush2.msra.mxu0 0.0
    %3269 = vmatprep.subr.mxu0 0.0
    %3270 = vmatpush2.msra.mxu0 0.0
    %3271 = vmatprep.subr.mxu0 0.0
    %3272 = vmatpush2.msra.mxu0 0.0
    %3273 = vmatprep.subr.mxu0 0.0
    %3274 = vmatpush2.msra.mxu0 0.0
    %3275 = vmatprep.subr.mxu0 0.0
    %3276 = vmatpush2.msra.mxu0 0.0
    %3277 = vmatprep.subr.mxu0 0.0
    %3278 = vmatpush2.msra.mxu0 0.0
    %3279 = vmatprep.subr.mxu0 0.0
    %3280 = vmatpush2.msra.mxu0 0.0
    %3281 = vmatprep.subr.mxu0 0.0
    %3282 = vmatpush2.msra.mxu0 0.0
    %3283 = vmatprep.subr.mxu0 0.0
    %3284 = vmatpush2.msra.mxu0 0.0
    %3285 = vmatprep.subr.mxu0 0.0
    %3286 = vmatpush2.msra.mxu0 0.0
    %3287 = vmatprep.subr.mxu0 0.0
    %3288 = vmatpush2.msra.mxu0 0.0
    %3289 = vmatprep.subr.mxu0 0.0
    %3290 = vmatpush2.msra.mxu0 0.0
    %3291 = vmatprep.subr.mxu0 0.0
    %3292 = vmatpush2.msra.mxu0 0.0
    %3293 = vmatprep.mubr.f32.mxu0 0.0
    %3294 = vmatmul.mubr.f32.gmra.mxu0 %v3224
    %v3295 = vpop.f32.mrf.mxu0
    %v3296 = vadd.f32 0.0, %v3295
    %v3297 = vpop.f32.mrf.mxu0
    %3298 = vmatprep.mubr.f32.mxu0 0.0
    %3299 = vmatmul.mubr.f32.gmra.mxu0 %v3227
    %v3300 = vpop.f32.mrf.mxu0
    %v3301 = vadd.f32 0.0, %v3300
    %v3302 = vpop.f32.mrf.mxu0
    %3303 = vdwg.mxu0
    %3304 = vrot.lane.b32.xlu0 %v2168, 106
    %v3305 = vpop.permute.xlu0 %3304
    %3306 = vrot.lane.b32.xlu0 %v2173, 106
    %v3307 = vpop.permute.xlu0 %3306
    %3308 = vrot.lane.b32.xlu0 %v2168, 100
    %v3309 = vpop.permute.xlu0 %3308
    %3310 = vrot.lane.b32.xlu0 %v2173, 100
    %v3311 = vpop.permute.xlu0 %3310
    %v3312 = vsel %vm259, %v3305, 0
    %v3314 = vsel %vm259, %v3307, 0
    %v3316 = vsel %vm259, %v3309, 0
    %v3318 = vsel %vm259, %v3311, 0
    %3320 = vmatprep.subr.mxu0 0.0
    %3321 = vmatpush1.xpose.msra.mxu0 0.0
    %3322 = vmatprep.subr.mxu0 0.0
    %3323 = vmatpush1.xpose.msra.mxu0 0.0
    %3324 = vmatprep.subr.mxu0 0.0
    %3325 = vmatpush1.xpose.msra.mxu0 0.0
    %3326 = vmatprep.subr.mxu0 0.0
    %3327 = vmatpush1.xpose.msra.mxu0 0.0
    %3328 = vmatprep.subr.mxu0 0.0
    %3329 = vmatpush1.xpose.msra.mxu0 0.0
    %3330 = vmatprep.subr.mxu0 0.0
    %3331 = vmatpush1.xpose.msra.mxu0 0.0
    %3332 = vmatprep.subr.mxu0 0.0
    %3333 = vmatpush1.xpose.msra.mxu0 0.0
    %3334 = vmatprep.subr.mxu0 0.0
    %3335 = vmatpush1.xpose.msra.mxu0 0.0
    %3336 = vmatprep.subr.mxu0 0.0
    %3337 = vmatpush1.xpose.msra.mxu0 0.0
    %3338 = vmatprep.subr.mxu0 0.0
    %3339 = vmatpush1.xpose.msra.mxu0 0.0
    %3340 = vmatprep.subr.mxu0 0.0
    %3341 = vmatpush1.xpose.msra.mxu0 0.0
    %3342 = vmatprep.subr.mxu0 0.0
    %3343 = vmatpush1.xpose.msra.mxu0 0.0
    %3344 = vmatprep.subr.mxu0 0.0
    %3345 = vmatpush1.xpose.msra.mxu0 0.0
    %3346 = vmatprep.subr.mxu0 0.0
    %3347 = vmatpush1.xpose.msra.mxu0 0.0
    %3348 = vmatprep.subr.mxu0 0.0
    %3349 = vmatpush1.xpose.msra.mxu0 %v3318
    %3350 = vmatprep.subr.mxu0 0.0
    %3351 = vmatpush1.xpose.msra.mxu0 %v3316
    %3352 = vmatprep.subr.mxu0 0.0
    %3353 = vmatpush2.xpose.msra.mxu0 0.0
    %3354 = vmatprep.subr.mxu0 0.0
    %3355 = vmatpush2.xpose.msra.mxu0 0.0
    %3356 = vmatprep.subr.mxu0 0.0
    %3357 = vmatpush2.xpose.msra.mxu0 0.0
    %3358 = vmatprep.subr.mxu0 0.0
    %3359 = vmatpush2.xpose.msra.mxu0 0.0
    %3360 = vmatprep.subr.mxu0 0.0
    %3361 = vmatpush2.xpose.msra.mxu0 0.0
    %3362 = vmatprep.subr.mxu0 0.0
    %3363 = vmatpush2.xpose.msra.mxu0 0.0
    %3364 = vmatprep.subr.mxu0 0.0
    %3365 = vmatpush2.xpose.msra.mxu0 0.0
    %3366 = vmatprep.subr.mxu0 0.0
    %3367 = vmatpush2.xpose.msra.mxu0 0.0
    %3368 = vmatprep.subr.mxu0 0.0
    %3369 = vmatpush2.xpose.msra.mxu0 0.0
    %3370 = vmatprep.subr.mxu0 0.0
    %3371 = vmatpush2.xpose.msra.mxu0 0.0
    %3372 = vmatprep.subr.mxu0 0.0
    %3373 = vmatpush2.xpose.msra.mxu0 0.0
    %3374 = vmatprep.subr.mxu0 0.0
    %3375 = vmatpush2.xpose.msra.mxu0 0.0
    %3376 = vmatprep.subr.mxu0 0.0
    %3377 = vmatpush2.xpose.msra.mxu0 0.0
    %3378 = vmatprep.subr.mxu0 0.0
    %3379 = vmatpush2.xpose.msra.mxu0 0.0
    %3380 = vmatprep.subr.mxu0 0.0
    %3381 = vmatpush2.xpose.msra.mxu0 0.0
    %3382 = vmatprep.subr.mxu0 0.0
    %3383 = vmatpush2.xpose.msra.mxu0 0.0
    %3384 = vmatprep.mubr.f32.mxu0 0.0
    %3385 = vmatmul.mubr.f32.gmra.mxu0 %v3312
    %v3386 = vpop.f32.mrf.mxu0
    %v3387 = vadd.f32 0.0, %v3386
    %v3388 = vpop.f32.mrf.mxu0
    %3389 = vmatprep.mubr.f32.mxu0 0.0
    %3390 = vmatmul.mubr.f32.gmra.mxu0 %v3314
    %v3391 = vpop.f32.mrf.mxu0
    %v3392 = vadd.f32 0.0, %v3391
    %v3393 = vpop.f32.mrf.mxu0
    %3394 = vdwg.mxu0
    %v3395 = vmul.f32 %v3387, 0.70710677
    %v3396 = vmul.f32 %v3392, 0.70710677
    %v3397 = vadd.f32 %v3395, %v119
    %v3398 = vadd.f32 %v3396, %v120
    %v3399 = vsel %vm347, %v3397, -inf
    %3400 = vmax.xlane.f32.xlu0 %v3399
    %v3401 = vpop.xlane.xlu0 %3400
    %v3402 = vsel %vm347, %v3398, -inf
    %3403 = vmax.xlane.f32.xlu0 %v3402
    %v3404 = vpop.xlane.xlu0 %3403
    %v3405 = vsub.f32 %v3397, %v3401
    %v3406 = vsub.f32 %v3398, %v3404
    %v3407 = vmul.f32 %v3405, 1.442695
    %v3408 = vpow.pop %v3407
    %v3409 = vmul.f32 %v3406, 1.442695
    %v3410 = vpow.pop %v3409
    %v3411 = vsel %vm347, %v3408, 0.0
    %3412 = vadd.xlane.f32.xlu0 %v3411
    %v3413 = vpop.xlane.xlu0 %3412
    %v3414 = vsel %vm347, %v3410, 0.0
    %3415 = vadd.xlane.f32.xlu0 %v3414
    %v3416 = vpop.xlane.xlu0 %3415
    %v3417 = vrcp.pop %v3413
    %v3418 = vmul.f32 %v3408, %v3417
    %v3419 = vrcp.pop %v3416
    %v3420 = vmul.f32 %v3410, %v3419
    %3421 = vrot.lane.b32.xlu0 %v2168, 94
    %v3422 = vpop.permute.xlu0 %3421
    %3423 = vrot.lane.b32.xlu0 %v2173, 94
    %v3424 = vpop.permute.xlu0 %3423
    %v3428 = vsel %vm347, %v3418, 0
    %v3431 = vsel %vm347, %v3420, 0
    %3433 = vmatprep.subr.mxu0 0.0
    %3434 = vmatpush1.msra.mxu0 0.0
    %3435 = vmatprep.subr.mxu0 0.0
    %3436 = vmatpush1.msra.mxu0 0.0
    %3437 = vmatprep.subr.mxu0 0.0
    %3438 = vmatpush1.msra.mxu0 0.0
    %3439 = vmatprep.subr.mxu0 0.0
    %3440 = vmatpush1.msra.mxu0 0.0
    %3441 = vmatprep.subr.mxu0 0.0
    %3442 = vmatpush1.msra.mxu0 0.0
    %3443 = vmatprep.subr.mxu0 0.0
    %3444 = vmatpush1.msra.mxu0 0.0
    %3445 = vmatprep.subr.mxu0 0.0
    %3446 = vmatpush1.msra.mxu0 0.0
    %3447 = vmatprep.subr.mxu0 0.0
    %3448 = vmatpush1.msra.mxu0 0.0
    %3449 = vmatprep.subr.mxu0 0.0
    %3450 = vmatpush1.msra.mxu0 0.0
    %3451 = vmatprep.subr.mxu0 0.0
    %3452 = vmatpush1.msra.mxu0 0.0
    %3453 = vmatprep.subr.mxu0 0.0
    %3454 = vmatpush1.msra.mxu0 0.0
    %3455 = vmatprep.subr.mxu0 0.0
    %3456 = vmatpush1.msra.mxu0 0.0
    %3457 = vmatprep.subr.mxu0 0.0
    %3458 = vmatpush1.msra.mxu0 0.0
    %3459 = vmatprep.subr.mxu0 0.0
    %3460 = vmatpush1.msra.mxu0 0.0
    %3461 = vmatprep.subr.mxu0 0.0
    %3462 = vmatpush1.msra.mxu0 %v3424
    %3463 = vmatprep.subr.mxu0 0.0
    %3464 = vmatpush1.msra.mxu0 %v3422
    %3465 = vmatprep.subr.mxu0 0.0
    %3466 = vmatpush2.msra.mxu0 0.0
    %3467 = vmatprep.subr.mxu0 0.0
    %3468 = vmatpush2.msra.mxu0 0.0
    %3469 = vmatprep.subr.mxu0 0.0
    %3470 = vmatpush2.msra.mxu0 0.0
    %3471 = vmatprep.subr.mxu0 0.0
    %3472 = vmatpush2.msra.mxu0 0.0
    %3473 = vmatprep.subr.mxu0 0.0
    %3474 = vmatpush2.msra.mxu0 0.0
    %3475 = vmatprep.subr.mxu0 0.0
    %3476 = vmatpush2.msra.mxu0 0.0
    %3477 = vmatprep.subr.mxu0 0.0
    %3478 = vmatpush2.msra.mxu0 0.0
    %3479 = vmatprep.subr.mxu0 0.0
    %3480 = vmatpush2.msra.mxu0 0.0
    %3481 = vmatprep.subr.mxu0 0.0
    %3482 = vmatpush2.msra.mxu0 0.0
    %3483 = vmatprep.subr.mxu0 0.0
    %3484 = vmatpush2.msra.mxu0 0.0
    %3485 = vmatprep.subr.mxu0 0.0
    %3486 = vmatpush2.msra.mxu0 0.0
    %3487 = vmatprep.subr.mxu0 0.0
    %3488 = vmatpush2.msra.mxu0 0.0
    %3489 = vmatprep.subr.mxu0 0.0
    %3490 = vmatpush2.msra.mxu0 0.0
    %3491 = vmatprep.subr.mxu0 0.0
    %3492 = vmatpush2.msra.mxu0 0.0
    %3493 = vmatprep.subr.mxu0 0.0
    %3494 = vmatpush2.msra.mxu0 0.0
    %3495 = vmatprep.subr.mxu0 0.0
    %3496 = vmatpush2.msra.mxu0 0.0
    %3497 = vmatprep.mubr.f32.mxu0 0.0
    %3498 = vmatmul.mubr.f32.gmra.mxu0 %v3428
    %v3499 = vpop.f32.mrf.mxu0
    %v3500 = vadd.f32 0.0, %v3499
    %v3501 = vpop.f32.mrf.mxu0
    %3502 = vmatprep.mubr.f32.mxu0 0.0
    %3503 = vmatmul.mubr.f32.gmra.mxu0 %v3431
    %v3504 = vpop.f32.mrf.mxu0
    %v3505 = vadd.f32 0.0, %v3504
    %v3506 = vpop.f32.mrf.mxu0
    %3507 = vdwg.mxu0
    %3510 = vrot.lane.b32.xlu0 %v3296, 2
    %v3511 = vpop.permute.xlu0 %3510
    %3512 = vrot.lane.b32.xlu0 %v3301, 2
    %v3513 = vpop.permute.xlu0 %3512
    %3518 = vrot.lane.b32.xlu0 %v3500, 4
    %v3519 = vpop.permute.xlu0 %3518
    %3520 = vrot.lane.b32.xlu0 %v3505, 4
    %v3521 = vpop.permute.xlu0 %3520
    %v3524 = vsel %vm259, %v3092, %v3511
    %v3525 = vsel %vm259, %v3097, %v3513
    %v3526 = vsel %vm883, %v3524, %v3519
    %v3527 = vsel %vm883, %v3525, %v3521
    %3528 = vrot.lane.b32.xlu0 %v2176, 122
    %v3529 = vpop.permute.xlu0 %3528
    %3531 = vrot.lane.b32.xlu0 %v2811, 122
    %v3532 = vpop.permute.xlu0 %3531
    %v3535 = vsel %vm890, %v3526, 0
    %v3538 = vsel %vm890, %v3527, 0
    %v3540 = vsel %vm897, %v3529, 0
    %3542 = vmatprep.subr.mxu0 0.0
    %3543 = vmatpush1.msra.mxu0 0.0
    %3544 = vmatprep.subr.mxu0 0.0
    %3545 = vmatpush1.msra.mxu0 0.0
    %3546 = vmatprep.subr.mxu0 0.0
    %3547 = vmatpush1.msra.mxu0 0.0
    %3548 = vmatprep.subr.mxu0 0.0
    %3549 = vmatpush1.msra.mxu0 0.0
    %3550 = vmatprep.subr.mxu0 0.0
    %3551 = vmatpush1.msra.mxu0 0.0
    %3552 = vmatprep.subr.mxu0 0.0
    %3553 = vmatpush1.msra.mxu0 0.0
    %3554 = vmatprep.subr.mxu0 0.0
    %3555 = vmatpush1.msra.mxu0 0.0
    %3556 = vmatprep.subr.mxu0 0.0
    %3557 = vmatpush1.msra.mxu0 0.0
    %3558 = vmatprep.subr.mxu0 0.0
    %3559 = vmatpush1.msra.mxu0 0.0
    %3560 = vmatprep.subr.mxu0 0.0
    %3561 = vmatpush1.msra.mxu0 0.0
    %3562 = vmatprep.subr.mxu0 0.0
    %3563 = vmatpush1.msra.mxu0 0.0
    %3564 = vmatprep.subr.mxu0 0.0
    %3565 = vmatpush1.msra.mxu0 0.0
    %3566 = vmatprep.subr.mxu0 0.0
    %3567 = vmatpush1.msra.mxu0 0.0
    %3568 = vmatprep.subr.mxu0 0.0
    %3569 = vmatpush1.msra.mxu0 0.0
    %3570 = vmatprep.subr.mxu0 0.0
    %3571 = vmatpush1.msra.mxu0 0.0
    %3572 = vmatprep.subr.mxu0 0.0
    %3573 = vmatpush1.msra.mxu0 %v3540
    %3574 = vmatprep.subr.mxu0 0.0
    %3575 = vmatpush2.msra.mxu0 0.0
    %3576 = vmatprep.subr.mxu0 0.0
    %3577 = vmatpush2.msra.mxu0 0.0
    %3578 = vmatprep.subr.mxu0 0.0
    %3579 = vmatpush2.msra.mxu0 0.0
    %3580 = vmatprep.subr.mxu0 0.0
    %3581 = vmatpush2.msra.mxu0 0.0
    %3582 = vmatprep.subr.mxu0 0.0
    %3583 = vmatpush2.msra.mxu0 0.0
    %3584 = vmatprep.subr.mxu0 0.0
    %3585 = vmatpush2.msra.mxu0 0.0
    %3586 = vmatprep.subr.mxu0 0.0
    %3587 = vmatpush2.msra.mxu0 0.0
    %3588 = vmatprep.subr.mxu0 0.0
    %3589 = vmatpush2.msra.mxu0 0.0
    %3590 = vmatprep.subr.mxu0 0.0
    %3591 = vmatpush2.msra.mxu0 0.0
    %3592 = vmatprep.subr.mxu0 0.0
    %3593 = vmatpush2.msra.mxu0 0.0
    %3594 = vmatprep.subr.mxu0 0.0
    %3595 = vmatpush2.msra.mxu0 0.0
    %3596 = vmatprep.subr.mxu0 0.0
    %3597 = vmatpush2.msra.mxu0 0.0
    %3598 = vmatprep.subr.mxu0 0.0
    %3599 = vmatpush2.msra.mxu0 0.0
    %3600 = vmatprep.subr.mxu0 0.0
    %3601 = vmatpush2.msra.mxu0 0.0
    %3602 = vmatprep.subr.mxu0 0.0
    %3603 = vmatpush2.msra.mxu0 0.0
    %3604 = vmatprep.subr.mxu0 0.0
    %3605 = vmatpush2.msra.mxu0 0.0
    %3606 = vmatprep.mubr.f32.mxu0 0.0
    %3607 = vmatmul.mubr.f32.gmra.mxu0 %v3535
    %v3608 = vpop.f32.mrf.mxu0
    %v3609 = vadd.f32 %v3532, %v3608
    %v3610 = vpop.f32.mrf.mxu0
    %3611 = vmatprep.mubr.f32.mxu0 0.0
    %3612 = vmatmul.mubr.f32.gmra.mxu0 %v3538
    %v3613 = vpop.f32.mrf.mxu0
    %v3614 = vadd.f32 %v3532, %v3613
    %v3615 = vpop.f32.mrf.mxu0
    %3616 = vdwg.mxu0
    %v3617 = vld [vmem:[%s5 + $0x6b] sm:$0xff]
    %v3618 = vld [vmem:[%s5 + $0x73] sm:$0xff]
    %3619 = vrot.lane.b32.xlu0 %v2085, 113
    %v3620 = vpop.permute.xlu0 %3619
    %3621 = vrot.lane.b32.xlu0 %v2086, 113
    %v3622 = vpop.permute.xlu0 %3621
    %3625 = vrot.lane.b32.xlu0 %v2085, 125
    %v3626 = vpop.permute.xlu0 %3625
    %3627 = vrot.lane.b32.xlu0 %v2086, 125
    %v3628 = vpop.permute.xlu0 %3627
    %vm3631 = vcmask 23552
    %v3632 = vsel %vm3631, %v3620, %v3626
    %v3633 = vsel %vm3631, %v3622, %v3628
    %v3635 = vrot.slane %v3633, 7
    %v3638 = vrot.slane %v3632, 7
    %v3639 = vsel %vm1718, %v3638, %v3635
    %v3642 = vsel %vm1718, %v3635, %v3638
    %v3643 = vmul.f32 %v3642, %v3617
    %v3644 = vmul.f32 %v3639, %v3618
    %v3645 = vld [vmem:[%s5 + $0xdb] sm:$0xff]
    %v3646 = vld [vmem:[%s5 + $0xe3] sm:$0xff]
    %v3647 = vmul.f32 %v3632, %v3645
    %v3648 = vmul.f32 %v3633, %v3646
    %v3649 = vadd.f32 %v3643, %v3647
    %v3650 = vadd.f32 %v3644, %v3648
    %v3651 = vld [vmem:[%s5 + $0x7b] sm:$0xff]
    %v3652 = vld [vmem:[%s5 + $0x83] sm:$0xff]
    %3653 = vrot.lane.b32.xlu0 %v2085, 112
    %v3654 = vpop.permute.xlu0 %3653
    %3655 = vrot.lane.b32.xlu0 %v2086, 112
    %v3656 = vpop.permute.xlu0 %3655
    %3659 = vrot.lane.b32.xlu0 %v2085, 124
    %v3660 = vpop.permute.xlu0 %3659
    %3661 = vrot.lane.b32.xlu0 %v2086, 124
    %v3662 = vpop.permute.xlu0 %3661
    %v3665 = vsel %vm259, %v3654, %v3660
    %v3666 = vsel %vm259, %v3656, %v3662
    %v3668 = vrot.slane %v3666, 7
    %v3671 = vrot.slane %v3665, 7
    %v3672 = vsel %vm1718, %v3671, %v3668
    %v3675 = vsel %vm1718, %v3668, %v3671
    %v3676 = vmul.f32 %v3675, %v3651
    %v3677 = vmul.f32 %v3672, %v3652
    %v3678 = vld [vmem:[%s5 + $0xeb] sm:$0xff]
    %v3679 = vld [vmem:[%s5 + $0xf3] sm:$0xff]
    %v3680 = vmul.f32 %v3665, %v3678
    %v3681 = vmul.f32 %v3666, %v3679
    %v3682 = vadd.f32 %v3676, %v3680
    %v3683 = vadd.f32 %v3677, %v3681
    %v3684 = vadd.f32 %v3649, %v3682
    %v3685 = vadd.f32 %v3650, %v3683
    %v3686 = vld [vmem:[%s5 + $0x8b] sm:$0xff]
    %v3687 = vld [vmem:[%s5 + $0x93] sm:$0xff]
    %3688 = vrot.lane.b32.xlu0 %v2085, 111
    %v3689 = vpop.permute.xlu0 %3688
    %3690 = vrot.lane.b32.xlu0 %v2086, 111
    %v3691 = vpop.permute.xlu0 %3690
    %3694 = vrot.lane.b32.xlu0 %v2085, 123
    %v3695 = vpop.permute.xlu0 %3694
    %3696 = vrot.lane.b32.xlu0 %v2086, 123
    %v3697 = vpop.permute.xlu0 %3696
    %v3700 = vsel %vm1711, %v3689, %v3695
    %v3701 = vsel %vm1711, %v3691, %v3697
    %v3703 = vrot.slane %v3701, 7
    %v3706 = vrot.slane %v3700, 7
    %v3707 = vsel %vm1718, %v3706, %v3703
    %v3710 = vsel %vm1718, %v3703, %v3706
    %v3711 = vmul.f32 %v3710, %v3686
    %v3712 = vmul.f32 %v3707, %v3687
    %v3713 = vld [vmem:[%s5 + $0xfb] sm:$0xff]
    %v3714 = vld [vmem:[%s5 + $0x103] sm:$0xff]
    %v3715 = vmul.f32 %v3700, %v3713
    %v3716 = vmul.f32 %v3701, %v3714
    %v3717 = vadd.f32 %v3711, %v3715
    %v3718 = vadd.f32 %v3712, %v3716
    %v3719 = vadd.f32 %v3684, %v3717
    %v3720 = vadd.f32 %v3685, %v3718
    %v3721 = vld [vmem:[%s5 + $0x9b] sm:$0xff]
    %v3722 = vld [vmem:[%s5 + $0xa3] sm:$0xff]
    %3725 = vrot.lane.b32.xlu0 %v3721, 6
    %v3726 = vpop.permute.xlu0 %3725
    %3727 = vrot.lane.b32.xlu0 %v3722, 6
    %v3728 = vpop.permute.xlu0 %3727
    %v3731 = vmul.f32 %v2085, %v3726
    %v3732 = vmul.f32 %v2086, %v3728
    %3735 = vrot.lane.b32.xlu0 %v3731, 122
    %v3736 = vpop.permute.xlu0 %3735
    %3737 = vrot.lane.b32.xlu0 %v3732, 122
    %v3738 = vpop.permute.xlu0 %3737
    %v3741 = vadd.f32 %v3719, %v3736
    %v3742 = vadd.f32 %v3720, %v3738
    %v3743 = vld [vmem:[%s5 + $0xab] sm:$0xff]
    %v3744 = vld [vmem:[%s5 + $0xb3] sm:$0xff]
    %3745 = vrot.lane.b32.xlu0 %v2085, 121
    %v3746 = vpop.permute.xlu0 %3745
    %3747 = vrot.lane.b32.xlu0 %v2086, 121
    %v3748 = vpop.permute.xlu0 %3747
    %3751 = vrot.lane.b32.xlu0 %v2085, 5
    %v3752 = vpop.permute.xlu0 %3751
    %3753 = vrot.lane.b32.xlu0 %v2086, 5
    %v3754 = vpop.permute.xlu0 %3753
    %v3757 = vsel %vm1768, %v3746, %v3752
    %v3758 = vsel %vm1768, %v3748, %v3754
    %v3759 = vmul.f32 %v3757, %v3743
    %v3760 = vmul.f32 %v3758, %v3744
    %v3761 = vld [vmem:[%s5 + $0x11b] sm:$0xff]
    %v3762 = vld [vmem:[%s5 + $0x123] sm:$0xff]
    %v3765 = vrot.slane %v3757, 1
    %v3766 = vrot.slane %v3758, 1
    %v3767 = vsel %vm1777, %v3765, %v3766
    %v3771 = vsel %vm1777, %v3766, %v3765
    %v3772 = vmul.f32 %v3767, %v3761
    %v3773 = vmul.f32 %v3771, %v3762
    %v3774 = vadd.f32 %v3759, %v3772
    %v3775 = vadd.f32 %v3760, %v3773
    %v3776 = vadd.f32 %v3741, %v3774
    %v3777 = vadd.f32 %v3742, %v3775
    %v3778 = vld [vmem:[%s5 + $0xbb] sm:$0xff]
    %v3779 = vld [vmem:[%s5 + $0xc3] sm:$0xff]
    %3780 = vrot.lane.b32.xlu0 %v2085, 120
    %v3781 = vpop.permute.xlu0 %3780
    %3782 = vrot.lane.b32.xlu0 %v2086, 120
    %v3783 = vpop.permute.xlu0 %3782
    %3786 = vrot.lane.b32.xlu0 %v2085, 4
    %v3787 = vpop.permute.xlu0 %3786
    %3788 = vrot.lane.b32.xlu0 %v2086, 4
    %v3789 = vpop.permute.xlu0 %3788
    %vm3792 = vcmask 80896
    %v3793 = vsel %vm3792, %v3781, %v3787
    %v3794 = vsel %vm3792, %v3783, %v3789
    %v3795 = vmul.f32 %v3793, %v3778
    %v3796 = vmul.f32 %v3794, %v3779
    %v3797 = vld [vmem:[%s5 + $0x12b] sm:$0xff]
    %v3798 = vld [vmem:[%s5 + $0x133] sm:$0xff]
    %v3801 = vrot.slane %v3793, 1
    %v3802 = vrot.slane %v3794, 1
    %v3803 = vsel %vm1777, %v3801, %v3802
    %v3807 = vsel %vm1777, %v3802, %v3801
    %v3808 = vmul.f32 %v3803, %v3797
    %v3809 = vmul.f32 %v3807, %v3798
    %v3810 = vadd.f32 %v3795, %v3808
    %v3811 = vadd.f32 %v3796, %v3809
    %v3812 = vadd.f32 %v3776, %v3810
    %v3813 = vadd.f32 %v3777, %v3811
    %v3814 = vld [vmem:[%s5 + $0xcb] sm:$0xff]
    %v3815 = vld [vmem:[%s5 + $0xd3] sm:$0xff]
    %3816 = vrot.lane.b32.xlu0 %v2085, 119
    %v3817 = vpop.permute.xlu0 %3816
    %3818 = vrot.lane.b32.xlu0 %v2086, 119
    %v3819 = vpop.permute.xlu0 %3818
    %3822 = vrot.lane.b32.xlu0 %v2085, 3
    %v3823 = vpop.permute.xlu0 %3822
    %3824 = vrot.lane.b32.xlu0 %v2086, 3
    %v3825 = vpop.permute.xlu0 %3824
    %vm3828 = vcmask 72704
    %v3829 = vsel %vm3828, %v3817, %v3823
    %v3830 = vsel %vm3828, %v3819, %v3825
    %v3831 = vmul.f32 %v3829, %v3814
    %v3832 = vmul.f32 %v3830, %v3815
    %v3833 = vld [vmem:[%s5 + $0x13b] sm:$0xff]
    %v3834 = vld [vmem:[%s5 + $0x143] sm:$0xff]
    %v3837 = vrot.slane %v3829, 1
    %v3838 = vrot.slane %v3830, 1
    %v3839 = vsel %vm1777, %v3837, %v3838
    %v3843 = vsel %vm1777, %v3838, %v3837
    %v3844 = vmul.f32 %v3839, %v3833
    %v3845 = vmul.f32 %v3843, %v3834
    %v3846 = vadd.f32 %v3831, %v3844
    %v3847 = vadd.f32 %v3832, %v3845
    %v3848 = vadd.f32 %v3812, %v3846
    %v3849 = vadd.f32 %v3813, %v3847
    %3852 = vrot.lane.b32.xlu0 %v3848, 6
    %v3853 = vpop.permute.xlu0 %3852
    %3854 = vrot.lane.b32.xlu0 %v3849, 6
    %v3855 = vpop.permute.xlu0 %3854
    %3860 = vrot.lane.b32.xlu0 %v3609, 18
    %v3861 = vpop.permute.xlu0 %3860
    %3862 = vrot.lane.b32.xlu0 %v3614, 18
    %v3863 = vpop.permute.xlu0 %3862
    %v3866 = vsel %vm890, %v2888, %v3853
    %v3867 = vsel %vm890, %v2893, %v3855
    %v3868 = vsel %vm1809, %v3866, %v3861
    %v3869 = vsel %vm1809, %v3867, %v3863
    %v3870 = vadd.f32 %v3868, %v2046
    %v3871 = vadd.f32 %v3869, %v2047
    %v3872 = vld [vmem:[%s5 + $0x1] sm:$0x1]
    %v3873 = vsel %vm122, %v3870, 0.0
    %3874 = vadd.xlane.f32.xlu0 %v3873
    %v3875 = vpop.xlane.xlu0 %3874
    %v3876 = vsel %vm122, %v3871, 0.0
    %3877 = vadd.xlane.f32.xlu0 %v3876
    %v3878 = vpop.xlane.xlu0 %3877
    %v3879 = vmul.f32 %v3875, %v129
    %v3880 = vmul.f32 %v3878, %v129
    %v3881 = vsub.f32 %v3870, %v3879
    %v3882 = vsub.f32 %v3871, %v3880
    %v3883 = vmul.f32 %v3881, %v3881
    %v3884 = vmul.f32 %v3882, %v3882
    %v3885 = vsel %vm122, %v3883, 0.0
    %3886 = vadd.xlane.f32.xlu0 %v3885
    %v3887 = vpop.xlane.xlu0 %3886
    %v3888 = vsel %vm122, %v3884, 0.0
    %3889 = vadd.xlane.f32.xlu0 %v3888
    %v3890 = vpop.xlane.xlu0 %3889
    %v3891 = vmul.f32 %v3887, %v129
    %v3892 = vmul.f32 %v3890, %v129
    %v3893 = vadd.f32 %v3891, 1e-06
    %v3894 = vadd.f32 %v3892, 1e-06
    %v3895 = vrsqrt.pop %v3893
    %v3896 = vrsqrt.pop %v3894
    %v3897 = vmul.f32 %v3881, %v3895
    %v3898 = vmul.f32 %v3882, %v3896
    %v3899 = vlaneseq
    %v3900 = vshrl.u32 %v3899, 7
    %v3901 = vsub.s32 0, %v3900
    %v3902 = vrot.slane %v3872, %v3901
    %v3903 = vmul.f32 %v3897, %v3902
    %v3904 = vmul.f32 %v3898, %v3902
    %3906 = vrot.lane.b32.xlu0 %v3902, 104
    %v3907 = vpop.permute.xlu0 %3906
    %v3909 = vadd.f32 %v3903, %v3907
    %v3910 = vadd.f32 %v3904, %v3907
    %v3911 = vld [vmem:[%s5 + $0x1d] sm:$0xff]
    %v3912 = vld [vmem:[%s5 + $0x25] sm:$0xff]
    %v3913 = vld [vmem:[%s5 + $0x2d] sm:$0xff]
    %v3914 = vld [vmem:[%s5 + $0x4] sm:$0x1]
    %v3915 = vlaneseq
    %v3916 = vshrl.u32 %v3915, 7
    %v3917 = vsub.s32 0, %v3916
    %v3918 = vrot.slane %v3914, %v3917
    %v3920 = vsel %vm122, %v3909, 0
    %v3923 = vsel %vm122, %v3910, 0
    %3925 = vmatprep.subr.mxu0 0.0
    %3926 = vmatpush1.msra.mxu0 0.0
    %3927 = vmatprep.subr.mxu0 0.0
    %3928 = vmatpush1.msra.mxu0 0.0
    %3929 = vmatprep.subr.mxu0 0.0
    %3930 = vmatpush1.msra.mxu0 0.0
    %3931 = vmatprep.subr.mxu0 0.0
    %3932 = vmatpush1.msra.mxu0 0.0
    %3933 = vmatprep.subr.mxu0 0.0
    %3934 = vmatpush1.msra.mxu0 0.0
    %3935 = vmatprep.subr.mxu0 0.0
    %3936 = vmatpush1.msra.mxu0 0.0
    %3937 = vmatprep.subr.mxu0 0.0
    %3938 = vmatpush1.msra.mxu0 0.0
    %3939 = vmatprep.subr.mxu0 0.0
    %3940 = vmatpush1.msra.mxu0 0.0
    %3941 = vmatprep.subr.mxu0 0.0
    %3942 = vmatpush1.msra.mxu0 0.0
    %3943 = vmatprep.subr.mxu0 0.0
    %3944 = vmatpush1.msra.mxu0 0.0
    %3945 = vmatprep.subr.mxu0 0.0
    %3946 = vmatpush1.msra.mxu0 0.0
    %3947 = vmatprep.subr.mxu0 0.0
    %3948 = vmatpush1.msra.mxu0 0.0
    %3949 = vmatprep.subr.mxu0 0.0
    %3950 = vmatpush1.msra.mxu0 0.0
    %3951 = vmatprep.subr.mxu0 0.0
    %3952 = vmatpush1.msra.mxu0 %v3913
    %3953 = vmatprep.subr.mxu0 0.0
    %3954 = vmatpush1.msra.mxu0 %v3912
    %3955 = vmatprep.subr.mxu0 0.0
    %3956 = vmatpush1.msra.mxu0 %v3911
    %3957 = vmatprep.subr.mxu0 0.0
    %3958 = vmatpush2.msra.mxu0 0.0
    %3959 = vmatprep.subr.mxu0 0.0
    %3960 = vmatpush2.msra.mxu0 0.0
    %3961 = vmatprep.subr.mxu0 0.0
    %3962 = vmatpush2.msra.mxu0 0.0
    %3963 = vmatprep.subr.mxu0 0.0
    %3964 = vmatpush2.msra.mxu0 0.0
    %3965 = vmatprep.subr.mxu0 0.0
    %3966 = vmatpush2.msra.mxu0 0.0
    %3967 = vmatprep.subr.mxu0 0.0
    %3968 = vmatpush2.msra.mxu0 0.0
    %3969 = vmatprep.subr.mxu0 0.0
    %3970 = vmatpush2.msra.mxu0 0.0
    %3971 = vmatprep.subr.mxu0 0.0
    %3972 = vmatpush2.msra.mxu0 0.0
    %3973 = vmatprep.subr.mxu0 0.0
    %3974 = vmatpush2.msra.mxu0 0.0
    %3975 = vmatprep.subr.mxu0 0.0
    %3976 = vmatpush2.msra.mxu0 0.0
    %3977 = vmatprep.subr.mxu0 0.0
    %3978 = vmatpush2.msra.mxu0 0.0
    %3979 = vmatprep.subr.mxu0 0.0
    %3980 = vmatpush2.msra.mxu0 0.0
    %3981 = vmatprep.subr.mxu0 0.0
    %3982 = vmatpush2.msra.mxu0 0.0
    %3983 = vmatprep.subr.mxu0 0.0
    %3984 = vmatpush2.msra.mxu0 0.0
    %3985 = vmatprep.subr.mxu0 0.0
    %3986 = vmatpush2.msra.mxu0 0.0
    %3987 = vmatprep.subr.mxu0 0.0
    %3988 = vmatpush2.msra.mxu0 0.0
    %3989 = vmatprep.mubr.f32.mxu0 0.0
    %3990 = vmatmul.mubr.f32.gmra.mxu0 %v3920
    %v3991 = vpop.f32.mrf.mxu0
    %v3992 = vadd.f32 %v3918, %v3991
    %v3993 = vpop.f32.mrf.mxu0
    %3994 = vmatprep.mubr.f32.mxu0 0.0
    %3995 = vmatmul.mubr.f32.gmra.mxu0 %v3923
    %v3996 = vpop.f32.mrf.mxu0
    %v3997 = vadd.f32 %v3918, %v3996
    %v3998 = vpop.f32.mrf.mxu0
    %3999 = vdwg.mxu0
    %v4000 = vxor.u32 %v3992, 2147483648
    %v4001 = vxor.u32 %v3997, 2147483648
    %v4002 = vmul.f32 %v4000, 1.442695
    %v4003 = vpow.pop %v4002
    %v4004 = vmul.f32 %v4001, 1.442695
    %v4005 = vpow.pop %v4004
    %v4006 = vadd.f32 %v4003, 1.0
    %v4007 = vadd.f32 %v4005, 1.0
    %v4008 = vrcp.pop %v4006
    %v4009 = vmul.f32 1.0, %v4008
    %v4010 = vrcp.pop %v4007
    %v4011 = vmul.f32 1.0, %v4010
    %v4012 = vmul.f32 %v3992, %v4009
    %v4013 = vmul.f32 %v3997, %v4011
    %v4014 = vld [vmem:[%s5 + $0x35] sm:$0xff]
    %v4015 = vld [vmem:[%s5 + $0x3d] sm:$0xff]
    %v4016 = vld [vmem:[%s5 + $0x45] sm:$0xff]
    %v4017 = vld [vmem:[%s5 + $0x4d] sm:$0xff]
    %v4018 = vld [vmem:[%s5 + $0x55] sm:$0xff]
    %v4019 = vld [vmem:[%s5 + $0x5d] sm:$0xff]
    %4020 = vrot.lane.b32.xlu0 %v2811, 116
    %v4021 = vpop.permute.xlu0 %4020
    %v4024 = vsel %vm37, %v4012, 0
    %v4027 = vsel %vm37, %v4013, 0
    %4029 = vmatprep.subr.mxu0 0.0
    %4030 = vmatpush1.msra.mxu0 0.0
    %4031 = vmatprep.subr.mxu0 0.0
    %4032 = vmatpush1.msra.mxu0 0.0
    %4033 = vmatprep.subr.mxu0 0.0
    %4034 = vmatpush1.msra.mxu0 0.0
    %4035 = vmatprep.subr.mxu0 0.0
    %4036 = vmatpush1.msra.mxu0 0.0
    %4037 = vmatprep.subr.mxu0 0.0
    %4038 = vmatpush1.msra.mxu0 0.0
    %4039 = vmatprep.subr.mxu0 0.0
    %4040 = vmatpush1.msra.mxu0 0.0
    %4041 = vmatprep.subr.mxu0 0.0
    %4042 = vmatpush1.msra.mxu0 0.0
    %4043 = vmatprep.subr.mxu0 0.0
    %4044 = vmatpush1.msra.mxu0 0.0
    %4045 = vmatprep.subr.mxu0 0.0
    %4046 = vmatpush1.msra.mxu0 0.0
    %4047 = vmatprep.subr.mxu0 0.0
    %4048 = vmatpush1.msra.mxu0 0.0
    %4049 = vmatprep.subr.mxu0 0.0
    %4050 = vmatpush1.msra.mxu0 %v4019
    %4051 = vmatprep.subr.mxu0 0.0
    %4052 = vmatpush1.msra.mxu0 %v4018
    %4053 = vmatprep.subr.mxu0 0.0
    %4054 = vmatpush1.msra.mxu0 %v4017
    %4055 = vmatprep.subr.mxu0 0.0
    %4056 = vmatpush1.msra.mxu0 %v4016
    %4057 = vmatprep.subr.mxu0 0.0
    %4058 = vmatpush1.msra.mxu0 %v4015
    %4059 = vmatprep.subr.mxu0 0.0
    %4060 = vmatpush1.msra.mxu0 %v4014
    %4061 = vmatprep.subr.mxu0 0.0
    %4062 = vmatpush2.msra.mxu0 0.0
    %4063 = vmatprep.subr.mxu0 0.0
    %4064 = vmatpush2.msra.mxu0 0.0
    %4065 = vmatprep.subr.mxu0 0.0
    %4066 = vmatpush2.msra.mxu0 0.0
    %4067 = vmatprep.subr.mxu0 0.0
    %4068 = vmatpush2.msra.mxu0 0.0
    %4069 = vmatprep.subr.mxu0 0.0
    %4070 = vmatpush2.msra.mxu0 0.0
    %4071 = vmatprep.subr.mxu0 0.0
    %4072 = vmatpush2.msra.mxu0 0.0
    %4073 = vmatprep.subr.mxu0 0.0
    %4074 = vmatpush2.msra.mxu0 0.0
    %4075 = vmatprep.subr.mxu0 0.0
    %4076 = vmatpush2.msra.mxu0 0.0
    %4077 = vmatprep.subr.mxu0 0.0
    %4078 = vmatpush2.msra.mxu0 0.0
    %4079 = vmatprep.subr.mxu0 0.0
    %4080 = vmatpush2.msra.mxu0 0.0
    %4081 = vmatprep.subr.mxu0 0.0
    %4082 = vmatpush2.msra.mxu0 0.0
    %4083 = vmatprep.subr.mxu0 0.0
    %4084 = vmatpush2.msra.mxu0 0.0
    %4085 = vmatprep.subr.mxu0 0.0
    %4086 = vmatpush2.msra.mxu0 0.0
    %4087 = vmatprep.subr.mxu0 0.0
    %4088 = vmatpush2.msra.mxu0 0.0
    %4089 = vmatprep.subr.mxu0 0.0
    %4090 = vmatpush2.msra.mxu0 0.0
    %4091 = vmatprep.subr.mxu0 0.0
    %4092 = vmatpush2.msra.mxu0 0.0
    %4093 = vmatprep.mubr.f32.mxu0 0.0
    %4094 = vmatmul.mubr.f32.gmra.mxu0 %v4024
    %v4095 = vpop.f32.mrf.mxu0
    %v4096 = vadd.f32 %v4021, %v4095
    %v4097 = vpop.f32.mrf.mxu0
    %4098 = vmatprep.mubr.f32.mxu0 0.0
    %4099 = vmatmul.mubr.f32.gmra.mxu0 %v4027
    %v4100 = vpop.f32.mrf.mxu0
    %v4101 = vadd.f32 %v4021, %v4100
    %v4102 = vpop.f32.mrf.mxu0
    %4103 = vdwg.mxu0
    %v4104 = vadd.f32 %v4096, %v3870
    %v4105 = vadd.f32 %v4101, %v3871
    %v4106 = vld [vmem:[%s6] sm:$0x1]
    %v4107 = vld [vmem:[%s6 + $0x1] sm:$0x1]
    %v4108 = vld [vmem:[%s6 + $0x2] sm:$0x1]
    %v4109 = vld [vmem:[%s6 + $0x3] sm:$0xff]
    %v4110 = vld [vmem:[%s6 + $0xb] sm:$0xff]
    %v4111 = vld [vmem:[%s6 + $0x13] sm:$0xff]
    %v4112 = vsel %vm122, %v4104, 0.0
    %4113 = vadd.xlane.f32.xlu0 %v4112
    %v4114 = vpop.xlane.xlu0 %4113
    %v4115 = vsel %vm122, %v4105, 0.0
    %4116 = vadd.xlane.f32.xlu0 %v4115
    %v4117 = vpop.xlane.xlu0 %4116
    %v4118 = vmul.f32 %v4114, %v129
    %v4119 = vmul.f32 %v4117, %v129
    %v4120 = vsub.f32 %v4104, %v4118
    %v4121 = vsub.f32 %v4105, %v4119
    %v4122 = vmul.f32 %v4120, %v4120
    %v4123 = vmul.f32 %v4121, %v4121
    %v4124 = vsel %vm122, %v4122, 0.0
    %4125 = vadd.xlane.f32.xlu0 %v4124
    %v4126 = vpop.xlane.xlu0 %4125
    %v4127 = vsel %vm122, %v4123, 0.0
    %4128 = vadd.xlane.f32.xlu0 %v4127
    %v4129 = vpop.xlane.xlu0 %4128
    %v4130 = vmul.f32 %v4126, %v129
    %v4131 = vmul.f32 %v4129, %v129
    %v4132 = vadd.f32 %v4130, 1e-06
    %v4133 = vadd.f32 %v4131, 1e-06
    %v4134 = vrsqrt.pop %v4132
    %v4135 = vrsqrt.pop %v4133
    %v4136 = vmul.f32 %v4120, %v4134
    %v4137 = vmul.f32 %v4121, %v4135
    %v4138 = vlaneseq
    %v4139 = vshrl.u32 %v4138, 7
    %v4140 = vsub.s32 0, %v4139
    %v4141 = vrot.slane %v4106, %v4140
    %v4142 = vmul.f32 %v4136, %v4141
    %v4143 = vmul.f32 %v4137, %v4141
    %v4144 = vlaneseq
    %v4145 = vshrl.u32 %v4144, 7
    %v4146 = vsub.s32 0, %v4145
    %v4147 = vrot.slane %v4107, %v4146
    %v4148 = vadd.f32 %v4142, %v4147
    %v4149 = vadd.f32 %v4143, %v4147
    %v4150 = vsel %vm122, %v4148, 0.0
    %v4151 = vrot.slane %v4150, 4
    %v4152 = vadd.f32 %v4150, %v4151
    %v4153 = vrot.slane %v4152, 2
    %v4154 = vadd.f32 %v4152, %v4153
    %v4155 = vrot.slane %v4154, 1
    %v4156 = vadd.f32 %v4154, %v4155
    %v4157 = vrcp.pop 8.0
    %v4158 = vmul.f32 %v4156, %v4157
    %v4159 = vsel %vm122, %v4149, 0.0
    %v4160 = vrot.slane %v4159, 4
    %v4161 = vadd.f32 %v4159, %v4160
    %v4162 = vrot.slane %v4161, 2
    %v4163 = vadd.f32 %v4161, %v4162
    %v4164 = vrot.slane %v4163, 1
    %v4165 = vadd.f32 %v4163, %v4164
    %v4166 = vmul.f32 %v4165, %v4157
    %v4167 = vsel %vm1718, %v4158, %v4166
    %v4168 = vlaneseq
    %v4169 = vshrl.u32 %v4168, 7
    %v4170 = vsub.s32 0, %v4169
    %v4171 = vrot.slane %v4108, %v4170
    %v4173 = vsel %vm122, %v4167, 0
    %4175 = vmatprep.subr.mxu0 0.0
    %4176 = vmatpush1.msra.mxu0 0.0
    %4177 = vmatprep.subr.mxu0 0.0
    %4178 = vmatpush1.msra.mxu0 0.0
    %4179 = vmatprep.subr.mxu0 0.0
    %4180 = vmatpush1.msra.mxu0 0.0
    %4181 = vmatprep.subr.mxu0 0.0
    %4182 = vmatpush1.msra.mxu0 0.0
    %4183 = vmatprep.subr.mxu0 0.0
    %4184 = vmatpush1.msra.mxu0 0.0
    %4185 = vmatprep.subr.mxu0 0.0
    %4186 = vmatpush1.msra.mxu0 0.0
    %4187 = vmatprep.subr.mxu0 0.0
    %4188 = vmatpush1.msra.mxu0 0.0
    %4189 = vmatprep.subr.mxu0 0.0
    %4190 = vmatpush1.msra.mxu0 0.0
    %4191 = vmatprep.subr.mxu0 0.0
    %4192 = vmatpush1.msra.mxu0 0.0
    %4193 = vmatprep.subr.mxu0 0.0
    %4194 = vmatpush1.msra.mxu0 0.0
    %4195 = vmatprep.subr.mxu0 0.0
    %4196 = vmatpush1.msra.mxu0 0.0
    %4197 = vmatprep.subr.mxu0 0.0
    %4198 = vmatpush1.msra.mxu0 0.0
    %4199 = vmatprep.subr.mxu0 0.0
    %4200 = vmatpush1.msra.mxu0 0.0
    %4201 = vmatprep.subr.mxu0 0.0
    %4202 = vmatpush1.msra.mxu0 %v4111
    %4203 = vmatprep.subr.mxu0 0.0
    %4204 = vmatpush1.msra.mxu0 %v4110
    %4205 = vmatprep.subr.mxu0 0.0
    %4206 = vmatpush1.msra.mxu0 %v4109
    %4207 = vmatprep.subr.mxu0 0.0
    %4208 = vmatpush2.msra.mxu0 0.0
    %4209 = vmatprep.subr.mxu0 0.0
    %4210 = vmatpush2.msra.mxu0 0.0
    %4211 = vmatprep.subr.mxu0 0.0
    %4212 = vmatpush2.msra.mxu0 0.0
    %4213 = vmatprep.subr.mxu0 0.0
    %4214 = vmatpush2.msra.mxu0 0.0
    %4215 = vmatprep.subr.mxu0 0.0
    %4216 = vmatpush2.msra.mxu0 0.0
    %4217 = vmatprep.subr.mxu0 0.0
    %4218 = vmatpush2.msra.mxu0 0.0
    %4219 = vmatprep.subr.mxu0 0.0
    %4220 = vmatpush2.msra.mxu0 0.0
    %4221 = vmatprep.subr.mxu0 0.0
    %4222 = vmatpush2.msra.mxu0 0.0
    %4223 = vmatprep.subr.mxu0 0.0
    %4224 = vmatpush2.msra.mxu0 0.0
    %4225 = vmatprep.subr.mxu0 0.0
    %4226 = vmatpush2.msra.mxu0 0.0
    %4227 = vmatprep.subr.mxu0 0.0
    %4228 = vmatpush2.msra.mxu0 0.0
    %4229 = vmatprep.subr.mxu0 0.0
    %4230 = vmatpush2.msra.mxu0 0.0
    %4231 = vmatprep.subr.mxu0 0.0
    %4232 = vmatpush2.msra.mxu0 0.0
    %4233 = vmatprep.subr.mxu0 0.0
    %4234 = vmatpush2.msra.mxu0 0.0
    %4235 = vmatprep.subr.mxu0 0.0
    %4236 = vmatpush2.msra.mxu0 0.0
    %4237 = vmatprep.subr.mxu0 0.0
    %4238 = vmatpush2.msra.mxu0 0.0
    %4239 = vmatprep.mubr.f32.mxu0 0.0
    %4240 = vmatmul.mubr.f32.gmra.mxu0 %v4173
    %v4241 = vpop.f32.mrf.mxu0
    %v4242 = vadd.f32 %v4171, %v4241
    %v4243 = vpop.f32.mrf.mxu0
    %4244 = vdwg.mxu0
    %v4245 = vxor.u32 %v4242, 2147483648
    %v4246 = vmul.f32 %v4245, 1.442695
    %v4247 = vpow.pop %v4246
    %v4248 = vadd.f32 %v4247, 1.0
    %v4249 = vrcp.pop %v4248
    %v4250 = vmul.f32 1.0, %v4249
    %v4251 = vmul.f32 %v4242, %v4250
    %vm4252 = vcmask 254976
    %4253 = vst.msk [vmem:[#allocation2] sm:$0x3] %vm4252, %v4251
    // Predicated region
    $region30: #{_lambda_.1} parent=1 // pred_check
      _
    $region31: #{_lambda_.1} parent=1 // pred_check_branch
      %4255 = sbr.rel (0) target = $region33
    $region32: #{_lambda_.1} parent=1 // pred_region
      %s4257 = ssub.s32 32, 32
      %4258 = vsyncadd [#allocation3], %s4257
      %s4260 = sshll.u32 [#allocation2], 4
      %s4261 = int_to_ptr.vmem [resolvable:$true] %s4260
      %4263 = dma.vmem_to_hbm [thread:$0]  %s4261, 32, %s7, [#allocation3]
    $region33: #{_lambda_.1} parent=1 // pred_fallthru
      _
    // Predicated region
    $region34: #{_lambda_.1} parent=1 // pred_check
      _
    $region35: #{_lambda_.1} parent=1 // pred_check_branch
      %4265 = sbr.rel (0) target = $region37
    $region36: #{_lambda_.1} parent=1 // pred_region
      %4266 = dma.done [#allocation3], 32
    $region37: #{_lambda_.1} parent=1 // pred_fallthru
      _
    %4267 = vsyncpa [#allocation3], 1

</llo_original>
